<compile_context>
chip_gen: v6e
topology: v6e:2x2x1
jax: 0.10.0
libtpu: 0.0.40
codegen_flags: <defaults>
</compile_context>

<pallas_src>
import jax
import jax.numpy as jnp
import numpy as np
from jax.experimental import pallas as pl
from jax.experimental.pallas import tpu as pltpu


def _round_up(x, m):
  return ((x + m - 1) // m) * m


def _pad_rows(x, rows):
  n = x.shape[0]
  if n == rows:
    return x
  pad = [(0, rows - n)] + [(0, 0)] * (x.ndim - 1)
  return jnp.pad(x, pad)


def hist_mem_updater_kernel(
    delta_ref, xin_ref, mem_ref, hfeat_ref,                # per-node inputs
    tw_ref, w_ih_x_ref, w_ih_t_ref, w_hh_ref,              # params (full)
    b_ih_ref, b_hh_ref, w_nf_ref, b_nf_ref,
    mem_out_ref, h_out_ref):                               # outputs
  H = mem_ref.shape[-1]
  md = w_ih_x_ref.dtype                                    # matmul dtype (bf16)

  # --- TimeEncode: cos(delta * w), bias = 0 (f32 on the EUP) ---------------
  tfeat = jnp.cos(delta_ref[...] * tw_ref[...])            # (tn, dim_time) f32

  # --- GRUCell(dim_in + dim_time, dim_hid) ---------------------------------
  # concat([mem_input, time_feat], 1) @ W_ih done as two split matmuls so the
  # concat never has to be materialized. bf16 operands, f32 accumulation.
  gi = (jnp.dot(xin_ref[...], w_ih_x_ref[...],
                preferred_element_type=jnp.float32)
        + jnp.dot(tfeat.astype(md), w_ih_t_ref[...],
                  preferred_element_type=jnp.float32)
        + b_ih_ref[...])                                   # (tn, 3H) f32
  mem = mem_ref[...]                                       # f32 (recurrent state)
  gh = (jnp.dot(mem.astype(md), w_hh_ref[...],
                preferred_element_type=jnp.float32)
        + b_hh_ref[...])                                   # (tn, 3H) f32

  r = jax.nn.sigmoid(gi[:, 0:H] + gh[:, 0:H])
  z = jax.nn.sigmoid(gi[:, H:2 * H] + gh[:, H:2 * H])
  n = jnp.tanh(gi[:, 2 * H:3 * H] + r * gh[:, 2 * H:3 * H])
  updated_memory = (1.0 - z) * n + z * mem

  # TODO(synk): learnable path (distributed Filter increments + gamma mixing)
  # needs cross-rank mutable state; non-learnable path uses
  # memory = updated_memory, which is what the PyTorch code implicitly assumes.
  memory = updated_memory
  mem_out_ref[...] = memory.astype(mem_out_ref.dtype)

  # combine_node_feature with dim_node_feat != dim_hid:
  #   h = memory + node_feat_map(h)
  nf = (jnp.dot(hfeat_ref[...], w_nf_ref[...],
                preferred_element_type=jnp.float32)
        + b_nf_ref[...])
  h_out_ref[...] = (memory + nf).astype(h_out_ref.dtype)


def historical_memory_updater(ts, mem_ts, mem_input, mem, h_feat, params,
                              *, tile_n=512, matmul_dtype=jnp.bfloat16):
  """Runs the fused HistoricalMemeoryUpdater forward as one Pallas kernel."""
  N, dim_in = mem_input.shape
  H = mem.shape[-1]
  dim_nf = h_feat.shape[-1]
  dim_time = params["time_w"].shape[-1]

  # Tile sizing: large tiles amortize per-step overhead & fill the MXU, but
  # don't over-pad tiny blocks; keep tile_n a multiple of 16 (bf16 sublanes).
  tile_n = _round_up(max(16, min(tile_n, _round_up(N, 128))), 16)
  Np = _round_up(N, tile_n)
  grid = (Np // tile_n,)

  # Precompute delta outside the kernel (one narrow stream instead of two).
  delta = (ts - mem_ts).reshape(N, 1).astype(jnp.float32)

  md = matmul_dtype
  xin = mem_input.astype(md)                 # only feeds the MXU -> bf16
  hfe = h_feat.astype(md)                    # only feeds the MXU -> bf16
  mem_f = mem.astype(jnp.float32)            # recurrent state stays f32
  w_ih = params["w_ih"].astype(md)
  w_ih_x = w_ih[:dim_in, :]
  w_ih_t = w_ih[dim_in:, :]
  w_hh = params["w_hh"].astype(md)
  w_nf = params["w_nf"].astype(md)
  b_ih = params["b_ih"].astype(jnp.float32)
  b_hh = params["b_hh"].astype(jnp.float32)
  b_nf = params["b_nf"].astype(jnp.float32)
  time_w = params["time_w"].astype(jnp.float32)

  # Ragged N: pad node rows up to a multiple of tile_n; extra rows compute
  # harmless values and are sliced off below.
  delta_p = _pad_rows(delta, Np)
  xin_p = _pad_rows(xin, Np)
  mem_p = _pad_rows(mem_f, Np)
  hfe_p = _pad_rows(hfe, Np)

  node_spec = lambda d: pl.BlockSpec((tile_n, d), lambda i: (i, 0))
  full_spec = lambda r, c: pl.BlockSpec((r, c), lambda i: (0, 0))

  grid_spec = pltpu.PrefetchScalarGridSpec(
      num_scalar_prefetch=0,
      grid=grid,
      in_specs=[
          node_spec(1),                    # delta = ts - mem_ts
          node_spec(dim_in),               # mem_input (bf16)
          node_spec(H),                    # mem (f32)
          node_spec(dim_nf),               # h_feat (bf16)
          full_spec(1, dim_time),          # time_w
          full_spec(dim_in, 3 * H),        # W_ih^T [mem_input rows]
          full_spec(dim_time, 3 * H),      # W_ih^T [time_feat rows]
          full_spec(H, 3 * H),             # W_hh^T
          full_spec(1, 3 * H),             # b_ih
          full_spec(1, 3 * H),             # b_hh
          full_spec(dim_nf, H),            # node_feat_map W^T
          full_spec(1, H),                 # node_feat_map b
      ],
      out_specs=[node_spec(H), node_spec(H)],
  )

  mem_out, h_out = pl.pallas_call(
      hist_mem_updater_kernel,
      out_shape=(jax.ShapeDtypeStruct((Np, H), jnp.float32),
                 jax.ShapeDtypeStruct((Np, H), jnp.float32)),
      grid_spec=grid_spec,
      compiler_params=pltpu.CompilerParams(
          dimension_semantics=("parallel",)),
  )(delta_p, xin_p, mem_p, hfe_p,
    time_w, w_ih_x, w_ih_t, w_hh, b_ih, b_hh, w_nf, b_nf)
  return mem_out[:N], h_out[:N]


def _reference(ts, mem_ts, mem_input, mem, h_feat, params,
               matmul_dtype=jnp.bfloat16):
  """Pure-JAX reference mirroring the PyTorch forward (bf16 matmul operands,
  f32 accumulation, f32 gate math — same numerics as the kernel)."""
  H = mem.shape[-1]
  din = mem_input.shape[-1]
  md = matmul_dtype
  delta = (ts - mem_ts).reshape(-1, 1)
  tfeat = jnp.cos(delta * params["time_w"])
  gi = (jnp.dot(mem_input.astype(md), params["w_ih"][:din].astype(md),
                preferred_element_type=jnp.float32)
        + jnp.dot(tfeat.astype(md), params["w_ih"][din:].astype(md),
                  preferred_element_type=jnp.float32)
        + params["b_ih"])
  gh = (jnp.dot(mem.astype(md), params["w_hh"].astype(md),
                preferred_element_type=jnp.float32)
        + params["b_hh"])
  r = jax.nn.sigmoid(gi[:, :H] + gh[:, :H])
  z = jax.nn.sigmoid(gi[:, H:2 * H] + gh[:, H:2 * H])
  n = jnp.tanh(gi[:, 2 * H:] + r * gh[:, 2 * H:])
  memory = (1.0 - z) * n + z * mem
  nf = (jnp.dot(h_feat.astype(md), params["w_nf"].astype(md),
                preferred_element_type=jnp.float32)
        + params["b_nf"])
  return memory, memory + nf


if __name__ == "__main__":
  # Small shapes consistent with the module's forward. N is intentionally NOT
  # a multiple of tile_n to exercise the ragged-tail (cdiv + padding) path.
  N = 200           # nodes in the MFG block
  DIM_IN = 64       # mem_input feature dim
  DIM_TIME = 32     # TimeEncode dim
  DIM_HID = 128     # memory / hidden dim
  DIM_NF = 64       # node feature dim (!= DIM_HID -> node_feat_map Linear)

  key = jax.random.PRNGKey(0)
  ks = jax.random.split(key, 12)

  ts = jax.random.uniform(ks[0], (N,), jnp.float32, 0.0, 100.0)
  mem_ts = jax.random.uniform(ks[1], (N,), jnp.float32, 0.0, 100.0)
  mem_input = jax.random.normal(ks[2], (N, DIM_IN), jnp.float32)
  mem = jax.random.normal(ks[3], (N, DIM_HID), jnp.float32)
  h_feat = jax.random.normal(ks[4], (N, DIM_NF), jnp.float32)

  # Deterministic parameter init (shapes from the module's __init__):
  #  - TimeEncode: w = 1 / 10**linspace(0, 9, dim_time), bias = 0
  #  - updater = GRUCell(dim_in + dim_time, dim_hid): uniform(+-1/sqrt(H))
  #  - node_feat_map = Linear(dim_node_feat, dim_hid)
  din_tot = DIM_IN + DIM_TIME
  bound = 1.0 / np.sqrt(DIM_HID)
  u = lambda k, shape: jax.random.uniform(k, shape, jnp.float32, -bound, bound)
  params = {
      "time_w": (1.0 / 10.0 ** jnp.linspace(0.0, 9.0, DIM_TIME)
                 ).reshape(1, DIM_TIME).astype(jnp.float32),
      "w_ih": u(ks[5], (din_tot, 3 * DIM_HID)),   # = PyTorch weight_ih.T
      "w_hh": u(ks[6], (DIM_HID, 3 * DIM_HID)),   # = PyTorch weight_hh.T
      "b_ih": u(ks[7], (1, 3 * DIM_HID)),
      "b_hh": u(ks[8], (1, 3 * DIM_HID)),
      "w_nf": u(ks[9], (DIM_NF, DIM_HID)),        # = node_feat_map.weight.T
      "b_nf": u(ks[10], (1, DIM_HID)),
  }

  mem_out, h_out = historical_memory_updater(
      ts, mem_ts, mem_input, mem, h_feat, params, tile_n=128)
  jax.block_until_ready((mem_out, h_out))
  assert mem_out.shape == (N, DIM_HID) and h_out.shape == (N, DIM_HID)

  ref_mem, ref_h = _reference(ts, mem_ts, mem_input, mem, h_feat, params)
  np.testing.assert_allclose(np.asarray(mem_out), np.asarray(ref_mem),
                             rtol=1e-2, atol=1e-2)
  np.testing.assert_allclose(np.asarray(h_out), np.asarray(ref_h),
                             rtol=1e-2, atol=1e-2)
  print("KERNEL_OK")
</pallas_src>

<mosaic_0001>
module attributes {stable_mosaic.version = 11 : i64} {
  func.func @hist_mem_updater_kernel(%arg0: i32, %arg1: memref<128x1xf32, #tpu.memory_space<vmem>>, %arg2: memref<128x64xbf16, #tpu.memory_space<vmem>>, %arg3: memref<128x128xf32, #tpu.memory_space<vmem>>, %arg4: memref<128x64xbf16, #tpu.memory_space<vmem>>, %arg5: memref<1x32xf32, #tpu.memory_space<vmem>>, %arg6: memref<64x384xbf16, #tpu.memory_space<vmem>>, %arg7: memref<32x384xbf16, #tpu.memory_space<vmem>>, %arg8: memref<128x384xbf16, #tpu.memory_space<vmem>>, %arg9: memref<1x384xf32, #tpu.memory_space<vmem>>, %arg10: memref<1x384xf32, #tpu.memory_space<vmem>>, %arg11: memref<64x128xbf16, #tpu.memory_space<vmem>>, %arg12: memref<1x128xf32, #tpu.memory_space<vmem>>, %arg13: memref<128x128xf32, #tpu.memory_space<vmem>>, %arg14: memref<128x128xf32, #tpu.memory_space<vmem>>) attributes {dimension_semantics = [#tpu.dimension_semantics<parallel>], iteration_bounds = array<i64: 2>, scalar_prefetch = 0 : i64, scratch_operands = 0 : i64, tpu.core_type = #tpu.core_type<tc>, window_params = [{transform_indices = @transform_0, window_bounds = array<i64: 128, 1>}, {transform_indices = @transform_1, window_bounds = array<i64: 128, 64>}, {transform_indices = @transform_2, window_bounds = array<i64: 128, 128>}, {transform_indices = @transform_3, window_bounds = array<i64: 128, 64>}, {pipeline_mode = #tpu.pipeline_mode<synchronous>, transform_indices = @transform_4, window_bounds = array<i64: 1, 32>}, {pipeline_mode = #tpu.pipeline_mode<synchronous>, transform_indices = @transform_5, window_bounds = array<i64: 64, 384>}, {pipeline_mode = #tpu.pipeline_mode<synchronous>, transform_indices = @transform_6, window_bounds = array<i64: 32, 384>}, {pipeline_mode = #tpu.pipeline_mode<synchronous>, transform_indices = @transform_7, window_bounds = array<i64: 128, 384>}, {pipeline_mode = #tpu.pipeline_mode<synchronous>, transform_indices = @transform_8, window_bounds = array<i64: 1, 384>}, {pipeline_mode = #tpu.pipeline_mode<synchronous>, transform_indices = @transform_9, window_bounds = array<i64: 1, 384>}, {pipeline_mode = #tpu.pipeline_mode<synchronous>, transform_indices = @transform_10, window_bounds = array<i64: 64, 128>}, {pipeline_mode = #tpu.pipeline_mode<synchronous>, transform_indices = @transform_11, window_bounds = array<i64: 1, 128>}, {transform_indices = @transform_12, window_bounds = array<i64: 128, 128>}, {transform_indices = @transform_13, window_bounds = array<i64: 128, 128>}]} {
    %c0 = arith.constant 0 : index
    %c0_0 = arith.constant 0 : index
    %0 = vector.load %arg1[%c0, %c0_0] : memref<128x1xf32, #tpu.memory_space<vmem>>, vector<128x1xf32>
    %c0_1 = arith.constant 0 : index
    %c0_2 = arith.constant 0 : index
    %1 = vector.load %arg5[%c0_1, %c0_2] : memref<1x32xf32, #tpu.memory_space<vmem>>, vector<1x32xf32>
    %2 = vector.broadcast %0 : vector<128x1xf32> to vector<128x32xf32>
    %3 = vector.broadcast %1 : vector<1x32xf32> to vector<128x32xf32>
    %4 = arith.mulf %2, %3 : vector<128x32xf32>
    %5 = math.cos %4 : vector<128x32xf32>
    %c0_3 = arith.constant 0 : index
    %c0_4 = arith.constant 0 : index
    %6 = vector.load %arg2[%c0_3, %c0_4] : memref<128x64xbf16, #tpu.memory_space<vmem>>, vector<128x64xbf16>
    %c0_5 = arith.constant 0 : index
    %c0_6 = arith.constant 0 : index
    %7 = vector.load %arg6[%c0_5, %c0_6] : memref<64x384xbf16, #tpu.memory_space<vmem>>, vector<64x384xbf16>
    %cst = arith.constant dense<0.000000e+00> : vector<128x384xf32>
    %8 = tpu.matmul %6, %7, %cst {dimension_numbers = #tpu.dot_dimension_numbers<[1], [0], [0], [1], [0, 0, 1, 1], [], []>} : vector<128x64xbf16>, vector<64x384xbf16>, vector<128x384xf32> -> vector<128x384xf32>
    %9 = arith.truncf %5 : vector<128x32xf32> to vector<128x32xbf16>
    %c0_7 = arith.constant 0 : index
    %c0_8 = arith.constant 0 : index
    %10 = vector.load %arg7[%c0_7, %c0_8] : memref<32x384xbf16, #tpu.memory_space<vmem>>, vector<32x384xbf16>
    %cst_9 = arith.constant dense<0.000000e+00> : vector<128x384xf32>
    %11 = tpu.matmul %9, %10, %cst_9 {dimension_numbers = #tpu.dot_dimension_numbers<[1], [0], [0], [1], [0, 0, 1, 1], [], []>} : vector<128x32xbf16>, vector<32x384xbf16>, vector<128x384xf32> -> vector<128x384xf32>
    %12 = arith.addf %8, %11 : vector<128x384xf32>
    %c0_10 = arith.constant 0 : index
    %c0_11 = arith.constant 0 : index
    %13 = vector.load %arg9[%c0_10, %c0_11] : memref<1x384xf32, #tpu.memory_space<vmem>>, vector<1x384xf32>
    %14 = vector.broadcast %13 : vector<1x384xf32> to vector<128x384xf32>
    %15 = arith.addf %12, %14 : vector<128x384xf32>
    %c0_12 = arith.constant 0 : index
    %c0_13 = arith.constant 0 : index
    %16 = vector.load %arg3[%c0_12, %c0_13] : memref<128x128xf32, #tpu.memory_space<vmem>>, vector<128x128xf32>
    %17 = arith.truncf %16 : vector<128x128xf32> to vector<128x128xbf16>
    %c0_14 = arith.constant 0 : index
    %c0_15 = arith.constant 0 : index
    %18 = vector.load %arg8[%c0_14, %c0_15] : memref<128x384xbf16, #tpu.memory_space<vmem>>, vector<128x384xbf16>
    %cst_16 = arith.constant dense<0.000000e+00> : vector<128x384xf32>
    %19 = tpu.matmul %17, %18, %cst_16 {dimension_numbers = #tpu.dot_dimension_numbers<[1], [0], [0], [1], [0, 0, 1, 1], [], []>} : vector<128x128xbf16>, vector<128x384xbf16>, vector<128x384xf32> -> vector<128x384xf32>
    %c0_17 = arith.constant 0 : index
    %c0_18 = arith.constant 0 : index
    %20 = vector.load %arg10[%c0_17, %c0_18] : memref<1x384xf32, #tpu.memory_space<vmem>>, vector<1x384xf32>
    %21 = vector.broadcast %20 : vector<1x384xf32> to vector<128x384xf32>
    %22 = arith.addf %19, %21 : vector<128x384xf32>
    %23 = vector.extract_strided_slice %15 {offsets = [0, 0], sizes = [128, 128], strides = [1, 1]} : vector<128x384xf32> to vector<128x128xf32>
    %24 = vector.extract_strided_slice %22 {offsets = [0, 0], sizes = [128, 128], strides = [1, 1]} : vector<128x384xf32> to vector<128x128xf32>
    %25 = arith.addf %23, %24 : vector<128x128xf32>
    %26 = arith.negf %25 : vector<128x128xf32>
    %27 = math.exp %26 : vector<128x128xf32>
    %cst_19 = arith.constant 1.000000e+00 : f32
    %28 = vector.broadcast %cst_19 : f32 to vector<128x128xf32>
    %29 = arith.addf %28, %27 : vector<128x128xf32>
    %30 = arith.divf %28, %29 : vector<128x128xf32>
    %31 = vector.extract_strided_slice %15 {offsets = [0, 128], sizes = [128, 128], strides = [1, 1]} : vector<128x384xf32> to vector<128x128xf32>
    %32 = vector.extract_strided_slice %22 {offsets = [0, 128], sizes = [128, 128], strides = [1, 1]} : vector<128x384xf32> to vector<128x128xf32>
    %33 = arith.addf %31, %32 : vector<128x128xf32>
    %34 = arith.negf %33 : vector<128x128xf32>
    %35 = math.exp %34 : vector<128x128xf32>
    %cst_20 = arith.constant 1.000000e+00 : f32
    %36 = vector.broadcast %cst_20 : f32 to vector<128x128xf32>
    %37 = arith.addf %36, %35 : vector<128x128xf32>
    %38 = arith.divf %36, %37 : vector<128x128xf32>
    %39 = vector.extract_strided_slice %15 {offsets = [0, 256], sizes = [128, 128], strides = [1, 1]} : vector<128x384xf32> to vector<128x128xf32>
    %40 = vector.extract_strided_slice %22 {offsets = [0, 256], sizes = [128, 128], strides = [1, 1]} : vector<128x384xf32> to vector<128x128xf32>
    %41 = arith.mulf %30, %40 : vector<128x128xf32>
    %42 = arith.addf %39, %41 : vector<128x128xf32>
    %43 = math.tanh %42 : vector<128x128xf32>
    %cst_21 = arith.constant 1.000000e+00 : f32
    %44 = vector.broadcast %cst_21 : f32 to vector<128x128xf32>
    %45 = arith.subf %44, %38 : vector<128x128xf32>
    %46 = arith.mulf %45, %43 : vector<128x128xf32>
    %47 = arith.mulf %38, %16 : vector<128x128xf32>
    %48 = arith.addf %46, %47 : vector<128x128xf32>
    %c0_22 = arith.constant 0 : index
    %c0_23 = arith.constant 0 : index
    %49 = vector.load %arg13[%c0_22, %c0_23] : memref<128x128xf32, #tpu.memory_space<vmem>>, vector<128x128xf32>
    tpu.vector_store %arg13[%c0_22, %c0_23], %48 {strides = array<i32>} : memref<128x128xf32, #tpu.memory_space<vmem>>, vector<128x128xf32>,
    %c0_24 = arith.constant 0 : index
    %c0_25 = arith.constant 0 : index
    %50 = vector.load %arg4[%c0_24, %c0_25] : memref<128x64xbf16, #tpu.memory_space<vmem>>, vector<128x64xbf16>
    %c0_26 = arith.constant 0 : index
    %c0_27 = arith.constant 0 : index
    %51 = vector.load %arg11[%c0_26, %c0_27] : memref<64x128xbf16, #tpu.memory_space<vmem>>, vector<64x128xbf16>
    %cst_28 = arith.constant dense<0.000000e+00> : vector<128x128xf32>
    %52 = tpu.matmul %50, %51, %cst_28 {dimension_numbers = #tpu.dot_dimension_numbers<[1], [0], [0], [1], [0, 0, 1, 1], [], []>} : vector<128x64xbf16>, vector<64x128xbf16>, vector<128x128xf32> -> vector<128x128xf32>
    %c0_29 = arith.constant 0 : index
    %c0_30 = arith.constant 0 : index
    %53 = vector.load %arg12[%c0_29, %c0_30] : memref<1x128xf32, #tpu.memory_space<vmem>>, vector<1x128xf32>
    %54 = vector.broadcast %53 : vector<1x128xf32> to vector<128x128xf32>
    %55 = arith.addf %52, %54 : vector<128x128xf32>
    %56 = arith.addf %48, %55 : vector<128x128xf32>
    %c0_31 = arith.constant 0 : index
    %c0_32 = arith.constant 0 : index
    %57 = vector.load %arg14[%c0_31, %c0_32] : memref<128x128xf32, #tpu.memory_space<vmem>>, vector<128x128xf32>
    tpu.vector_store %arg14[%c0_31, %c0_32], %56 {strides = array<i32>} : memref<128x128xf32, #tpu.memory_space<vmem>>, vector<128x128xf32>,
    return
  }
  func.func @transform_0(%arg0: i32) -> (i32, i32) {
    %c0_i32 = arith.constant 0 : i32
    %c0_i32_0 = arith.constant 0 : i32
    return %arg0, %c0_i32 : i32, i32
  }
  func.func @transform_1(%arg0: i32) -> (i32, i32) {
    %c0_i32 = arith.constant 0 : i32
    %c0_i32_0 = arith.constant 0 : i32
    return %arg0, %c0_i32 : i32, i32
  }
  func.func @transform_2(%arg0: i32) -> (i32, i32) {
    %c0_i32 = arith.constant 0 : i32
    %c0_i32_0 = arith.constant 0 : i32
    return %arg0, %c0_i32 : i32, i32
  }
  func.func @transform_3(%arg0: i32) -> (i32, i32) {
    %c0_i32 = arith.constant 0 : i32
    %c0_i32_0 = arith.constant 0 : i32
    return %arg0, %c0_i32 : i32, i32
  }
  func.func @transform_4(%arg0: i32) -> (i32, i32) {
    %c0_i32 = arith.constant 0 : i32
    %c0_i32_0 = arith.constant 0 : i32
    %c0_i32_1 = arith.constant 0 : i32
    return %c0_i32, %c0_i32_0 : i32, i32
  }
  func.func @transform_5(%arg0: i32) -> (i32, i32) {
    %c0_i32 = arith.constant 0 : i32
    %c0_i32_0 = arith.constant 0 : i32
    %c0_i32_1 = arith.constant 0 : i32
    return %c0_i32, %c0_i32_0 : i32, i32
  }
  func.func @transform_6(%arg0: i32) -> (i32, i32) {
    %c0_i32 = arith.constant 0 : i32
    %c0_i32_0 = arith.constant 0 : i32
    %c0_i32_1 = arith.constant 0 : i32
    return %c0_i32, %c0_i32_0 : i32, i32
  }
  func.func @transform_7(%arg0: i32) -> (i32, i32) {
    %c0_i32 = arith.constant 0 : i32
    %c0_i32_0 = arith.constant 0 : i32
    %c0_i32_1 = arith.constant 0 : i32
    return %c0_i32, %c0_i32_0 : i32, i32
  }
  func.func @transform_8(%arg0: i32) -> (i32, i32) {
    %c0_i32 = arith.constant 0 : i32
    %c0_i32_0 = arith.constant 0 : i32
    %c0_i32_1 = arith.constant 0 : i32
    return %c0_i32, %c0_i32_0 : i32, i32
  }
  func.func @transform_9(%arg0: i32) -> (i32, i32) {
    %c0_i32 = arith.constant 0 : i32
    %c0_i32_0 = arith.constant 0 : i32
    %c0_i32_1 = arith.constant 0 : i32
    return %c0_i32, %c0_i32_0 : i32, i32
  }
  func.func @transform_10(%arg0: i32) -> (i32, i32) {
    %c0_i32 = arith.constant 0 : i32
    %c0_i32_0 = arith.constant 0 : i32
    %c0_i32_1 = arith.constant 0 : i32
    return %c0_i32, %c0_i32_0 : i32, i32
  }
  func.func @transform_11(%arg0: i32) -> (i32, i32) {
    %c0_i32 = arith.constant 0 : i32
    %c0_i32_0 = arith.constant 0 : i32
    %c0_i32_1 = arith.constant 0 : i32
    return %c0_i32, %c0_i32_0 : i32, i32
  }
  func.func @transform_12(%arg0: i32) -> (i32, i32) {
    %c0_i32 = arith.constant 0 : i32
    %c0_i32_0 = arith.constant 0 : i32
    return %arg0, %c0_i32 : i32, i32
  }
  func.func @transform_13(%arg0: i32) -> (i32, i32) {
    %c0_i32 = arith.constant 0 : i32
    %c0_i32_0 = arith.constant 0 : i32
    return %arg0, %c0_i32 : i32, i32
  }
}

</mosaic_0001>

<llo_original>
// kernel: tpu_custom_call.1
$region0: #{tpu_custom_call.1}
  #allocation0 [shape = 'u32[]', space=smem, size = 0x4, offset = 0x4, fixed_abs, tag = 'smem constant byte address 0x4 - core index']
  #allocation1 [shape = 'u32[144,128]{1,0:T(1,128)}', space=vmem, size = 0x12000, scoped, tag = 'internal scratch']
  %s0 = inlined_call_operand.vmem [shape: f32[256,1], index: 0, kind: input, shape index: {}]
  %s1 = inlined_call_operand.vmem [shape: bf16[256,64], index: 1, kind: input, shape index: {}]
  %s2 = inlined_call_operand.vmem [shape: f32[256,128], index: 2, kind: input, shape index: {}]
  %s3 = inlined_call_operand.vmem [shape: bf16[256,64], index: 3, kind: input, shape index: {}]
  %s4 = inlined_call_operand.vmem [shape: f32[1,32], index: 4, kind: input, shape index: {}]
  %s5 = inlined_call_operand.vmem [shape: bf16[64,384], index: 5, kind: input, shape index: {}]
  %s6 = inlined_call_operand.hbm [shape: bf16[32,384], index: 6, kind: input, shape index: {}]
  %s7 = inlined_call_operand.vmem [shape: bf16[128,384], index: 7, kind: input, shape index: {}]
  %s8 = inlined_call_operand.vmem [shape: f32[1,384], index: 8, kind: input, shape index: {}]
  %s9 = inlined_call_operand.vmem [shape: f32[1,384], index: 9, kind: input, shape index: {}]
  %s10 = inlined_call_operand.vmem [shape: bf16[64,128], index: 10, kind: input, shape index: {}]
  %s11 = inlined_call_operand.vmem [shape: f32[1,128], index: 11, kind: input, shape index: {}]
  %s12 = inlined_call_operand.hbm [shape: f32[256,128], index: 12, kind: output, shape index: {0}]
  %s13 = inlined_call_operand.hbm [shape: f32[256,128], index: 13, kind: output, shape index: {1}]
  %14 = xla_tuple %s12, %s13
  %s15 = sld [smem:[#allocation0]]
  $region93: #{tpu_custom_call.1} parent=0
    _
  %s17 = ssub.s32 1, %s15
  %s18 = scalar_select 0, %s17, %s15
  $region1: #{tpu_custom_call.1} parent=0
    #allocation2 [shape = 'u8[24576]{0}', space=vmem, size = 0x6000, scoped, tag = 'input window, operand 6, single buffered']
    #allocation3 [shape = 's32[2]{0}', space=sflag, size = 0x8, scoped, tag = 'scoped memory for tpu_custom_call.1']
    #allocation4 [shape = 's32[2]{0}', space=sflag, size = 0x8, scoped, tag = 'scoped memory for tpu_custom_call.1']
    #allocation5 [shape = 'u8[131072]{0}', space=vmem, size = 0x20000, scoped, tag = 'output window, operand 0']
    #allocation6 [shape = 'u8[131072]{0}', space=vmem, size = 0x20000, scoped, tag = 'output window, operand 1']
    #allocation7 [shape = 's32[2]{0}', space=sflag, size = 0x8, scoped, tag = 'scoped memory for tpu_custom_call.1']
    %19 = vsyncpa [#allocation3], 0
    %20 = vsyncpa [#allocation4], 0
    %s21 = scalar_lea.sflag [#allocation4], 1
    %22 = vsyncpa %s21, 0
    %23 = vsyncpa [#allocation7], 0
    %s24 = scalar_lea.sflag [#allocation7], 1
    %25 = vsyncpa %s24, 0
    loop: start=0, step=1, limit=4
    $region2: #{tpu_custom_call.1} parent=1 // loop_pre_header
      _
    $region3: #{tpu_custom_call.1} parent=1 // loop_header
      %s27 = sphi 0, %s31
      %p28 = scmp.ge.s32.totalorder %s27, 4
      %s37 = sphi 0, %s39
      %s40 = sphi 0, %s37
      %s41 = sphi 0, %s40
      %s57 = sphi 0, %s41
      %s63 = sphi 0, %s65
      %s66 = sphi 0, %s63
      %s67 = sphi 0, %s66
      %s83 = sphi 0, %s67
      %s89 = sphi 0, %s91
      %s92 = sphi 0, %s89
      %s93 = sphi 0, %s92
      %s109 = sphi 0, %s93
      %s115 = sphi 0, %s117
      %s118 = sphi 0, %s115
      %s119 = sphi 0, %s118
      %s135 = sphi 0, %s119
      %s139 = sphi 0, %s139
      %s141 = sphi 0, %s139
      %s142 = sphi 0, %s141
      %s156 = sphi 0, %s142
      %s160 = sphi 0, %s160
      %s162 = sphi 0, %s160
      %s163 = sphi 0, %s162
      %s177 = sphi 0, %s163
      %s181 = sphi 0, %s181
      %s183 = sphi 0, %s181
      %s184 = sphi 0, %s183
      %s198 = sphi 0, %s184
      %s202 = sphi 0, %s202
      %s204 = sphi 0, %s202
      %s205 = sphi 0, %s204
      %s219 = sphi 0, %s205
      %s223 = sphi 0, %s223
      %s225 = sphi 0, %s223
      %s226 = sphi 0, %s225
      %s240 = sphi 0, %s226
      %s244 = sphi 0, %s244
      %s246 = sphi 0, %s244
      %s247 = sphi 0, %s246
      %s261 = sphi 0, %s247
      %s265 = sphi 0, %s265
      %s267 = sphi 0, %s265
      %s268 = sphi 0, %s267
      %s282 = sphi 0, %s268
      %s286 = sphi 0, %s286
      %s288 = sphi 0, %s286
      %s289 = sphi 0, %s288
      %s303 = sphi 0, %s289
      %s309 = sphi 0, %s311
      %s312 = sphi 0, %s309
      %s313 = sphi 0, %s312
      %s329 = sphi 0, %s313
      %s335 = sphi 0, %s337
      %s338 = sphi 0, %s335
      %s339 = sphi 0, %s338
      %s355 = sphi 0, %s339
    $region4: #{tpu_custom_call.1} parent=1 // loop_header_branch
      %30 = sbr.rel (%p28) target = $region8
    $region5: #{tpu_custom_call.1} parent=1 // loop_body
      %s32 = ssub.s32 %s27, 1
      %s33 = ssub.s32 %s27, 2
      %s34 = sadd.s32 %s27, 1
      %s35 = ssub.s32 %s27, %s34
      %p36 = scmp.eq.s32.totalorder %s35, 0
      %s38 = sadd.s32 %s37, 1
      %s39 = scalar_select %p36, %s37, %s38
      %p42 = pneg %p36
      %p43 = scmp.eq.s32.totalorder %s27, 1
      %p44 = por %p42, %p43
      %p45 = scmp.ne.s32.totalorder %s37, %s40
      %p46 = scmp.eq.s32.totalorder %s27, 0
      %p47 = por %p45, %p46
      %p48 = scmp.ne.s32.totalorder %s37, %s40
      %p49 = scmp.eq.s32.totalorder %s32, 1
      %p50 = por %p48, %p49
      %p51 = scmp.ne.s32.totalorder %s40, %s41
      %p52 = scmp.eq.s32.totalorder %s32, 0
      %p53 = por %p51, %p52
      %p54 = scmp.ne.s32.totalorder %s40, %s41
      %p55 = scmp.eq.s32.totalorder %s33, 1
      %p56 = por %p54, %p55
      %p58 = scmp.ne.s32.totalorder %s41, %s57
      %p59 = scmp.eq.s32.totalorder %s33, 0
      %p60 = por %p58, %p59
      %s61 = ssub.s32 %s27, %s34
      %p62 = scmp.eq.s32.totalorder %s61, 0
      %s64 = sadd.s32 %s63, 1
      %s65 = scalar_select %p62, %s63, %s64
      %p68 = pneg %p62
      %p69 = scmp.eq.s32.totalorder %s27, 1
      %p70 = por %p68, %p69
      %p71 = scmp.ne.s32.totalorder %s63, %s66
      %p72 = scmp.eq.s32.totalorder %s27, 0
      %p73 = por %p71, %p72
      %p74 = scmp.ne.s32.totalorder %s63, %s66
      %p75 = scmp.eq.s32.totalorder %s32, 1
      %p76 = por %p74, %p75
      %p77 = scmp.ne.s32.totalorder %s66, %s67
      %p78 = scmp.eq.s32.totalorder %s32, 0
      %p79 = por %p77, %p78
      %p80 = scmp.ne.s32.totalorder %s66, %s67
      %p81 = scmp.eq.s32.totalorder %s33, 1
      %p82 = por %p80, %p81
      %p84 = scmp.ne.s32.totalorder %s67, %s83
      %p85 = scmp.eq.s32.totalorder %s33, 0
      %p86 = por %p84, %p85
      %s87 = ssub.s32 %s27, %s34
      %p88 = scmp.eq.s32.totalorder %s87, 0
      %s90 = sadd.s32 %s89, 1
      %s91 = scalar_select %p88, %s89, %s90
      %p94 = pneg %p88
      %p95 = scmp.eq.s32.totalorder %s27, 1
      %p96 = por %p94, %p95
      %p97 = scmp.ne.s32.totalorder %s89, %s92
      %p98 = scmp.eq.s32.totalorder %s27, 0
      %p99 = por %p97, %p98
      %p100 = scmp.ne.s32.totalorder %s89, %s92
      %p101 = scmp.eq.s32.totalorder %s32, 1
      %p102 = por %p100, %p101
      %p103 = scmp.ne.s32.totalorder %s92, %s93
      %p104 = scmp.eq.s32.totalorder %s32, 0
      %p105 = por %p103, %p104
      %p106 = scmp.ne.s32.totalorder %s92, %s93
      %p107 = scmp.eq.s32.totalorder %s33, 1
      %p108 = por %p106, %p107
      %p110 = scmp.ne.s32.totalorder %s93, %s109
      %p111 = scmp.eq.s32.totalorder %s33, 0
      %p112 = por %p110, %p111
      %s113 = ssub.s32 %s27, %s34
      %p114 = scmp.eq.s32.totalorder %s113, 0
      %s116 = sadd.s32 %s115, 1
      %s117 = scalar_select %p114, %s115, %s116
      %p120 = pneg %p114
      %p121 = scmp.eq.s32.totalorder %s27, 1
      %p122 = por %p120, %p121
      %p123 = scmp.ne.s32.totalorder %s115, %s118
      %p124 = scmp.eq.s32.totalorder %s27, 0
      %p125 = por %p123, %p124
      %p126 = scmp.ne.s32.totalorder %s115, %s118
      %p127 = scmp.eq.s32.totalorder %s32, 1
      %p128 = por %p126, %p127
      %p129 = scmp.ne.s32.totalorder %s118, %s119
      %p130 = scmp.eq.s32.totalorder %s32, 0
      %p131 = por %p129, %p130
      %p132 = scmp.ne.s32.totalorder %s118, %s119
      %p133 = scmp.eq.s32.totalorder %s33, 1
      %p134 = por %p132, %p133
      %p136 = scmp.ne.s32.totalorder %s119, %s135
      %p137 = scmp.eq.s32.totalorder %s33, 0
      %p138 = por %p136, %p137
      %s140 = sadd.s32 %s139, 1
      %p143 = scmp.eq.s32.totalorder %s27, 1
      %p144 = scmp.ne.s32.totalorder %s139, %s141
      %p145 = scmp.eq.s32.totalorder %s27, 0
      %p146 = por %p144, %p145
      %p147 = scmp.ne.s32.totalorder %s139, %s141
      %p148 = scmp.eq.s32.totalorder %s32, 1
      %p149 = por %p147, %p148
      %p150 = scmp.ne.s32.totalorder %s141, %s142
      %p151 = scmp.eq.s32.totalorder %s32, 0
      %p152 = por %p150, %p151
      %p153 = scmp.ne.s32.totalorder %s141, %s142
      %p154 = scmp.eq.s32.totalorder %s33, 1
      %p155 = por %p153, %p154
      %p157 = scmp.ne.s32.totalorder %s142, %s156
      %p158 = scmp.eq.s32.totalorder %s33, 0
      %p159 = por %p157, %p158
      %s161 = sadd.s32 %s160, 1
      %p164 = scmp.eq.s32.totalorder %s27, 1
      %p165 = scmp.ne.s32.totalorder %s160, %s162
      %p166 = scmp.eq.s32.totalorder %s27, 0
      %p167 = por %p165, %p166
      %p168 = scmp.ne.s32.totalorder %s160, %s162
      %p169 = scmp.eq.s32.totalorder %s32, 1
      %p170 = por %p168, %p169
      %p171 = scmp.ne.s32.totalorder %s162, %s163
      %p172 = scmp.eq.s32.totalorder %s32, 0
      %p173 = por %p171, %p172
      %p174 = scmp.ne.s32.totalorder %s162, %s163
      %p175 = scmp.eq.s32.totalorder %s33, 1
      %p176 = por %p174, %p175
      %p178 = scmp.ne.s32.totalorder %s163, %s177
      %p179 = scmp.eq.s32.totalorder %s33, 0
      %p180 = por %p178, %p179
      %s182 = sadd.s32 %s181, 1
      %p185 = scmp.eq.s32.totalorder %s27, 1
      %p186 = scmp.ne.s32.totalorder %s181, %s183
      %p187 = scmp.eq.s32.totalorder %s27, 0
      %p188 = por %p186, %p187
      %p189 = scmp.ne.s32.totalorder %s181, %s183
      %p190 = scmp.eq.s32.totalorder %s32, 1
      %p191 = por %p189, %p190
      %p192 = scmp.ne.s32.totalorder %s183, %s184
      %p193 = scmp.eq.s32.totalorder %s32, 0
      %p194 = por %p192, %p193
      %p195 = scmp.ne.s32.totalorder %s183, %s184
      %p196 = scmp.eq.s32.totalorder %s33, 1
      %p197 = por %p195, %p196
      %p199 = scmp.ne.s32.totalorder %s184, %s198
      %p200 = scmp.eq.s32.totalorder %s33, 0
      %p201 = por %p199, %p200
      %s203 = sadd.s32 %s202, 1
      %p206 = scmp.eq.s32.totalorder %s27, 1
      %p207 = scmp.ne.s32.totalorder %s202, %s204
      %p208 = scmp.eq.s32.totalorder %s27, 0
      %p209 = por %p207, %p208
      %p210 = scmp.ne.s32.totalorder %s202, %s204
      %p211 = scmp.eq.s32.totalorder %s32, 1
      %p212 = por %p210, %p211
      %p213 = scmp.ne.s32.totalorder %s204, %s205
      %p214 = scmp.eq.s32.totalorder %s32, 0
      %p215 = por %p213, %p214
      %p216 = scmp.ne.s32.totalorder %s204, %s205
      %p217 = scmp.eq.s32.totalorder %s33, 1
      %p218 = por %p216, %p217
      %p220 = scmp.ne.s32.totalorder %s205, %s219
      %p221 = scmp.eq.s32.totalorder %s33, 0
      %p222 = por %p220, %p221
      %s224 = sadd.s32 %s223, 1
      %p227 = scmp.eq.s32.totalorder %s27, 1
      %p228 = scmp.ne.s32.totalorder %s223, %s225
      %p229 = scmp.eq.s32.totalorder %s27, 0
      %p230 = por %p228, %p229
      %p231 = scmp.ne.s32.totalorder %s223, %s225
      %p232 = scmp.eq.s32.totalorder %s32, 1
      %p233 = por %p231, %p232
      %p234 = scmp.ne.s32.totalorder %s225, %s226
      %p235 = scmp.eq.s32.totalorder %s32, 0
      %p236 = por %p234, %p235
      %p237 = scmp.ne.s32.totalorder %s225, %s226
      %p238 = scmp.eq.s32.totalorder %s33, 1
      %p239 = por %p237, %p238
      %p241 = scmp.ne.s32.totalorder %s226, %s240
      %p242 = scmp.eq.s32.totalorder %s33, 0
      %p243 = por %p241, %p242
      %s245 = sadd.s32 %s244, 1
      %p248 = scmp.eq.s32.totalorder %s27, 1
      %p249 = scmp.ne.s32.totalorder %s244, %s246
      %p250 = scmp.eq.s32.totalorder %s27, 0
      %p251 = por %p249, %p250
      %p252 = scmp.ne.s32.totalorder %s244, %s246
      %p253 = scmp.eq.s32.totalorder %s32, 1
      %p254 = por %p252, %p253
      %p255 = scmp.ne.s32.totalorder %s246, %s247
      %p256 = scmp.eq.s32.totalorder %s32, 0
      %p257 = por %p255, %p256
      %p258 = scmp.ne.s32.totalorder %s246, %s247
      %p259 = scmp.eq.s32.totalorder %s33, 1
      %p260 = por %p258, %p259
      %p262 = scmp.ne.s32.totalorder %s247, %s261
      %p263 = scmp.eq.s32.totalorder %s33, 0
      %p264 = por %p262, %p263
      %s266 = sadd.s32 %s265, 1
      %p269 = scmp.eq.s32.totalorder %s27, 1
      %p270 = scmp.ne.s32.totalorder %s265, %s267
      %p271 = scmp.eq.s32.totalorder %s27, 0
      %p272 = por %p270, %p271
      %p273 = scmp.ne.s32.totalorder %s265, %s267
      %p274 = scmp.eq.s32.totalorder %s32, 1
      %p275 = por %p273, %p274
      %p276 = scmp.ne.s32.totalorder %s267, %s268
      %p277 = scmp.eq.s32.totalorder %s32, 0
      %p278 = por %p276, %p277
      %p279 = scmp.ne.s32.totalorder %s267, %s268
      %p280 = scmp.eq.s32.totalorder %s33, 1
      %p281 = por %p279, %p280
      %p283 = scmp.ne.s32.totalorder %s268, %s282
      %p284 = scmp.eq.s32.totalorder %s33, 0
      %p285 = por %p283, %p284
      %s287 = sadd.s32 %s286, 1
      %p290 = scmp.eq.s32.totalorder %s27, 1
      %p291 = scmp.ne.s32.totalorder %s286, %s288
      %p292 = scmp.eq.s32.totalorder %s27, 0
      %p293 = por %p291, %p292
      %p294 = scmp.ne.s32.totalorder %s286, %s288
      %p295 = scmp.eq.s32.totalorder %s32, 1
      %p296 = por %p294, %p295
      %p297 = scmp.ne.s32.totalorder %s288, %s289
      %p298 = scmp.eq.s32.totalorder %s32, 0
      %p299 = por %p297, %p298
      %p300 = scmp.ne.s32.totalorder %s288, %s289
      %p301 = scmp.eq.s32.totalorder %s33, 1
      %p302 = por %p300, %p301
      %p304 = scmp.ne.s32.totalorder %s289, %s303
      %p305 = scmp.eq.s32.totalorder %s33, 0
      %p306 = por %p304, %p305
      %s307 = ssub.s32 %s27, %s34
      %p308 = scmp.eq.s32.totalorder %s307, 0
      %s310 = sadd.s32 %s309, 1
      %s311 = scalar_select %p308, %s309, %s310
      %p314 = pneg %p308
      %p315 = scmp.eq.s32.totalorder %s27, 1
      %p316 = por %p314, %p315
      %p317 = scmp.ne.s32.totalorder %s309, %s312
      %p318 = scmp.eq.s32.totalorder %s27, 0
      %p319 = por %p317, %p318
      %p320 = scmp.ne.s32.totalorder %s309, %s312
      %p321 = scmp.eq.s32.totalorder %s32, 1
      %p322 = por %p320, %p321
      %p323 = scmp.ne.s32.totalorder %s312, %s313
      %p324 = scmp.eq.s32.totalorder %s32, 0
      %p325 = por %p323, %p324
      %p326 = scmp.ne.s32.totalorder %s312, %s313
      %p327 = scmp.eq.s32.totalorder %s33, 1
      %p328 = por %p326, %p327
      %p330 = scmp.ne.s32.totalorder %s313, %s329
      %p331 = scmp.eq.s32.totalorder %s33, 0
      %p332 = por %p330, %p331
      %s333 = ssub.s32 %s27, %s34
      %p334 = scmp.eq.s32.totalorder %s333, 0
      %s336 = sadd.s32 %s335, 1
      %s337 = scalar_select %p334, %s335, %s336
      %p340 = pneg %p334
      %p341 = scmp.eq.s32.totalorder %s27, 1
      %p342 = por %p340, %p341
      %p343 = scmp.ne.s32.totalorder %s335, %s338
      %p344 = scmp.eq.s32.totalorder %s27, 0
      %p345 = por %p343, %p344
      %p346 = scmp.ne.s32.totalorder %s335, %s338
      %p347 = scmp.eq.s32.totalorder %s32, 1
      %p348 = por %p346, %p347
      %p349 = scmp.ne.s32.totalorder %s338, %s339
      %p350 = scmp.eq.s32.totalorder %s32, 0
      %p351 = por %p349, %p350
      %p352 = scmp.ne.s32.totalorder %s338, %s339
      %p353 = scmp.eq.s32.totalorder %s33, 1
      %p354 = por %p352, %p353
      %p356 = scmp.ne.s32.totalorder %s339, %s355
      %p357 = scmp.eq.s32.totalorder %s33, 0
      %p358 = por %p356, %p357
      %p359 = scmp.le.s32.totalorder 1, %s27
      %p360 = scmp.lt.s32.totalorder %s27, 3
      %p361 = pnand %p359, %p360
      %p362 = pneg %p361
      // Predicated region
      $region9: #{tpu_custom_call.1} parent=5 // pred_check
        _
      $region10: #{tpu_custom_call.1} parent=5 // pred_check_branch
        %364 = sbr.rel (%p361) target = $region12
      $region11: #{tpu_custom_call.1} parent=5 // pred_region
        %s365 = ssub.s32 %s27, 1
        // Predicated region
        $region13: #{tpu_custom_call.1} parent=11 // pred_check
          %p366 = pneg %p152
        $region14: #{tpu_custom_call.1} parent=11 // pred_check_branch
          %368 = sbr.rel (%p366) target = $region16
        $region15: #{tpu_custom_call.1} parent=11 // pred_region
          _
        $region16: #{tpu_custom_call.1} parent=11 // pred_fallthru
          _
        // Predicated region
        $region17: #{tpu_custom_call.1} parent=11 // pred_check
          %p369 = pneg %p173
        $region18: #{tpu_custom_call.1} parent=11 // pred_check_branch
          %371 = sbr.rel (%p369) target = $region20
        $region19: #{tpu_custom_call.1} parent=11 // pred_region
          _
        $region20: #{tpu_custom_call.1} parent=11 // pred_fallthru
          _
        // Predicated region
        $region21: #{tpu_custom_call.1} parent=11 // pred_check
          %p372 = pneg %p194
        $region22: #{tpu_custom_call.1} parent=11 // pred_check_branch
          %374 = sbr.rel (%p372) target = $region24
        $region23: #{tpu_custom_call.1} parent=11 // pred_region
          %s376 = ssub.s32 768, 768
          %377 = vsyncadd [#allocation3], %s376
          %s378 = sshll.u32 [#allocation2], 4
          %s379 = int_to_ptr.vmem [resolvable:$true] %s378
          %384 = dma.hbm_to_vmem [thread:$0]  %s6, 768, %s379, [#allocation3], 192, 192, 12
        $region24: #{tpu_custom_call.1} parent=11 // pred_fallthru
          _
        // Predicated region
        $region25: #{tpu_custom_call.1} parent=11 // pred_check
          %p385 = pneg %p215
        $region26: #{tpu_custom_call.1} parent=11 // pred_check_branch
          %387 = sbr.rel (%p385) target = $region28
        $region27: #{tpu_custom_call.1} parent=11 // pred_region
          _
        $region28: #{tpu_custom_call.1} parent=11 // pred_fallthru
          _
        // Predicated region
        $region29: #{tpu_custom_call.1} parent=11 // pred_check
          %p388 = pneg %p236
        $region30: #{tpu_custom_call.1} parent=11 // pred_check_branch
          %390 = sbr.rel (%p388) target = $region32
        $region31: #{tpu_custom_call.1} parent=11 // pred_region
          _
        $region32: #{tpu_custom_call.1} parent=11 // pred_fallthru
          _
        // Predicated region
        $region33: #{tpu_custom_call.1} parent=11 // pred_check
          %p391 = pneg %p257
        $region34: #{tpu_custom_call.1} parent=11 // pred_check_branch
          %393 = sbr.rel (%p391) target = $region36
        $region35: #{tpu_custom_call.1} parent=11 // pred_region
          _
        $region36: #{tpu_custom_call.1} parent=11 // pred_fallthru
          _
        // Predicated region
        $region37: #{tpu_custom_call.1} parent=11 // pred_check
          %p394 = pneg %p278
        $region38: #{tpu_custom_call.1} parent=11 // pred_check_branch
          %396 = sbr.rel (%p394) target = $region40
        $region39: #{tpu_custom_call.1} parent=11 // pred_region
          _
        $region40: #{tpu_custom_call.1} parent=11 // pred_fallthru
          _
        // Predicated region
        $region41: #{tpu_custom_call.1} parent=11 // pred_check
          %p397 = pneg %p299
        $region42: #{tpu_custom_call.1} parent=11 // pred_check_branch
          %399 = sbr.rel (%p397) target = $region44
        $region43: #{tpu_custom_call.1} parent=11 // pred_region
          _
        $region44: #{tpu_custom_call.1} parent=11 // pred_fallthru
          _
      $region12: #{tpu_custom_call.1} parent=5 // pred_fallthru
        _
      %p400 = scmp.lt.s32.totalorder %s27, 2
      // Predicated region
      $region45: #{tpu_custom_call.1} parent=5 // pred_check
        %p401 = pneg %p400
      $region46: #{tpu_custom_call.1} parent=5 // pred_check_branch
        %403 = sbr.rel (%p401) target = $region48
      $region47: #{tpu_custom_call.1} parent=5 // pred_region
        // Predicated region
        $region49: #{tpu_custom_call.1} parent=47 // pred_check
          %p404 = pneg %p47
        $region50: #{tpu_custom_call.1} parent=47 // pred_check_branch
          %406 = sbr.rel (%p404) target = $region52
        $region51: #{tpu_custom_call.1} parent=47 // pred_region
          %s407 = smul.u32 16, %s27
          %p408 = scmp.lt.s32.totalorder %s407, 31
          %s409 = scalar_select %p408, %s407, 31
          %s410 = smul.addr %s409, 8
          %s411 = scalar_lea.vmem %s0, %s410
          %s412 = smul.u32 16, %s27
        $region52: #{tpu_custom_call.1} parent=47 // pred_fallthru
          _
        // Predicated region
        $region53: #{tpu_custom_call.1} parent=47 // pred_check
          %p413 = pneg %p73
        $region54: #{tpu_custom_call.1} parent=47 // pred_check_branch
          %415 = sbr.rel (%p413) target = $region56
        $region55: #{tpu_custom_call.1} parent=47 // pred_region
          %s416 = smul.u32 16, %s27
          %p417 = scmp.lt.s32.totalorder %s416, 31
          %s418 = scalar_select %p417, %s416, 31
          %s419 = smul.addr %s418, 4
          %s420 = scalar_lea.vmem %s1, %s419
          %s421 = smul.u32 16, %s27
        $region56: #{tpu_custom_call.1} parent=47 // pred_fallthru
          _
        // Predicated region
        $region57: #{tpu_custom_call.1} parent=47 // pred_check
          %p422 = pneg %p99
        $region58: #{tpu_custom_call.1} parent=47 // pred_check_branch
          %424 = sbr.rel (%p422) target = $region60
        $region59: #{tpu_custom_call.1} parent=47 // pred_region
          %s425 = smul.u32 16, %s27
          %p426 = scmp.lt.s32.totalorder %s425, 31
          %s427 = scalar_select %p426, %s425, 31
          %s428 = smul.addr %s427, 8
          %s429 = scalar_lea.vmem %s2, %s428
          %s430 = smul.u32 16, %s27
        $region60: #{tpu_custom_call.1} parent=47 // pred_fallthru
          _
        // Predicated region
        $region61: #{tpu_custom_call.1} parent=47 // pred_check
          %p431 = pneg %p125
        $region62: #{tpu_custom_call.1} parent=47 // pred_check_branch
          %433 = sbr.rel (%p431) target = $region64
        $region63: #{tpu_custom_call.1} parent=47 // pred_region
          %s434 = smul.u32 16, %s27
          %p435 = scmp.lt.s32.totalorder %s434, 31
          %s436 = scalar_select %p435, %s434, 31
          %s437 = smul.addr %s436, 4
          %s438 = scalar_lea.vmem %s3, %s437
          %s439 = smul.u32 16, %s27
        $region64: #{tpu_custom_call.1} parent=47 // pred_fallthru
          _
      $region48: #{tpu_custom_call.1} parent=5 // pred_fallthru
        _
      %p440 = scmp.le.s32.totalorder 1, %s27
      %p441 = scmp.lt.s32.totalorder %s27, 3
      %p442 = pnand %p440, %p441
      %p443 = pneg %p442
      // Predicated region
      $region65: #{tpu_custom_call.1} parent=5 // pred_check
        _
      $region66: #{tpu_custom_call.1} parent=5 // pred_check_branch
        %445 = sbr.rel (%p442) target = $region68
      $region67: #{tpu_custom_call.1} parent=5 // pred_region
        %s446 = ssub.s32 %s27, 1
        // Predicated region
        $region69: #{tpu_custom_call.1} parent=67 // pred_check
          %p447 = pneg %p194
        $region70: #{tpu_custom_call.1} parent=67 // pred_check_branch
          %449 = sbr.rel (%p447) target = $region72
        $region71: #{tpu_custom_call.1} parent=67 // pred_region
          %450 = dma.done [#allocation3], 768
        $region72: #{tpu_custom_call.1} parent=67 // pred_fallthru
          _
        %s451 = smul.u32 16, %s32
        %p452 = scmp.lt.s32.totalorder %s451, 31
        %s453 = scalar_select %p452, %s451, 31
        %s454 = smul.addr %s453, 8
        %s455 = scalar_lea.vmem %s0, %s454
        %p456 = pneg %p53
        %p457 = pneg %p50
        %s458 = smul.u32 16, %s32
        %p459 = scmp.lt.s32.totalorder %s458, 31
        %s460 = scalar_select %p459, %s458, 31
        %s461 = smul.addr %s460, 4
        %s462 = scalar_lea.vmem %s1, %s461
        %p463 = pneg %p79
        %p464 = pneg %p76
        %s465 = smul.u32 16, %s32
        %p466 = scmp.lt.s32.totalorder %s465, 31
        %s467 = scalar_select %p466, %s465, 31
        %s468 = smul.addr %s467, 8
        %s469 = scalar_lea.vmem %s2, %s468
        %p470 = pneg %p105
        %p471 = pneg %p102
        %s472 = smul.u32 16, %s32
        %p473 = scmp.lt.s32.totalorder %s472, 31
        %s474 = scalar_select %p473, %s472, 31
        %s475 = smul.addr %s474, 4
        %s476 = scalar_lea.vmem %s3, %s475
        %p477 = pneg %p131
        %p478 = pneg %p128
        %p479 = pneg %p152
        %p480 = pneg %p149
        %p481 = pneg %p173
        %p482 = pneg %p170
        %p483 = pneg %p194
        %p484 = pneg %p191
        %p485 = pneg %p215
        %p486 = pneg %p212
        %p487 = pneg %p236
        %p488 = pneg %p233
        %p489 = pneg %p257
        %p490 = pneg %p254
        %p491 = pneg %p278
        %p492 = pneg %p275
        %p493 = pneg %p299
        %p494 = pneg %p296
        %p495 = pneg %p325
        %p496 = pneg %p322
        %s497 = sand.u32 %s312, 1
        %s498 = scalar_lea.sflag [#allocation4], %s497
        %s499 = sand.u32 %s312, 1
        %s500 = smul.addr %s499, 128
        %s501 = scalar_lea.vmem [#allocation5], %s500
        %p502 = pneg %p351
        %p503 = pneg %p348
        %s504 = sand.u32 %s338, 1
        %s505 = scalar_lea.sflag [#allocation7], %s504
        %s506 = sand.u32 %s338, 1
        %s507 = smul.addr %s506, 128
        %s508 = scalar_lea.vmem [#allocation6], %s507
        %s509 = smul.u32 16, %s32
        %p510 = scmp.lt.s32.totalorder %s509, 31
        %s511 = scalar_select %p510, %s509, 31
        %s512 = smul.addr %s511, 8
        %s513 = scalar_lea.vmem %s0, %s512
        %s514 = smul.u32 16, %s32
        %s515 = smul.u32 16, %s32
        %p516 = scmp.lt.s32.totalorder %s515, 31
        %s517 = scalar_select %p516, %s515, 31
        %s518 = smul.addr %s517, 4
        %s519 = scalar_lea.vmem %s1, %s518
        %s520 = smul.u32 16, %s32
        %s521 = smul.u32 16, %s32
        %p522 = scmp.lt.s32.totalorder %s521, 31
        %s523 = scalar_select %p522, %s521, 31
        %s524 = smul.addr %s523, 8
        %s525 = scalar_lea.vmem %s2, %s524
        %s526 = smul.u32 16, %s32
        %s527 = smul.u32 16, %s32
        %p528 = scmp.lt.s32.totalorder %s527, 31
        %s529 = scalar_select %p528, %s527, 31
        %s530 = smul.addr %s529, 4
        %s531 = scalar_lea.vmem %s3, %s530
        %s532 = smul.u32 16, %s32
        %s533 = smul.u32 16, %s32
        %s534 = smul.u32 16, %s32
        %v536 = vld [vmem:[%s513] sm:$0xff]
        %v537 = vld [vmem:[%s513 + $0x8] sm:$0xff]
        %v538 = vld [vmem:[%s513 + $0x10] sm:$0xff]
        %v539 = vld [vmem:[%s513 + $0x18] sm:$0xff]
        %v540 = vld [vmem:[%s513 + $0x20] sm:$0xff]
        %v541 = vld [vmem:[%s513 + $0x28] sm:$0xff]
        %v542 = vld [vmem:[%s513 + $0x30] sm:$0xff]
        %v543 = vld [vmem:[%s513 + $0x38] sm:$0xff]
        %v544 = vld [vmem:[%s513 + $0x40] sm:$0xff]
        %v545 = vld [vmem:[%s513 + $0x48] sm:$0xff]
        %v546 = vld [vmem:[%s513 + $0x50] sm:$0xff]
        %v547 = vld [vmem:[%s513 + $0x58] sm:$0xff]
        %v548 = vld [vmem:[%s513 + $0x60] sm:$0xff]
        %v549 = vld [vmem:[%s513 + $0x68] sm:$0xff]
        %v550 = vld [vmem:[%s513 + $0x70] sm:$0xff]
        %v551 = vld [vmem:[%s513 + $0x78] sm:$0xff]
        %v552 = vld [vmem:[%s4] sm:$0x1]
        %554 = vset.pattern.permute.xlu0 0
        %555 = vperm.xlu0 %554, %v536
        %v556 = vpop.permute.xlu0 %555
        %559 = vset.pattern.permute.xlu0 0
        %560 = vperm.xlu0 %559, %v537
        %v561 = vpop.permute.xlu0 %560
        %564 = vset.pattern.permute.xlu0 0
        %565 = vperm.xlu0 %564, %v538
        %v566 = vpop.permute.xlu0 %565
        %569 = vset.pattern.permute.xlu0 0
        %570 = vperm.xlu0 %569, %v539
        %v571 = vpop.permute.xlu0 %570
        %574 = vset.pattern.permute.xlu0 0
        %575 = vperm.xlu0 %574, %v540
        %v576 = vpop.permute.xlu0 %575
        %579 = vset.pattern.permute.xlu0 0
        %580 = vperm.xlu0 %579, %v541
        %v581 = vpop.permute.xlu0 %580
        %584 = vset.pattern.permute.xlu0 0
        %585 = vperm.xlu0 %584, %v542
        %v586 = vpop.permute.xlu0 %585
        %589 = vset.pattern.permute.xlu0 0
        %590 = vperm.xlu0 %589, %v543
        %v591 = vpop.permute.xlu0 %590
        %594 = vset.pattern.permute.xlu0 0
        %595 = vperm.xlu0 %594, %v544
        %v596 = vpop.permute.xlu0 %595
        %599 = vset.pattern.permute.xlu0 0
        %600 = vperm.xlu0 %599, %v545
        %v601 = vpop.permute.xlu0 %600
        %604 = vset.pattern.permute.xlu0 0
        %605 = vperm.xlu0 %604, %v546
        %v606 = vpop.permute.xlu0 %605
        %609 = vset.pattern.permute.xlu0 0
        %610 = vperm.xlu0 %609, %v547
        %v611 = vpop.permute.xlu0 %610
        %614 = vset.pattern.permute.xlu0 0
        %615 = vperm.xlu0 %614, %v548
        %v616 = vpop.permute.xlu0 %615
        %619 = vset.pattern.permute.xlu0 0
        %620 = vperm.xlu0 %619, %v549
        %v621 = vpop.permute.xlu0 %620
        %624 = vset.pattern.permute.xlu0 0
        %625 = vperm.xlu0 %624, %v550
        %v626 = vpop.permute.xlu0 %625
        %629 = vset.pattern.permute.xlu0 0
        %630 = vperm.xlu0 %629, %v551
        %v631 = vpop.permute.xlu0 %630
        %v634 = vlaneseq
        %v635 = vshrl.u32 %v634, 7
        %v636 = vsub.s32 0, %v635
        %v637 = vrot.slane %v552, %v636
        %v639 = vmul.f32 %v556, %v637
        %v640 = vmul.f32 %v561, %v637
        %v641 = vmul.f32 %v566, %v637
        %v642 = vmul.f32 %v571, %v637
        %v643 = vmul.f32 %v576, %v637
        %v644 = vmul.f32 %v581, %v637
        %v645 = vmul.f32 %v586, %v637
        %v646 = vmul.f32 %v591, %v637
        %v647 = vmul.f32 %v596, %v637
        %v648 = vmul.f32 %v601, %v637
        %v649 = vmul.f32 %v606, %v637
        %v650 = vmul.f32 %v611, %v637
        %v651 = vmul.f32 %v616, %v637
        %v652 = vmul.f32 %v621, %v637
        %v653 = vmul.f32 %v626, %v637
        %v654 = vmul.f32 %v631, %v637
        %v655 = vand.u32 2147483647, %v639
        %vm656 = vcmp.le.f32.partialorder %v655, 0.7853982
        %vm657 = vcmp.lt.s32.totalorder %v639, 0
        %v658 = vand.u32 %v639, 2139095040
        %v659 = vshrl.u32 %v658, 23
        %v660 = vsub.s32 %v659, 127
        %v661 = vand.u32 2147483647, %v639
        %v662 = vand.u32 %v661, 8388607
        %v663 = vor.u32 %v662, 8388608
        %v664 = vsub.s32 0, %v663
        %v665 = vadd.s32 %v660, 1
        %vm666 = vcmp.gt.s32.totalorder %v665, 0
        %v667 = vsel %vm666, %v665, 0
        %v668 = vshrl.u32 %v667, 5
        %v669 = vand.u32 %v667, 31
        %v670 = vsub.s32 32, %v669
        %v671 = vshrl.u32 683565275, %v670
        %v672 = vshll.u32 683565275, %v669
        %v673 = vshrl.u32 2475754826, %v670
        %v674 = vor.u32 %v672, %v673
        %v675 = vshll.u32 2475754826, %v669
        %v676 = vshrl.u32 2131351028, %v670
        %v677 = vor.u32 %v675, %v676
        %v678 = vshll.u32 2131351028, %v669
        %v679 = vshrl.u32 2102212464, %v670
        %v680 = vor.u32 %v678, %v679
        %v681 = vshll.u32 2102212464, %v669
        %v682 = vshrl.u32 920167782, %v670
        %v683 = vor.u32 %v681, %v682
        %v684 = vshll.u32 920167782, %v669
        %v685 = vshrl.u32 1326507024, %v670
        %v686 = vor.u32 %v684, %v685
        %vm687 = vcmp.lt.s32.totalorder %v668, 1
        %vm688 = vcmp.lt.s32.totalorder %v668, 2
        %vm689 = vcmp.lt.s32.totalorder %v668, 3
        %vm690 = vcmp.lt.s32.totalorder %v668, 4
        %v691 = vsel %vm687, %v671, %v674
        %v692 = vsel %vm690, %v680, 2102212464
        %v693 = vsel %vm689, %v677, %v692
        %v694 = vsel %vm688, %v691, %v693
        %v695 = vsel %vm687, %v674, %v677
        %v696 = vsel %vm690, %v683, 920167782
        %v697 = vsel %vm689, %v680, %v696
        %v698 = vsel %vm688, %v695, %v697
        %v699 = vsel %vm687, %v677, %v680
        %v700 = vsel %vm690, %v686, 1326507024
        %v701 = vsel %vm689, %v683, %v700
        %v702 = vsel %vm688, %v699, %v701
        %v703 = vshll.u32 %v663, 8
        %v704 = vmul.u32.u64.compose %v703, %v702
        %v705 = vextract.low.u32 %v704
        %v706 = vextract.high.u32 %v704
        %v707 = vmul.u32.u64.compose %v703, %v698
        %v708 = vextract.low.u32 %v707
        %v709 = vextract.high.u32 %v707
        %v710 = vmul.u32 %v703, %v694
        %v711 = vadd.s32 %v706, %v708
        %vm712 = vc.u32 %v706, %v708
        %v713 = vadd.s32 %v709, 1
        %v714 = vsel %vm712, %v713, %v709
        %v715 = vadd.s32 %v710, %v714
        %v716 = vadd.s32 %v715, 536870912
        %v717 = vshrl.u32 %v716, 30
        %v718 = vshll.u32 %v717, 30
        %v719 = vsub.s32 %v715, %v718
        %vm720 = vcmp.lt.s32.totalorder %v719, 0
        %v721 = vsub.s32 0, %v719
        %v722 = vsel %vm720, %v721, %v719
        %v723 = vclz %v722
        %v724 = vsub.s32 %v723, 2
        %vm725 = vcmp.gt.s32.totalorder 0, %v724
        %v726 = vsel %vm725, 0, %v724
        %v727 = vsub.s32 32, %v726
        %v728 = vshll.u32 %v719, %v726
        %v729 = vshrl.u32 %v711, %v727
        %v730 = vor.u32 %v728, %v729
        %v731 = vsub.s32 4294967266, %v726
        %v732 = vadd.s32 %v731, 127
        %v733 = vshll.u32 %v732, 23
        %v734 = vor.u32 4788187, %v733
        %v735 = vand.u32 2147483647, %v734
        %v737 = vcvt.s32.f32 %v730
        %v738 = vmul.f32 %v737, %v735
        %v739 = vxor.u32 %v738, 2147483648
        %v740 = vsel %vm657, %v739, %v738
        %v741 = vsub.s32 4, %v717
        %v742 = vsel %vm657, %v741, %v717
        %v743 = vsel %vm656, %v639, %v740
        %v744 = vsel %vm656, 0, %v742
        %v745 = vcosq.f32.pop %v743
        %v746 = vsinq.f32.pop %v743
        %vm747 = vweird.f32 %v639
        %v748 = vand.u32 %v744, 3
        %vm749 = vcmp.lt.s32.totalorder %v748, 2
        %vm750 = vcmp.eq.s32.totalorder %v748, 0
        %v751 = vxor.u32 %v746, 2147483648
        %v752 = vsel %vm750, %v745, %v751
        %vm753 = vcmp.eq.s32.totalorder %v748, 2
        %v754 = vxor.u32 %v745, 2147483648
        %v755 = vsel %vm753, %v754, %v746
        %v756 = vsel %vm749, %v752, %v755
        %v757 = vsel %vm747, nan, %v756
        %v758 = vand.u32 2147483647, %v640
        %vm759 = vcmp.le.f32.partialorder %v758, 0.7853982
        %vm760 = vcmp.lt.s32.totalorder %v640, 0
        %v761 = vand.u32 %v640, 2139095040
        %v762 = vshrl.u32 %v761, 23
        %v763 = vsub.s32 %v762, 127
        %v764 = vand.u32 2147483647, %v640
        %v765 = vand.u32 %v764, 8388607
        %v766 = vor.u32 %v765, 8388608
        %v767 = vsub.s32 0, %v766
        %v768 = vadd.s32 %v763, 1
        %vm769 = vcmp.gt.s32.totalorder %v768, 0
        %v770 = vsel %vm769, %v768, 0
        %v771 = vshrl.u32 %v770, 5
        %v772 = vand.u32 %v770, 31
        %v773 = vsub.s32 32, %v772
        %v774 = vshrl.u32 683565275, %v773
        %v775 = vshll.u32 683565275, %v772
        %v776 = vshrl.u32 2475754826, %v773
        %v777 = vor.u32 %v775, %v776
        %v778 = vshll.u32 2475754826, %v772
        %v779 = vshrl.u32 2131351028, %v773
        %v780 = vor.u32 %v778, %v779
        %v781 = vshll.u32 2131351028, %v772
        %v782 = vshrl.u32 2102212464, %v773
        %v783 = vor.u32 %v781, %v782
        %v784 = vshll.u32 2102212464, %v772
        %v785 = vshrl.u32 920167782, %v773
        %v786 = vor.u32 %v784, %v785
        %v787 = vshll.u32 920167782, %v772
        %v788 = vshrl.u32 1326507024, %v773
        %v789 = vor.u32 %v787, %v788
        %vm790 = vcmp.lt.s32.totalorder %v771, 1
        %vm791 = vcmp.lt.s32.totalorder %v771, 2
        %vm792 = vcmp.lt.s32.totalorder %v771, 3
        %vm793 = vcmp.lt.s32.totalorder %v771, 4
        %v794 = vsel %vm790, %v774, %v777
        %v795 = vsel %vm793, %v783, 2102212464
        %v796 = vsel %vm792, %v780, %v795
        %v797 = vsel %vm791, %v794, %v796
        %v798 = vsel %vm790, %v777, %v780
        %v799 = vsel %vm793, %v786, 920167782
        %v800 = vsel %vm792, %v783, %v799
        %v801 = vsel %vm791, %v798, %v800
        %v802 = vsel %vm790, %v780, %v783
        %v803 = vsel %vm793, %v789, 1326507024
        %v804 = vsel %vm792, %v786, %v803
        %v805 = vsel %vm791, %v802, %v804
        %v806 = vshll.u32 %v766, 8
        %v807 = vmul.u32.u64.compose %v806, %v805
        %v808 = vextract.low.u32 %v807
        %v809 = vextract.high.u32 %v807
        %v810 = vmul.u32.u64.compose %v806, %v801
        %v811 = vextract.low.u32 %v810
        %v812 = vextract.high.u32 %v810
        %v813 = vmul.u32 %v806, %v797
        %v814 = vadd.s32 %v809, %v811
        %vm815 = vc.u32 %v809, %v811
        %v816 = vadd.s32 %v812, 1
        %v817 = vsel %vm815, %v816, %v812
        %v818 = vadd.s32 %v813, %v817
        %v819 = vadd.s32 %v818, 536870912
        %v820 = vshrl.u32 %v819, 30
        %v821 = vshll.u32 %v820, 30
        %v822 = vsub.s32 %v818, %v821
        %vm823 = vcmp.lt.s32.totalorder %v822, 0
        %v824 = vsub.s32 0, %v822
        %v825 = vsel %vm823, %v824, %v822
        %v826 = vclz %v825
        %v827 = vsub.s32 %v826, 2
        %vm828 = vcmp.gt.s32.totalorder 0, %v827
        %v829 = vsel %vm828, 0, %v827
        %v830 = vsub.s32 32, %v829
        %v831 = vshll.u32 %v822, %v829
        %v832 = vshrl.u32 %v814, %v830
        %v833 = vor.u32 %v831, %v832
        %v834 = vsub.s32 4294967266, %v829
        %v835 = vadd.s32 %v834, 127
        %v836 = vshll.u32 %v835, 23
        %v837 = vor.u32 4788187, %v836
        %v838 = vand.u32 2147483647, %v837
        %v840 = vcvt.s32.f32 %v833
        %v841 = vmul.f32 %v840, %v838
        %v842 = vxor.u32 %v841, 2147483648
        %v843 = vsel %vm760, %v842, %v841
        %v844 = vsub.s32 4, %v820
        %v845 = vsel %vm760, %v844, %v820
        %v846 = vsel %vm759, %v640, %v843
        %v847 = vsel %vm759, 0, %v845
        %v848 = vcosq.f32.pop %v846
        %v849 = vsinq.f32.pop %v846
        %vm850 = vweird.f32 %v640
        %v851 = vand.u32 %v847, 3
        %vm852 = vcmp.lt.s32.totalorder %v851, 2
        %vm853 = vcmp.eq.s32.totalorder %v851, 0
        %v854 = vxor.u32 %v849, 2147483648
        %v855 = vsel %vm853, %v848, %v854
        %vm856 = vcmp.eq.s32.totalorder %v851, 2
        %v857 = vxor.u32 %v848, 2147483648
        %v858 = vsel %vm856, %v857, %v849
        %v859 = vsel %vm852, %v855, %v858
        %v860 = vsel %vm850, nan, %v859
        %v861 = vand.u32 2147483647, %v641
        %vm862 = vcmp.le.f32.partialorder %v861, 0.7853982
        %vm863 = vcmp.lt.s32.totalorder %v641, 0
        %v864 = vand.u32 %v641, 2139095040
        %v865 = vshrl.u32 %v864, 23
        %v866 = vsub.s32 %v865, 127
        %v867 = vand.u32 2147483647, %v641
        %v868 = vand.u32 %v867, 8388607
        %v869 = vor.u32 %v868, 8388608
        %v870 = vsub.s32 0, %v869
        %v871 = vadd.s32 %v866, 1
        %vm872 = vcmp.gt.s32.totalorder %v871, 0
        %v873 = vsel %vm872, %v871, 0
        %v874 = vshrl.u32 %v873, 5
        %v875 = vand.u32 %v873, 31
        %v876 = vsub.s32 32, %v875
        %v877 = vshrl.u32 683565275, %v876
        %v878 = vshll.u32 683565275, %v875
        %v879 = vshrl.u32 2475754826, %v876
        %v880 = vor.u32 %v878, %v879
        %v881 = vshll.u32 2475754826, %v875
        %v882 = vshrl.u32 2131351028, %v876
        %v883 = vor.u32 %v881, %v882
        %v884 = vshll.u32 2131351028, %v875
        %v885 = vshrl.u32 2102212464, %v876
        %v886 = vor.u32 %v884, %v885
        %v887 = vshll.u32 2102212464, %v875
        %v888 = vshrl.u32 920167782, %v876
        %v889 = vor.u32 %v887, %v888
        %v890 = vshll.u32 920167782, %v875
        %v891 = vshrl.u32 1326507024, %v876
        %v892 = vor.u32 %v890, %v891
        %vm893 = vcmp.lt.s32.totalorder %v874, 1
        %vm894 = vcmp.lt.s32.totalorder %v874, 2
        %vm895 = vcmp.lt.s32.totalorder %v874, 3
        %vm896 = vcmp.lt.s32.totalorder %v874, 4
        %v897 = vsel %vm893, %v877, %v880
        %v898 = vsel %vm896, %v886, 2102212464
        %v899 = vsel %vm895, %v883, %v898
        %v900 = vsel %vm894, %v897, %v899
        %v901 = vsel %vm893, %v880, %v883
        %v902 = vsel %vm896, %v889, 920167782
        %v903 = vsel %vm895, %v886, %v902
        %v904 = vsel %vm894, %v901, %v903
        %v905 = vsel %vm893, %v883, %v886
        %v906 = vsel %vm896, %v892, 1326507024
        %v907 = vsel %vm895, %v889, %v906
        %v908 = vsel %vm894, %v905, %v907
        %v909 = vshll.u32 %v869, 8
        %v910 = vmul.u32.u64.compose %v909, %v908
        %v911 = vextract.low.u32 %v910
        %v912 = vextract.high.u32 %v910
        %v913 = vmul.u32.u64.compose %v909, %v904
        %v914 = vextract.low.u32 %v913
        %v915 = vextract.high.u32 %v913
        %v916 = vmul.u32 %v909, %v900
        %v917 = vadd.s32 %v912, %v914
        %vm918 = vc.u32 %v912, %v914
        %v919 = vadd.s32 %v915, 1
        %v920 = vsel %vm918, %v919, %v915
        %v921 = vadd.s32 %v916, %v920
        %v922 = vadd.s32 %v921, 536870912
        %v923 = vshrl.u32 %v922, 30
        %v924 = vshll.u32 %v923, 30
        %v925 = vsub.s32 %v921, %v924
        %vm926 = vcmp.lt.s32.totalorder %v925, 0
        %v927 = vsub.s32 0, %v925
        %v928 = vsel %vm926, %v927, %v925
        %v929 = vclz %v928
        %v930 = vsub.s32 %v929, 2
        %vm931 = vcmp.gt.s32.totalorder 0, %v930
        %v932 = vsel %vm931, 0, %v930
        %v933 = vsub.s32 32, %v932
        %v934 = vshll.u32 %v925, %v932
        %v935 = vshrl.u32 %v917, %v933
        %v936 = vor.u32 %v934, %v935
        %v937 = vsub.s32 4294967266, %v932
        %v938 = vadd.s32 %v937, 127
        %v939 = vshll.u32 %v938, 23
        %v940 = vor.u32 4788187, %v939
        %v941 = vand.u32 2147483647, %v940
        %v943 = vcvt.s32.f32 %v936
        %v944 = vmul.f32 %v943, %v941
        %v945 = vxor.u32 %v944, 2147483648
        %v946 = vsel %vm863, %v945, %v944
        %v947 = vsub.s32 4, %v923
        %v948 = vsel %vm863, %v947, %v923
        %v949 = vsel %vm862, %v641, %v946
        %v950 = vsel %vm862, 0, %v948
        %v951 = vcosq.f32.pop %v949
        %v952 = vsinq.f32.pop %v949
        %vm953 = vweird.f32 %v641
        %v954 = vand.u32 %v950, 3
        %vm955 = vcmp.lt.s32.totalorder %v954, 2
        %vm956 = vcmp.eq.s32.totalorder %v954, 0
        %v957 = vxor.u32 %v952, 2147483648
        %v958 = vsel %vm956, %v951, %v957
        %vm959 = vcmp.eq.s32.totalorder %v954, 2
        %v960 = vxor.u32 %v951, 2147483648
        %v961 = vsel %vm959, %v960, %v952
        %v962 = vsel %vm955, %v958, %v961
        %v963 = vsel %vm953, nan, %v962
        %v964 = vand.u32 2147483647, %v642
        %vm965 = vcmp.le.f32.partialorder %v964, 0.7853982
        %vm966 = vcmp.lt.s32.totalorder %v642, 0
        %v967 = vand.u32 %v642, 2139095040
        %v968 = vshrl.u32 %v967, 23
        %v969 = vsub.s32 %v968, 127
        %v970 = vand.u32 2147483647, %v642
        %v971 = vand.u32 %v970, 8388607
        %v972 = vor.u32 %v971, 8388608
        %v973 = vsub.s32 0, %v972
        %v974 = vadd.s32 %v969, 1
        %vm975 = vcmp.gt.s32.totalorder %v974, 0
        %v976 = vsel %vm975, %v974, 0
        %v977 = vshrl.u32 %v976, 5
        %v978 = vand.u32 %v976, 31
        %v979 = vsub.s32 32, %v978
        %v980 = vshrl.u32 683565275, %v979
        %v981 = vshll.u32 683565275, %v978
        %v982 = vshrl.u32 2475754826, %v979
        %v983 = vor.u32 %v981, %v982
        %v984 = vshll.u32 2475754826, %v978
        %v985 = vshrl.u32 2131351028, %v979
        %v986 = vor.u32 %v984, %v985
        %v987 = vshll.u32 2131351028, %v978
        %v988 = vshrl.u32 2102212464, %v979
        %v989 = vor.u32 %v987, %v988
        %v990 = vshll.u32 2102212464, %v978
        %v991 = vshrl.u32 920167782, %v979
        %v992 = vor.u32 %v990, %v991
        %v993 = vshll.u32 920167782, %v978
        %v994 = vshrl.u32 1326507024, %v979
        %v995 = vor.u32 %v993, %v994
        %vm996 = vcmp.lt.s32.totalorder %v977, 1
        %vm997 = vcmp.lt.s32.totalorder %v977, 2
        %vm998 = vcmp.lt.s32.totalorder %v977, 3
        %vm999 = vcmp.lt.s32.totalorder %v977, 4
        %v1000 = vsel %vm996, %v980, %v983
        %v1001 = vsel %vm999, %v989, 2102212464
        %v1002 = vsel %vm998, %v986, %v1001
        %v1003 = vsel %vm997, %v1000, %v1002
        %v1004 = vsel %vm996, %v983, %v986
        %v1005 = vsel %vm999, %v992, 920167782
        %v1006 = vsel %vm998, %v989, %v1005
        %v1007 = vsel %vm997, %v1004, %v1006
        %v1008 = vsel %vm996, %v986, %v989
        %v1009 = vsel %vm999, %v995, 1326507024
        %v1010 = vsel %vm998, %v992, %v1009
        %v1011 = vsel %vm997, %v1008, %v1010
        %v1012 = vshll.u32 %v972, 8
        %v1013 = vmul.u32.u64.compose %v1012, %v1011
        %v1014 = vextract.low.u32 %v1013
        %v1015 = vextract.high.u32 %v1013
        %v1016 = vmul.u32.u64.compose %v1012, %v1007
        %v1017 = vextract.low.u32 %v1016
        %v1018 = vextract.high.u32 %v1016
        %v1019 = vmul.u32 %v1012, %v1003
        %v1020 = vadd.s32 %v1015, %v1017
        %vm1021 = vc.u32 %v1015, %v1017
        %v1022 = vadd.s32 %v1018, 1
        %v1023 = vsel %vm1021, %v1022, %v1018
        %v1024 = vadd.s32 %v1019, %v1023
        %v1025 = vadd.s32 %v1024, 536870912
        %v1026 = vshrl.u32 %v1025, 30
        %v1027 = vshll.u32 %v1026, 30
        %v1028 = vsub.s32 %v1024, %v1027
        %vm1029 = vcmp.lt.s32.totalorder %v1028, 0
        %v1030 = vsub.s32 0, %v1028
        %v1031 = vsel %vm1029, %v1030, %v1028
        %v1032 = vclz %v1031
        %v1033 = vsub.s32 %v1032, 2
        %vm1034 = vcmp.gt.s32.totalorder 0, %v1033
        %v1035 = vsel %vm1034, 0, %v1033
        %v1036 = vsub.s32 32, %v1035
        %v1037 = vshll.u32 %v1028, %v1035
        %v1038 = vshrl.u32 %v1020, %v1036
        %v1039 = vor.u32 %v1037, %v1038
        %v1040 = vsub.s32 4294967266, %v1035
        %v1041 = vadd.s32 %v1040, 127
        %v1042 = vshll.u32 %v1041, 23
        %v1043 = vor.u32 4788187, %v1042
        %v1044 = vand.u32 2147483647, %v1043
        %v1046 = vcvt.s32.f32 %v1039
        %v1047 = vmul.f32 %v1046, %v1044
        %v1048 = vxor.u32 %v1047, 2147483648
        %v1049 = vsel %vm966, %v1048, %v1047
        %v1050 = vsub.s32 4, %v1026
        %v1051 = vsel %vm966, %v1050, %v1026
        %v1052 = vsel %vm965, %v642, %v1049
        %v1053 = vsel %vm965, 0, %v1051
        %v1054 = vcosq.f32.pop %v1052
        %v1055 = vsinq.f32.pop %v1052
        %vm1056 = vweird.f32 %v642
        %v1057 = vand.u32 %v1053, 3
        %vm1058 = vcmp.lt.s32.totalorder %v1057, 2
        %vm1059 = vcmp.eq.s32.totalorder %v1057, 0
        %v1060 = vxor.u32 %v1055, 2147483648
        %v1061 = vsel %vm1059, %v1054, %v1060
        %vm1062 = vcmp.eq.s32.totalorder %v1057, 2
        %v1063 = vxor.u32 %v1054, 2147483648
        %v1064 = vsel %vm1062, %v1063, %v1055
        %v1065 = vsel %vm1058, %v1061, %v1064
        %v1066 = vsel %vm1056, nan, %v1065
        %v1067 = vand.u32 2147483647, %v643
        %vm1068 = vcmp.le.f32.partialorder %v1067, 0.7853982
        %vm1069 = vcmp.lt.s32.totalorder %v643, 0
        %v1070 = vand.u32 %v643, 2139095040
        %v1071 = vshrl.u32 %v1070, 23
        %v1072 = vsub.s32 %v1071, 127
        %v1073 = vand.u32 2147483647, %v643
        %v1074 = vand.u32 %v1073, 8388607
        %v1075 = vor.u32 %v1074, 8388608
        %v1076 = vsub.s32 0, %v1075
        %v1077 = vadd.s32 %v1072, 1
        %vm1078 = vcmp.gt.s32.totalorder %v1077, 0
        %v1079 = vsel %vm1078, %v1077, 0
        %v1080 = vshrl.u32 %v1079, 5
        %v1081 = vand.u32 %v1079, 31
        %v1082 = vsub.s32 32, %v1081
        %v1083 = vshrl.u32 683565275, %v1082
        %v1084 = vshll.u32 683565275, %v1081
        %v1085 = vshrl.u32 2475754826, %v1082
        %v1086 = vor.u32 %v1084, %v1085
        %v1087 = vshll.u32 2475754826, %v1081
        %v1088 = vshrl.u32 2131351028, %v1082
        %v1089 = vor.u32 %v1087, %v1088
        %v1090 = vshll.u32 2131351028, %v1081
        %v1091 = vshrl.u32 2102212464, %v1082
        %v1092 = vor.u32 %v1090, %v1091
        %v1093 = vshll.u32 2102212464, %v1081
        %v1094 = vshrl.u32 920167782, %v1082
        %v1095 = vor.u32 %v1093, %v1094
        %v1096 = vshll.u32 920167782, %v1081
        %v1097 = vshrl.u32 1326507024, %v1082
        %v1098 = vor.u32 %v1096, %v1097
        %vm1099 = vcmp.lt.s32.totalorder %v1080, 1
        %vm1100 = vcmp.lt.s32.totalorder %v1080, 2
        %vm1101 = vcmp.lt.s32.totalorder %v1080, 3
        %vm1102 = vcmp.lt.s32.totalorder %v1080, 4
        %v1103 = vsel %vm1099, %v1083, %v1086
        %v1104 = vsel %vm1102, %v1092, 2102212464
        %v1105 = vsel %vm1101, %v1089, %v1104
        %v1106 = vsel %vm1100, %v1103, %v1105
        %v1107 = vsel %vm1099, %v1086, %v1089
        %v1108 = vsel %vm1102, %v1095, 920167782
        %v1109 = vsel %vm1101, %v1092, %v1108
        %v1110 = vsel %vm1100, %v1107, %v1109
        %v1111 = vsel %vm1099, %v1089, %v1092
        %v1112 = vsel %vm1102, %v1098, 1326507024
        %v1113 = vsel %vm1101, %v1095, %v1112
        %v1114 = vsel %vm1100, %v1111, %v1113
        %v1115 = vshll.u32 %v1075, 8
        %v1116 = vmul.u32.u64.compose %v1115, %v1114
        %v1117 = vextract.low.u32 %v1116
        %v1118 = vextract.high.u32 %v1116
        %v1119 = vmul.u32.u64.compose %v1115, %v1110
        %v1120 = vextract.low.u32 %v1119
        %v1121 = vextract.high.u32 %v1119
        %v1122 = vmul.u32 %v1115, %v1106
        %v1123 = vadd.s32 %v1118, %v1120
        %vm1124 = vc.u32 %v1118, %v1120
        %v1125 = vadd.s32 %v1121, 1
        %v1126 = vsel %vm1124, %v1125, %v1121
        %v1127 = vadd.s32 %v1122, %v1126
        %v1128 = vadd.s32 %v1127, 536870912
        %v1129 = vshrl.u32 %v1128, 30
        %v1130 = vshll.u32 %v1129, 30
        %v1131 = vsub.s32 %v1127, %v1130
        %vm1132 = vcmp.lt.s32.totalorder %v1131, 0
        %v1133 = vsub.s32 0, %v1131
        %v1134 = vsel %vm1132, %v1133, %v1131
        %v1135 = vclz %v1134
        %v1136 = vsub.s32 %v1135, 2
        %vm1137 = vcmp.gt.s32.totalorder 0, %v1136
        %v1138 = vsel %vm1137, 0, %v1136
        %v1139 = vsub.s32 32, %v1138
        %v1140 = vshll.u32 %v1131, %v1138
        %v1141 = vshrl.u32 %v1123, %v1139
        %v1142 = vor.u32 %v1140, %v1141
        %v1143 = vsub.s32 4294967266, %v1138
        %v1144 = vadd.s32 %v1143, 127
        %v1145 = vshll.u32 %v1144, 23
        %v1146 = vor.u32 4788187, %v1145
        %v1147 = vand.u32 2147483647, %v1146
        %v1149 = vcvt.s32.f32 %v1142
        %v1150 = vmul.f32 %v1149, %v1147
        %v1151 = vxor.u32 %v1150, 2147483648
        %v1152 = vsel %vm1069, %v1151, %v1150
        %v1153 = vsub.s32 4, %v1129
        %v1154 = vsel %vm1069, %v1153, %v1129
        %v1155 = vsel %vm1068, %v643, %v1152
        %v1156 = vsel %vm1068, 0, %v1154
        %v1157 = vcosq.f32.pop %v1155
        %v1158 = vsinq.f32.pop %v1155
        %vm1159 = vweird.f32 %v643
        %v1160 = vand.u32 %v1156, 3
        %vm1161 = vcmp.lt.s32.totalorder %v1160, 2
        %vm1162 = vcmp.eq.s32.totalorder %v1160, 0
        %v1163 = vxor.u32 %v1158, 2147483648
        %v1164 = vsel %vm1162, %v1157, %v1163
        %vm1165 = vcmp.eq.s32.totalorder %v1160, 2
        %v1166 = vxor.u32 %v1157, 2147483648
        %v1167 = vsel %vm1165, %v1166, %v1158
        %v1168 = vsel %vm1161, %v1164, %v1167
        %v1169 = vsel %vm1159, nan, %v1168
        %v1170 = vand.u32 2147483647, %v644
        %vm1171 = vcmp.le.f32.partialorder %v1170, 0.7853982
        %vm1172 = vcmp.lt.s32.totalorder %v644, 0
        %v1173 = vand.u32 %v644, 2139095040
        %v1174 = vshrl.u32 %v1173, 23
        %v1175 = vsub.s32 %v1174, 127
        %v1176 = vand.u32 2147483647, %v644
        %v1177 = vand.u32 %v1176, 8388607
        %v1178 = vor.u32 %v1177, 8388608
        %v1179 = vsub.s32 0, %v1178
        %v1180 = vadd.s32 %v1175, 1
        %vm1181 = vcmp.gt.s32.totalorder %v1180, 0
        %v1182 = vsel %vm1181, %v1180, 0
        %v1183 = vshrl.u32 %v1182, 5
        %v1184 = vand.u32 %v1182, 31
        %v1185 = vsub.s32 32, %v1184
        %v1186 = vshrl.u32 683565275, %v1185
        %v1187 = vshll.u32 683565275, %v1184
        %v1188 = vshrl.u32 2475754826, %v1185
        %v1189 = vor.u32 %v1187, %v1188
        %v1190 = vshll.u32 2475754826, %v1184
        %v1191 = vshrl.u32 2131351028, %v1185
        %v1192 = vor.u32 %v1190, %v1191
        %v1193 = vshll.u32 2131351028, %v1184
        %v1194 = vshrl.u32 2102212464, %v1185
        %v1195 = vor.u32 %v1193, %v1194
        %v1196 = vshll.u32 2102212464, %v1184
        %v1197 = vshrl.u32 920167782, %v1185
        %v1198 = vor.u32 %v1196, %v1197
        %v1199 = vshll.u32 920167782, %v1184
        %v1200 = vshrl.u32 1326507024, %v1185
        %v1201 = vor.u32 %v1199, %v1200
        %vm1202 = vcmp.lt.s32.totalorder %v1183, 1
        %vm1203 = vcmp.lt.s32.totalorder %v1183, 2
        %vm1204 = vcmp.lt.s32.totalorder %v1183, 3
        %vm1205 = vcmp.lt.s32.totalorder %v1183, 4
        %v1206 = vsel %vm1202, %v1186, %v1189
        %v1207 = vsel %vm1205, %v1195, 2102212464
        %v1208 = vsel %vm1204, %v1192, %v1207
        %v1209 = vsel %vm1203, %v1206, %v1208
        %v1210 = vsel %vm1202, %v1189, %v1192
        %v1211 = vsel %vm1205, %v1198, 920167782
        %v1212 = vsel %vm1204, %v1195, %v1211
        %v1213 = vsel %vm1203, %v1210, %v1212
        %v1214 = vsel %vm1202, %v1192, %v1195
        %v1215 = vsel %vm1205, %v1201, 1326507024
        %v1216 = vsel %vm1204, %v1198, %v1215
        %v1217 = vsel %vm1203, %v1214, %v1216
        %v1218 = vshll.u32 %v1178, 8
        %v1219 = vmul.u32.u64.compose %v1218, %v1217
        %v1220 = vextract.low.u32 %v1219
        %v1221 = vextract.high.u32 %v1219
        %v1222 = vmul.u32.u64.compose %v1218, %v1213
        %v1223 = vextract.low.u32 %v1222
        %v1224 = vextract.high.u32 %v1222
        %v1225 = vmul.u32 %v1218, %v1209
        %v1226 = vadd.s32 %v1221, %v1223
        %vm1227 = vc.u32 %v1221, %v1223
        %v1228 = vadd.s32 %v1224, 1
        %v1229 = vsel %vm1227, %v1228, %v1224
        %v1230 = vadd.s32 %v1225, %v1229
        %v1231 = vadd.s32 %v1230, 536870912
        %v1232 = vshrl.u32 %v1231, 30
        %v1233 = vshll.u32 %v1232, 30
        %v1234 = vsub.s32 %v1230, %v1233
        %vm1235 = vcmp.lt.s32.totalorder %v1234, 0
        %v1236 = vsub.s32 0, %v1234
        %v1237 = vsel %vm1235, %v1236, %v1234
        %v1238 = vclz %v1237
        %v1239 = vsub.s32 %v1238, 2
        %vm1240 = vcmp.gt.s32.totalorder 0, %v1239
        %v1241 = vsel %vm1240, 0, %v1239
        %v1242 = vsub.s32 32, %v1241
        %v1243 = vshll.u32 %v1234, %v1241
        %v1244 = vshrl.u32 %v1226, %v1242
        %v1245 = vor.u32 %v1243, %v1244
        %v1246 = vsub.s32 4294967266, %v1241
        %v1247 = vadd.s32 %v1246, 127
        %v1248 = vshll.u32 %v1247, 23
        %v1249 = vor.u32 4788187, %v1248
        %v1250 = vand.u32 2147483647, %v1249
        %v1252 = vcvt.s32.f32 %v1245
        %v1253 = vmul.f32 %v1252, %v1250
        %v1254 = vxor.u32 %v1253, 2147483648
        %v1255 = vsel %vm1172, %v1254, %v1253
        %v1256 = vsub.s32 4, %v1232
        %v1257 = vsel %vm1172, %v1256, %v1232
        %v1258 = vsel %vm1171, %v644, %v1255
        %v1259 = vsel %vm1171, 0, %v1257
        %v1260 = vcosq.f32.pop %v1258
        %v1261 = vsinq.f32.pop %v1258
        %vm1262 = vweird.f32 %v644
        %v1263 = vand.u32 %v1259, 3
        %vm1264 = vcmp.lt.s32.totalorder %v1263, 2
        %vm1265 = vcmp.eq.s32.totalorder %v1263, 0
        %v1266 = vxor.u32 %v1261, 2147483648
        %v1267 = vsel %vm1265, %v1260, %v1266
        %vm1268 = vcmp.eq.s32.totalorder %v1263, 2
        %v1269 = vxor.u32 %v1260, 2147483648
        %v1270 = vsel %vm1268, %v1269, %v1261
        %v1271 = vsel %vm1264, %v1267, %v1270
        %v1272 = vsel %vm1262, nan, %v1271
        %v1273 = vand.u32 2147483647, %v645
        %vm1274 = vcmp.le.f32.partialorder %v1273, 0.7853982
        %vm1275 = vcmp.lt.s32.totalorder %v645, 0
        %v1276 = vand.u32 %v645, 2139095040
        %v1277 = vshrl.u32 %v1276, 23
        %v1278 = vsub.s32 %v1277, 127
        %v1279 = vand.u32 2147483647, %v645
        %v1280 = vand.u32 %v1279, 8388607
        %v1281 = vor.u32 %v1280, 8388608
        %v1282 = vsub.s32 0, %v1281
        %v1283 = vadd.s32 %v1278, 1
        %vm1284 = vcmp.gt.s32.totalorder %v1283, 0
        %v1285 = vsel %vm1284, %v1283, 0
        %v1286 = vshrl.u32 %v1285, 5
        %v1287 = vand.u32 %v1285, 31
        %v1288 = vsub.s32 32, %v1287
        %v1289 = vshrl.u32 683565275, %v1288
        %v1290 = vshll.u32 683565275, %v1287
        %v1291 = vshrl.u32 2475754826, %v1288
        %v1292 = vor.u32 %v1290, %v1291
        %v1293 = vshll.u32 2475754826, %v1287
        %v1294 = vshrl.u32 2131351028, %v1288
        %v1295 = vor.u32 %v1293, %v1294
        %v1296 = vshll.u32 2131351028, %v1287
        %v1297 = vshrl.u32 2102212464, %v1288
        %v1298 = vor.u32 %v1296, %v1297
        %v1299 = vshll.u32 2102212464, %v1287
        %v1300 = vshrl.u32 920167782, %v1288
        %v1301 = vor.u32 %v1299, %v1300
        %v1302 = vshll.u32 920167782, %v1287
        %v1303 = vshrl.u32 1326507024, %v1288
        %v1304 = vor.u32 %v1302, %v1303
        %vm1305 = vcmp.lt.s32.totalorder %v1286, 1
        %vm1306 = vcmp.lt.s32.totalorder %v1286, 2
        %vm1307 = vcmp.lt.s32.totalorder %v1286, 3
        %vm1308 = vcmp.lt.s32.totalorder %v1286, 4
        %v1309 = vsel %vm1305, %v1289, %v1292
        %v1310 = vsel %vm1308, %v1298, 2102212464
        %v1311 = vsel %vm1307, %v1295, %v1310
        %v1312 = vsel %vm1306, %v1309, %v1311
        %v1313 = vsel %vm1305, %v1292, %v1295
        %v1314 = vsel %vm1308, %v1301, 920167782
        %v1315 = vsel %vm1307, %v1298, %v1314
        %v1316 = vsel %vm1306, %v1313, %v1315
        %v1317 = vsel %vm1305, %v1295, %v1298
        %v1318 = vsel %vm1308, %v1304, 1326507024
        %v1319 = vsel %vm1307, %v1301, %v1318
        %v1320 = vsel %vm1306, %v1317, %v1319
        %v1321 = vshll.u32 %v1281, 8
        %v1322 = vmul.u32.u64.compose %v1321, %v1320
        %v1323 = vextract.low.u32 %v1322
        %v1324 = vextract.high.u32 %v1322
        %v1325 = vmul.u32.u64.compose %v1321, %v1316
        %v1326 = vextract.low.u32 %v1325
        %v1327 = vextract.high.u32 %v1325
        %v1328 = vmul.u32 %v1321, %v1312
        %v1329 = vadd.s32 %v1324, %v1326
        %vm1330 = vc.u32 %v1324, %v1326
        %v1331 = vadd.s32 %v1327, 1
        %v1332 = vsel %vm1330, %v1331, %v1327
        %v1333 = vadd.s32 %v1328, %v1332
        %v1334 = vadd.s32 %v1333, 536870912
        %v1335 = vshrl.u32 %v1334, 30
        %v1336 = vshll.u32 %v1335, 30
        %v1337 = vsub.s32 %v1333, %v1336
        %vm1338 = vcmp.lt.s32.totalorder %v1337, 0
        %v1339 = vsub.s32 0, %v1337
        %v1340 = vsel %vm1338, %v1339, %v1337
        %v1341 = vclz %v1340
        %v1342 = vsub.s32 %v1341, 2
        %vm1343 = vcmp.gt.s32.totalorder 0, %v1342
        %v1344 = vsel %vm1343, 0, %v1342
        %v1345 = vsub.s32 32, %v1344
        %v1346 = vshll.u32 %v1337, %v1344
        %v1347 = vshrl.u32 %v1329, %v1345
        %v1348 = vor.u32 %v1346, %v1347
        %v1349 = vsub.s32 4294967266, %v1344
        %v1350 = vadd.s32 %v1349, 127
        %v1351 = vshll.u32 %v1350, 23
        %v1352 = vor.u32 4788187, %v1351
        %v1353 = vand.u32 2147483647, %v1352
        %v1355 = vcvt.s32.f32 %v1348
        %v1356 = vmul.f32 %v1355, %v1353
        %v1357 = vxor.u32 %v1356, 2147483648
        %v1358 = vsel %vm1275, %v1357, %v1356
        %v1359 = vsub.s32 4, %v1335
        %v1360 = vsel %vm1275, %v1359, %v1335
        %v1361 = vsel %vm1274, %v645, %v1358
        %v1362 = vsel %vm1274, 0, %v1360
        %v1363 = vcosq.f32.pop %v1361
        %v1364 = vsinq.f32.pop %v1361
        %vm1365 = vweird.f32 %v645
        %v1366 = vand.u32 %v1362, 3
        %vm1367 = vcmp.lt.s32.totalorder %v1366, 2
        %vm1368 = vcmp.eq.s32.totalorder %v1366, 0
        %v1369 = vxor.u32 %v1364, 2147483648
        %v1370 = vsel %vm1368, %v1363, %v1369
        %vm1371 = vcmp.eq.s32.totalorder %v1366, 2
        %v1372 = vxor.u32 %v1363, 2147483648
        %v1373 = vsel %vm1371, %v1372, %v1364
        %v1374 = vsel %vm1367, %v1370, %v1373
        %v1375 = vsel %vm1365, nan, %v1374
        %v1376 = vand.u32 2147483647, %v646
        %vm1377 = vcmp.le.f32.partialorder %v1376, 0.7853982
        %vm1378 = vcmp.lt.s32.totalorder %v646, 0
        %v1379 = vand.u32 %v646, 2139095040
        %v1380 = vshrl.u32 %v1379, 23
        %v1381 = vsub.s32 %v1380, 127
        %v1382 = vand.u32 2147483647, %v646
        %v1383 = vand.u32 %v1382, 8388607
        %v1384 = vor.u32 %v1383, 8388608
        %v1385 = vsub.s32 0, %v1384
        %v1386 = vadd.s32 %v1381, 1
        %vm1387 = vcmp.gt.s32.totalorder %v1386, 0
        %v1388 = vsel %vm1387, %v1386, 0
        %v1389 = vshrl.u32 %v1388, 5
        %v1390 = vand.u32 %v1388, 31
        %v1391 = vsub.s32 32, %v1390
        %v1392 = vshrl.u32 683565275, %v1391
        %v1393 = vshll.u32 683565275, %v1390
        %v1394 = vshrl.u32 2475754826, %v1391
        %v1395 = vor.u32 %v1393, %v1394
        %v1396 = vshll.u32 2475754826, %v1390
        %v1397 = vshrl.u32 2131351028, %v1391
        %v1398 = vor.u32 %v1396, %v1397
        %v1399 = vshll.u32 2131351028, %v1390
        %v1400 = vshrl.u32 2102212464, %v1391
        %v1401 = vor.u32 %v1399, %v1400
        %v1402 = vshll.u32 2102212464, %v1390
        %v1403 = vshrl.u32 920167782, %v1391
        %v1404 = vor.u32 %v1402, %v1403
        %v1405 = vshll.u32 920167782, %v1390
        %v1406 = vshrl.u32 1326507024, %v1391
        %v1407 = vor.u32 %v1405, %v1406
        %vm1408 = vcmp.lt.s32.totalorder %v1389, 1
        %vm1409 = vcmp.lt.s32.totalorder %v1389, 2
        %vm1410 = vcmp.lt.s32.totalorder %v1389, 3
        %vm1411 = vcmp.lt.s32.totalorder %v1389, 4
        %v1412 = vsel %vm1408, %v1392, %v1395
        %v1413 = vsel %vm1411, %v1401, 2102212464
        %v1414 = vsel %vm1410, %v1398, %v1413
        %v1415 = vsel %vm1409, %v1412, %v1414
        %v1416 = vsel %vm1408, %v1395, %v1398
        %v1417 = vsel %vm1411, %v1404, 920167782
        %v1418 = vsel %vm1410, %v1401, %v1417
        %v1419 = vsel %vm1409, %v1416, %v1418
        %v1420 = vsel %vm1408, %v1398, %v1401
        %v1421 = vsel %vm1411, %v1407, 1326507024
        %v1422 = vsel %vm1410, %v1404, %v1421
        %v1423 = vsel %vm1409, %v1420, %v1422
        %v1424 = vshll.u32 %v1384, 8
        %v1425 = vmul.u32.u64.compose %v1424, %v1423
        %v1426 = vextract.low.u32 %v1425
        %v1427 = vextract.high.u32 %v1425
        %v1428 = vmul.u32.u64.compose %v1424, %v1419
        %v1429 = vextract.low.u32 %v1428
        %v1430 = vextract.high.u32 %v1428
        %v1431 = vmul.u32 %v1424, %v1415
        %v1432 = vadd.s32 %v1427, %v1429
        %vm1433 = vc.u32 %v1427, %v1429
        %v1434 = vadd.s32 %v1430, 1
        %v1435 = vsel %vm1433, %v1434, %v1430
        %v1436 = vadd.s32 %v1431, %v1435
        %v1437 = vadd.s32 %v1436, 536870912
        %v1438 = vshrl.u32 %v1437, 30
        %v1439 = vshll.u32 %v1438, 30
        %v1440 = vsub.s32 %v1436, %v1439
        %vm1441 = vcmp.lt.s32.totalorder %v1440, 0
        %v1442 = vsub.s32 0, %v1440
        %v1443 = vsel %vm1441, %v1442, %v1440
        %v1444 = vclz %v1443
        %v1445 = vsub.s32 %v1444, 2
        %vm1446 = vcmp.gt.s32.totalorder 0, %v1445
        %v1447 = vsel %vm1446, 0, %v1445
        %v1448 = vsub.s32 32, %v1447
        %v1449 = vshll.u32 %v1440, %v1447
        %v1450 = vshrl.u32 %v1432, %v1448
        %v1451 = vor.u32 %v1449, %v1450
        %v1452 = vsub.s32 4294967266, %v1447
        %v1453 = vadd.s32 %v1452, 127
        %v1454 = vshll.u32 %v1453, 23
        %v1455 = vor.u32 4788187, %v1454
        %v1456 = vand.u32 2147483647, %v1455
        %v1458 = vcvt.s32.f32 %v1451
        %v1459 = vmul.f32 %v1458, %v1456
        %v1460 = vxor.u32 %v1459, 2147483648
        %v1461 = vsel %vm1378, %v1460, %v1459
        %v1462 = vsub.s32 4, %v1438
        %v1463 = vsel %vm1378, %v1462, %v1438
        %v1464 = vsel %vm1377, %v646, %v1461
        %v1465 = vsel %vm1377, 0, %v1463
        %v1466 = vcosq.f32.pop %v1464
        %v1467 = vsinq.f32.pop %v1464
        %vm1468 = vweird.f32 %v646
        %v1469 = vand.u32 %v1465, 3
        %vm1470 = vcmp.lt.s32.totalorder %v1469, 2
        %vm1471 = vcmp.eq.s32.totalorder %v1469, 0
        %v1472 = vxor.u32 %v1467, 2147483648
        %v1473 = vsel %vm1471, %v1466, %v1472
        %vm1474 = vcmp.eq.s32.totalorder %v1469, 2
        %v1475 = vxor.u32 %v1466, 2147483648
        %v1476 = vsel %vm1474, %v1475, %v1467
        %v1477 = vsel %vm1470, %v1473, %v1476
        %v1478 = vsel %vm1468, nan, %v1477
        %v1479 = vand.u32 2147483647, %v647
        %vm1480 = vcmp.le.f32.partialorder %v1479, 0.7853982
        %vm1481 = vcmp.lt.s32.totalorder %v647, 0
        %v1482 = vand.u32 %v647, 2139095040
        %v1483 = vshrl.u32 %v1482, 23
        %v1484 = vsub.s32 %v1483, 127
        %v1485 = vand.u32 2147483647, %v647
        %v1486 = vand.u32 %v1485, 8388607
        %v1487 = vor.u32 %v1486, 8388608
        %v1488 = vsub.s32 0, %v1487
        %v1489 = vadd.s32 %v1484, 1
        %vm1490 = vcmp.gt.s32.totalorder %v1489, 0
        %v1491 = vsel %vm1490, %v1489, 0
        %v1492 = vshrl.u32 %v1491, 5
        %v1493 = vand.u32 %v1491, 31
        %v1494 = vsub.s32 32, %v1493
        %v1495 = vshrl.u32 683565275, %v1494
        %v1496 = vshll.u32 683565275, %v1493
        %v1497 = vshrl.u32 2475754826, %v1494
        %v1498 = vor.u32 %v1496, %v1497
        %v1499 = vshll.u32 2475754826, %v1493
        %v1500 = vshrl.u32 2131351028, %v1494
        %v1501 = vor.u32 %v1499, %v1500
        %v1502 = vshll.u32 2131351028, %v1493
        %v1503 = vshrl.u32 2102212464, %v1494
        %v1504 = vor.u32 %v1502, %v1503
        %v1505 = vshll.u32 2102212464, %v1493
        %v1506 = vshrl.u32 920167782, %v1494
        %v1507 = vor.u32 %v1505, %v1506
        %v1508 = vshll.u32 920167782, %v1493
        %v1509 = vshrl.u32 1326507024, %v1494
        %v1510 = vor.u32 %v1508, %v1509
        %vm1511 = vcmp.lt.s32.totalorder %v1492, 1
        %vm1512 = vcmp.lt.s32.totalorder %v1492, 2
        %vm1513 = vcmp.lt.s32.totalorder %v1492, 3
        %vm1514 = vcmp.lt.s32.totalorder %v1492, 4
        %v1515 = vsel %vm1511, %v1495, %v1498
        %v1516 = vsel %vm1514, %v1504, 2102212464
        %v1517 = vsel %vm1513, %v1501, %v1516
        %v1518 = vsel %vm1512, %v1515, %v1517
        %v1519 = vsel %vm1511, %v1498, %v1501
        %v1520 = vsel %vm1514, %v1507, 920167782
        %v1521 = vsel %vm1513, %v1504, %v1520
        %v1522 = vsel %vm1512, %v1519, %v1521
        %v1523 = vsel %vm1511, %v1501, %v1504
        %v1524 = vsel %vm1514, %v1510, 1326507024
        %v1525 = vsel %vm1513, %v1507, %v1524
        %v1526 = vsel %vm1512, %v1523, %v1525
        %v1527 = vshll.u32 %v1487, 8
        %v1528 = vmul.u32.u64.compose %v1527, %v1526
        %v1529 = vextract.low.u32 %v1528
        %v1530 = vextract.high.u32 %v1528
        %v1531 = vmul.u32.u64.compose %v1527, %v1522
        %v1532 = vextract.low.u32 %v1531
        %v1533 = vextract.high.u32 %v1531
        %v1534 = vmul.u32 %v1527, %v1518
        %v1535 = vadd.s32 %v1530, %v1532
        %vm1536 = vc.u32 %v1530, %v1532
        %v1537 = vadd.s32 %v1533, 1
        %v1538 = vsel %vm1536, %v1537, %v1533
        %v1539 = vadd.s32 %v1534, %v1538
        %v1540 = vadd.s32 %v1539, 536870912
        %v1541 = vshrl.u32 %v1540, 30
        %v1542 = vshll.u32 %v1541, 30
        %v1543 = vsub.s32 %v1539, %v1542
        %vm1544 = vcmp.lt.s32.totalorder %v1543, 0
        %v1545 = vsub.s32 0, %v1543
        %v1546 = vsel %vm1544, %v1545, %v1543
        %v1547 = vclz %v1546
        %v1548 = vsub.s32 %v1547, 2
        %vm1549 = vcmp.gt.s32.totalorder 0, %v1548
        %v1550 = vsel %vm1549, 0, %v1548
        %v1551 = vsub.s32 32, %v1550
        %v1552 = vshll.u32 %v1543, %v1550
        %v1553 = vshrl.u32 %v1535, %v1551
        %v1554 = vor.u32 %v1552, %v1553
        %v1555 = vsub.s32 4294967266, %v1550
        %v1556 = vadd.s32 %v1555, 127
        %v1557 = vshll.u32 %v1556, 23
        %v1558 = vor.u32 4788187, %v1557
        %v1559 = vand.u32 2147483647, %v1558
        %v1561 = vcvt.s32.f32 %v1554
        %v1562 = vmul.f32 %v1561, %v1559
        %v1563 = vxor.u32 %v1562, 2147483648
        %v1564 = vsel %vm1481, %v1563, %v1562
        %v1565 = vsub.s32 4, %v1541
        %v1566 = vsel %vm1481, %v1565, %v1541
        %v1567 = vsel %vm1480, %v647, %v1564
        %v1568 = vsel %vm1480, 0, %v1566
        %v1569 = vcosq.f32.pop %v1567
        %v1570 = vsinq.f32.pop %v1567
        %vm1571 = vweird.f32 %v647
        %v1572 = vand.u32 %v1568, 3
        %vm1573 = vcmp.lt.s32.totalorder %v1572, 2
        %vm1574 = vcmp.eq.s32.totalorder %v1572, 0
        %v1575 = vxor.u32 %v1570, 2147483648
        %v1576 = vsel %vm1574, %v1569, %v1575
        %vm1577 = vcmp.eq.s32.totalorder %v1572, 2
        %v1578 = vxor.u32 %v1569, 2147483648
        %v1579 = vsel %vm1577, %v1578, %v1570
        %v1580 = vsel %vm1573, %v1576, %v1579
        %v1581 = vsel %vm1571, nan, %v1580
        %v1582 = vand.u32 2147483647, %v648
        %vm1583 = vcmp.le.f32.partialorder %v1582, 0.7853982
        %vm1584 = vcmp.lt.s32.totalorder %v648, 0
        %v1585 = vand.u32 %v648, 2139095040
        %v1586 = vshrl.u32 %v1585, 23
        %v1587 = vsub.s32 %v1586, 127
        %v1588 = vand.u32 2147483647, %v648
        %v1589 = vand.u32 %v1588, 8388607
        %v1590 = vor.u32 %v1589, 8388608
        %v1591 = vsub.s32 0, %v1590
        %v1592 = vadd.s32 %v1587, 1
        %vm1593 = vcmp.gt.s32.totalorder %v1592, 0
        %v1594 = vsel %vm1593, %v1592, 0
        %v1595 = vshrl.u32 %v1594, 5
        %v1596 = vand.u32 %v1594, 31
        %v1597 = vsub.s32 32, %v1596
        %v1598 = vshrl.u32 683565275, %v1597
        %v1599 = vshll.u32 683565275, %v1596
        %v1600 = vshrl.u32 2475754826, %v1597
        %v1601 = vor.u32 %v1599, %v1600
        %v1602 = vshll.u32 2475754826, %v1596
        %v1603 = vshrl.u32 2131351028, %v1597
        %v1604 = vor.u32 %v1602, %v1603
        %v1605 = vshll.u32 2131351028, %v1596
        %v1606 = vshrl.u32 2102212464, %v1597
        %v1607 = vor.u32 %v1605, %v1606
        %v1608 = vshll.u32 2102212464, %v1596
        %v1609 = vshrl.u32 920167782, %v1597
        %v1610 = vor.u32 %v1608, %v1609
        %v1611 = vshll.u32 920167782, %v1596
        %v1612 = vshrl.u32 1326507024, %v1597
        %v1613 = vor.u32 %v1611, %v1612
        %vm1614 = vcmp.lt.s32.totalorder %v1595, 1
        %vm1615 = vcmp.lt.s32.totalorder %v1595, 2
        %vm1616 = vcmp.lt.s32.totalorder %v1595, 3
        %vm1617 = vcmp.lt.s32.totalorder %v1595, 4
        %v1618 = vsel %vm1614, %v1598, %v1601
        %v1619 = vsel %vm1617, %v1607, 2102212464
        %v1620 = vsel %vm1616, %v1604, %v1619
        %v1621 = vsel %vm1615, %v1618, %v1620
        %v1622 = vsel %vm1614, %v1601, %v1604
        %v1623 = vsel %vm1617, %v1610, 920167782
        %v1624 = vsel %vm1616, %v1607, %v1623
        %v1625 = vsel %vm1615, %v1622, %v1624
        %v1626 = vsel %vm1614, %v1604, %v1607
        %v1627 = vsel %vm1617, %v1613, 1326507024
        %v1628 = vsel %vm1616, %v1610, %v1627
        %v1629 = vsel %vm1615, %v1626, %v1628
        %v1630 = vshll.u32 %v1590, 8
        %v1631 = vmul.u32.u64.compose %v1630, %v1629
        %v1632 = vextract.low.u32 %v1631
        %v1633 = vextract.high.u32 %v1631
        %v1634 = vmul.u32.u64.compose %v1630, %v1625
        %v1635 = vextract.low.u32 %v1634
        %v1636 = vextract.high.u32 %v1634
        %v1637 = vmul.u32 %v1630, %v1621
        %v1638 = vadd.s32 %v1633, %v1635
        %vm1639 = vc.u32 %v1633, %v1635
        %v1640 = vadd.s32 %v1636, 1
        %v1641 = vsel %vm1639, %v1640, %v1636
        %v1642 = vadd.s32 %v1637, %v1641
        %v1643 = vadd.s32 %v1642, 536870912
        %v1644 = vshrl.u32 %v1643, 30
        %v1645 = vshll.u32 %v1644, 30
        %v1646 = vsub.s32 %v1642, %v1645
        %vm1647 = vcmp.lt.s32.totalorder %v1646, 0
        %v1648 = vsub.s32 0, %v1646
        %v1649 = vsel %vm1647, %v1648, %v1646
        %v1650 = vclz %v1649
        %v1651 = vsub.s32 %v1650, 2
        %vm1652 = vcmp.gt.s32.totalorder 0, %v1651
        %v1653 = vsel %vm1652, 0, %v1651
        %v1654 = vsub.s32 32, %v1653
        %v1655 = vshll.u32 %v1646, %v1653
        %v1656 = vshrl.u32 %v1638, %v1654
        %v1657 = vor.u32 %v1655, %v1656
        %v1658 = vsub.s32 4294967266, %v1653
        %v1659 = vadd.s32 %v1658, 127
        %v1660 = vshll.u32 %v1659, 23
        %v1661 = vor.u32 4788187, %v1660
        %v1662 = vand.u32 2147483647, %v1661
        %v1664 = vcvt.s32.f32 %v1657
        %v1665 = vmul.f32 %v1664, %v1662
        %v1666 = vxor.u32 %v1665, 2147483648
        %v1667 = vsel %vm1584, %v1666, %v1665
        %v1668 = vsub.s32 4, %v1644
        %v1669 = vsel %vm1584, %v1668, %v1644
        %v1670 = vsel %vm1583, %v648, %v1667
        %v1671 = vsel %vm1583, 0, %v1669
        %v1672 = vcosq.f32.pop %v1670
        %v1673 = vsinq.f32.pop %v1670
        %vm1674 = vweird.f32 %v648
        %v1675 = vand.u32 %v1671, 3
        %vm1676 = vcmp.lt.s32.totalorder %v1675, 2
        %vm1677 = vcmp.eq.s32.totalorder %v1675, 0
        %v1678 = vxor.u32 %v1673, 2147483648
        %v1679 = vsel %vm1677, %v1672, %v1678
        %vm1680 = vcmp.eq.s32.totalorder %v1675, 2
        %v1681 = vxor.u32 %v1672, 2147483648
        %v1682 = vsel %vm1680, %v1681, %v1673
        %v1683 = vsel %vm1676, %v1679, %v1682
        %v1684 = vsel %vm1674, nan, %v1683
        %v1685 = vand.u32 2147483647, %v649
        %vm1686 = vcmp.le.f32.partialorder %v1685, 0.7853982
        %vm1687 = vcmp.lt.s32.totalorder %v649, 0
        %v1688 = vand.u32 %v649, 2139095040
        %v1689 = vshrl.u32 %v1688, 23
        %v1690 = vsub.s32 %v1689, 127
        %v1691 = vand.u32 2147483647, %v649
        %v1692 = vand.u32 %v1691, 8388607
        %v1693 = vor.u32 %v1692, 8388608
        %v1694 = vsub.s32 0, %v1693
        %v1695 = vadd.s32 %v1690, 1
        %vm1696 = vcmp.gt.s32.totalorder %v1695, 0
        %v1697 = vsel %vm1696, %v1695, 0
        %v1698 = vshrl.u32 %v1697, 5
        %v1699 = vand.u32 %v1697, 31
        %v1700 = vsub.s32 32, %v1699
        %v1701 = vshrl.u32 683565275, %v1700
        %v1702 = vshll.u32 683565275, %v1699
        %v1703 = vshrl.u32 2475754826, %v1700
        %v1704 = vor.u32 %v1702, %v1703
        %v1705 = vshll.u32 2475754826, %v1699
        %v1706 = vshrl.u32 2131351028, %v1700
        %v1707 = vor.u32 %v1705, %v1706
        %v1708 = vshll.u32 2131351028, %v1699
        %v1709 = vshrl.u32 2102212464, %v1700
        %v1710 = vor.u32 %v1708, %v1709
        %v1711 = vshll.u32 2102212464, %v1699
        %v1712 = vshrl.u32 920167782, %v1700
        %v1713 = vor.u32 %v1711, %v1712
        %v1714 = vshll.u32 920167782, %v1699
        %v1715 = vshrl.u32 1326507024, %v1700
        %v1716 = vor.u32 %v1714, %v1715
        %vm1717 = vcmp.lt.s32.totalorder %v1698, 1
        %vm1718 = vcmp.lt.s32.totalorder %v1698, 2
        %vm1719 = vcmp.lt.s32.totalorder %v1698, 3
        %vm1720 = vcmp.lt.s32.totalorder %v1698, 4
        %v1721 = vsel %vm1717, %v1701, %v1704
        %v1722 = vsel %vm1720, %v1710, 2102212464
        %v1723 = vsel %vm1719, %v1707, %v1722
        %v1724 = vsel %vm1718, %v1721, %v1723
        %v1725 = vsel %vm1717, %v1704, %v1707
        %v1726 = vsel %vm1720, %v1713, 920167782
        %v1727 = vsel %vm1719, %v1710, %v1726
        %v1728 = vsel %vm1718, %v1725, %v1727
        %v1729 = vsel %vm1717, %v1707, %v1710
        %v1730 = vsel %vm1720, %v1716, 1326507024
        %v1731 = vsel %vm1719, %v1713, %v1730
        %v1732 = vsel %vm1718, %v1729, %v1731
        %v1733 = vshll.u32 %v1693, 8
        %v1734 = vmul.u32.u64.compose %v1733, %v1732
        %v1735 = vextract.low.u32 %v1734
        %v1736 = vextract.high.u32 %v1734
        %v1737 = vmul.u32.u64.compose %v1733, %v1728
        %v1738 = vextract.low.u32 %v1737
        %v1739 = vextract.high.u32 %v1737
        %v1740 = vmul.u32 %v1733, %v1724
        %v1741 = vadd.s32 %v1736, %v1738
        %vm1742 = vc.u32 %v1736, %v1738
        %v1743 = vadd.s32 %v1739, 1
        %v1744 = vsel %vm1742, %v1743, %v1739
        %v1745 = vadd.s32 %v1740, %v1744
        %v1746 = vadd.s32 %v1745, 536870912
        %v1747 = vshrl.u32 %v1746, 30
        %v1748 = vshll.u32 %v1747, 30
        %v1749 = vsub.s32 %v1745, %v1748
        %vm1750 = vcmp.lt.s32.totalorder %v1749, 0
        %v1751 = vsub.s32 0, %v1749
        %v1752 = vsel %vm1750, %v1751, %v1749
        %v1753 = vclz %v1752
        %v1754 = vsub.s32 %v1753, 2
        %vm1755 = vcmp.gt.s32.totalorder 0, %v1754
        %v1756 = vsel %vm1755, 0, %v1754
        %v1757 = vsub.s32 32, %v1756
        %v1758 = vshll.u32 %v1749, %v1756
        %v1759 = vshrl.u32 %v1741, %v1757
        %v1760 = vor.u32 %v1758, %v1759
        %v1761 = vsub.s32 4294967266, %v1756
        %v1762 = vadd.s32 %v1761, 127
        %v1763 = vshll.u32 %v1762, 23
        %v1764 = vor.u32 4788187, %v1763
        %v1765 = vand.u32 2147483647, %v1764
        %v1767 = vcvt.s32.f32 %v1760
        %v1768 = vmul.f32 %v1767, %v1765
        %v1769 = vxor.u32 %v1768, 2147483648
        %v1770 = vsel %vm1687, %v1769, %v1768
        %v1771 = vsub.s32 4, %v1747
        %v1772 = vsel %vm1687, %v1771, %v1747
        %v1773 = vsel %vm1686, %v649, %v1770
        %v1774 = vsel %vm1686, 0, %v1772
        %v1775 = vcosq.f32.pop %v1773
        %v1776 = vsinq.f32.pop %v1773
        %vm1777 = vweird.f32 %v649
        %v1778 = vand.u32 %v1774, 3
        %vm1779 = vcmp.lt.s32.totalorder %v1778, 2
        %vm1780 = vcmp.eq.s32.totalorder %v1778, 0
        %v1781 = vxor.u32 %v1776, 2147483648
        %v1782 = vsel %vm1780, %v1775, %v1781
        %vm1783 = vcmp.eq.s32.totalorder %v1778, 2
        %v1784 = vxor.u32 %v1775, 2147483648
        %v1785 = vsel %vm1783, %v1784, %v1776
        %v1786 = vsel %vm1779, %v1782, %v1785
        %v1787 = vsel %vm1777, nan, %v1786
        %v1788 = vand.u32 2147483647, %v650
        %vm1789 = vcmp.le.f32.partialorder %v1788, 0.7853982
        %vm1790 = vcmp.lt.s32.totalorder %v650, 0
        %v1791 = vand.u32 %v650, 2139095040
        %v1792 = vshrl.u32 %v1791, 23
        %v1793 = vsub.s32 %v1792, 127
        %v1794 = vand.u32 2147483647, %v650
        %v1795 = vand.u32 %v1794, 8388607
        %v1796 = vor.u32 %v1795, 8388608
        %v1797 = vsub.s32 0, %v1796
        %v1798 = vadd.s32 %v1793, 1
        %vm1799 = vcmp.gt.s32.totalorder %v1798, 0
        %v1800 = vsel %vm1799, %v1798, 0
        %v1801 = vshrl.u32 %v1800, 5
        %v1802 = vand.u32 %v1800, 31
        %v1803 = vsub.s32 32, %v1802
        %v1804 = vshrl.u32 683565275, %v1803
        %v1805 = vshll.u32 683565275, %v1802
        %v1806 = vshrl.u32 2475754826, %v1803
        %v1807 = vor.u32 %v1805, %v1806
        %v1808 = vshll.u32 2475754826, %v1802
        %v1809 = vshrl.u32 2131351028, %v1803
        %v1810 = vor.u32 %v1808, %v1809
        %v1811 = vshll.u32 2131351028, %v1802
        %v1812 = vshrl.u32 2102212464, %v1803
        %v1813 = vor.u32 %v1811, %v1812
        %v1814 = vshll.u32 2102212464, %v1802
        %v1815 = vshrl.u32 920167782, %v1803
        %v1816 = vor.u32 %v1814, %v1815
        %v1817 = vshll.u32 920167782, %v1802
        %v1818 = vshrl.u32 1326507024, %v1803
        %v1819 = vor.u32 %v1817, %v1818
        %vm1820 = vcmp.lt.s32.totalorder %v1801, 1
        %vm1821 = vcmp.lt.s32.totalorder %v1801, 2
        %vm1822 = vcmp.lt.s32.totalorder %v1801, 3
        %vm1823 = vcmp.lt.s32.totalorder %v1801, 4
        %v1824 = vsel %vm1820, %v1804, %v1807
        %v1825 = vsel %vm1823, %v1813, 2102212464
        %v1826 = vsel %vm1822, %v1810, %v1825
        %v1827 = vsel %vm1821, %v1824, %v1826
        %v1828 = vsel %vm1820, %v1807, %v1810
        %v1829 = vsel %vm1823, %v1816, 920167782
        %v1830 = vsel %vm1822, %v1813, %v1829
        %v1831 = vsel %vm1821, %v1828, %v1830
        %v1832 = vsel %vm1820, %v1810, %v1813
        %v1833 = vsel %vm1823, %v1819, 1326507024
        %v1834 = vsel %vm1822, %v1816, %v1833
        %v1835 = vsel %vm1821, %v1832, %v1834
        %v1836 = vshll.u32 %v1796, 8
        %v1837 = vmul.u32.u64.compose %v1836, %v1835
        %v1838 = vextract.low.u32 %v1837
        %v1839 = vextract.high.u32 %v1837
        %v1840 = vmul.u32.u64.compose %v1836, %v1831
        %v1841 = vextract.low.u32 %v1840
        %v1842 = vextract.high.u32 %v1840
        %v1843 = vmul.u32 %v1836, %v1827
        %v1844 = vadd.s32 %v1839, %v1841
        %vm1845 = vc.u32 %v1839, %v1841
        %v1846 = vadd.s32 %v1842, 1
        %v1847 = vsel %vm1845, %v1846, %v1842
        %v1848 = vadd.s32 %v1843, %v1847
        %v1849 = vadd.s32 %v1848, 536870912
        %v1850 = vshrl.u32 %v1849, 30
        %v1851 = vshll.u32 %v1850, 30
        %v1852 = vsub.s32 %v1848, %v1851
        %vm1853 = vcmp.lt.s32.totalorder %v1852, 0
        %v1854 = vsub.s32 0, %v1852
        %v1855 = vsel %vm1853, %v1854, %v1852
        %v1856 = vclz %v1855
        %v1857 = vsub.s32 %v1856, 2
        %vm1858 = vcmp.gt.s32.totalorder 0, %v1857
        %v1859 = vsel %vm1858, 0, %v1857
        %v1860 = vsub.s32 32, %v1859
        %v1861 = vshll.u32 %v1852, %v1859
        %v1862 = vshrl.u32 %v1844, %v1860
        %v1863 = vor.u32 %v1861, %v1862
        %v1864 = vsub.s32 4294967266, %v1859
        %v1865 = vadd.s32 %v1864, 127
        %v1866 = vshll.u32 %v1865, 23
        %v1867 = vor.u32 4788187, %v1866
        %v1868 = vand.u32 2147483647, %v1867
        %v1870 = vcvt.s32.f32 %v1863
        %v1871 = vmul.f32 %v1870, %v1868
        %v1872 = vxor.u32 %v1871, 2147483648
        %v1873 = vsel %vm1790, %v1872, %v1871
        %v1874 = vsub.s32 4, %v1850
        %v1875 = vsel %vm1790, %v1874, %v1850
        %v1876 = vsel %vm1789, %v650, %v1873
        %v1877 = vsel %vm1789, 0, %v1875
        %v1878 = vcosq.f32.pop %v1876
        %v1879 = vsinq.f32.pop %v1876
        %vm1880 = vweird.f32 %v650
        %v1881 = vand.u32 %v1877, 3
        %vm1882 = vcmp.lt.s32.totalorder %v1881, 2
        %vm1883 = vcmp.eq.s32.totalorder %v1881, 0
        %v1884 = vxor.u32 %v1879, 2147483648
        %v1885 = vsel %vm1883, %v1878, %v1884
        %vm1886 = vcmp.eq.s32.totalorder %v1881, 2
        %v1887 = vxor.u32 %v1878, 2147483648
        %v1888 = vsel %vm1886, %v1887, %v1879
        %v1889 = vsel %vm1882, %v1885, %v1888
        %v1890 = vsel %vm1880, nan, %v1889
        %v1891 = vand.u32 2147483647, %v651
        %vm1892 = vcmp.le.f32.partialorder %v1891, 0.7853982
        %vm1893 = vcmp.lt.s32.totalorder %v651, 0
        %v1894 = vand.u32 %v651, 2139095040
        %v1895 = vshrl.u32 %v1894, 23
        %v1896 = vsub.s32 %v1895, 127
        %v1897 = vand.u32 2147483647, %v651
        %v1898 = vand.u32 %v1897, 8388607
        %v1899 = vor.u32 %v1898, 8388608
        %v1900 = vsub.s32 0, %v1899
        %v1901 = vadd.s32 %v1896, 1
        %vm1902 = vcmp.gt.s32.totalorder %v1901, 0
        %v1903 = vsel %vm1902, %v1901, 0
        %v1904 = vshrl.u32 %v1903, 5
        %v1905 = vand.u32 %v1903, 31
        %v1906 = vsub.s32 32, %v1905
        %v1907 = vshrl.u32 683565275, %v1906
        %v1908 = vshll.u32 683565275, %v1905
        %v1909 = vshrl.u32 2475754826, %v1906
        %v1910 = vor.u32 %v1908, %v1909
        %v1911 = vshll.u32 2475754826, %v1905
        %v1912 = vshrl.u32 2131351028, %v1906
        %v1913 = vor.u32 %v1911, %v1912
        %v1914 = vshll.u32 2131351028, %v1905
        %v1915 = vshrl.u32 2102212464, %v1906
        %v1916 = vor.u32 %v1914, %v1915
        %v1917 = vshll.u32 2102212464, %v1905
        %v1918 = vshrl.u32 920167782, %v1906
        %v1919 = vor.u32 %v1917, %v1918
        %v1920 = vshll.u32 920167782, %v1905
        %v1921 = vshrl.u32 1326507024, %v1906
        %v1922 = vor.u32 %v1920, %v1921
        %vm1923 = vcmp.lt.s32.totalorder %v1904, 1
        %vm1924 = vcmp.lt.s32.totalorder %v1904, 2
        %vm1925 = vcmp.lt.s32.totalorder %v1904, 3
        %vm1926 = vcmp.lt.s32.totalorder %v1904, 4
        %v1927 = vsel %vm1923, %v1907, %v1910
        %v1928 = vsel %vm1926, %v1916, 2102212464
        %v1929 = vsel %vm1925, %v1913, %v1928
        %v1930 = vsel %vm1924, %v1927, %v1929
        %v1931 = vsel %vm1923, %v1910, %v1913
        %v1932 = vsel %vm1926, %v1919, 920167782
        %v1933 = vsel %vm1925, %v1916, %v1932
        %v1934 = vsel %vm1924, %v1931, %v1933
        %v1935 = vsel %vm1923, %v1913, %v1916
        %v1936 = vsel %vm1926, %v1922, 1326507024
        %v1937 = vsel %vm1925, %v1919, %v1936
        %v1938 = vsel %vm1924, %v1935, %v1937
        %v1939 = vshll.u32 %v1899, 8
        %v1940 = vmul.u32.u64.compose %v1939, %v1938
        %v1941 = vextract.low.u32 %v1940
        %v1942 = vextract.high.u32 %v1940
        %v1943 = vmul.u32.u64.compose %v1939, %v1934
        %v1944 = vextract.low.u32 %v1943
        %v1945 = vextract.high.u32 %v1943
        %v1946 = vmul.u32 %v1939, %v1930
        %v1947 = vadd.s32 %v1942, %v1944
        %vm1948 = vc.u32 %v1942, %v1944
        %v1949 = vadd.s32 %v1945, 1
        %v1950 = vsel %vm1948, %v1949, %v1945
        %v1951 = vadd.s32 %v1946, %v1950
        %v1952 = vadd.s32 %v1951, 536870912
        %v1953 = vshrl.u32 %v1952, 30
        %v1954 = vshll.u32 %v1953, 30
        %v1955 = vsub.s32 %v1951, %v1954
        %vm1956 = vcmp.lt.s32.totalorder %v1955, 0
        %v1957 = vsub.s32 0, %v1955
        %v1958 = vsel %vm1956, %v1957, %v1955
        %v1959 = vclz %v1958
        %v1960 = vsub.s32 %v1959, 2
        %vm1961 = vcmp.gt.s32.totalorder 0, %v1960
        %v1962 = vsel %vm1961, 0, %v1960
        %v1963 = vsub.s32 32, %v1962
        %v1964 = vshll.u32 %v1955, %v1962
        %v1965 = vshrl.u32 %v1947, %v1963
        %v1966 = vor.u32 %v1964, %v1965
        %v1967 = vsub.s32 4294967266, %v1962
        %v1968 = vadd.s32 %v1967, 127
        %v1969 = vshll.u32 %v1968, 23
        %v1970 = vor.u32 4788187, %v1969
        %v1971 = vand.u32 2147483647, %v1970
        %v1973 = vcvt.s32.f32 %v1966
        %v1974 = vmul.f32 %v1973, %v1971
        %v1975 = vxor.u32 %v1974, 2147483648
        %v1976 = vsel %vm1893, %v1975, %v1974
        %v1977 = vsub.s32 4, %v1953
        %v1978 = vsel %vm1893, %v1977, %v1953
        %v1979 = vsel %vm1892, %v651, %v1976
        %v1980 = vsel %vm1892, 0, %v1978
        %v1981 = vcosq.f32.pop %v1979
        %v1982 = vsinq.f32.pop %v1979
        %vm1983 = vweird.f32 %v651
        %v1984 = vand.u32 %v1980, 3
        %vm1985 = vcmp.lt.s32.totalorder %v1984, 2
        %vm1986 = vcmp.eq.s32.totalorder %v1984, 0
        %v1987 = vxor.u32 %v1982, 2147483648
        %v1988 = vsel %vm1986, %v1981, %v1987
        %vm1989 = vcmp.eq.s32.totalorder %v1984, 2
        %v1990 = vxor.u32 %v1981, 2147483648
        %v1991 = vsel %vm1989, %v1990, %v1982
        %v1992 = vsel %vm1985, %v1988, %v1991
        %v1993 = vsel %vm1983, nan, %v1992
        %v1994 = vand.u32 2147483647, %v652
        %vm1995 = vcmp.le.f32.partialorder %v1994, 0.7853982
        %vm1996 = vcmp.lt.s32.totalorder %v652, 0
        %v1997 = vand.u32 %v652, 2139095040
        %v1998 = vshrl.u32 %v1997, 23
        %v1999 = vsub.s32 %v1998, 127
        %v2000 = vand.u32 2147483647, %v652
        %v2001 = vand.u32 %v2000, 8388607
        %v2002 = vor.u32 %v2001, 8388608
        %v2003 = vsub.s32 0, %v2002
        %v2004 = vadd.s32 %v1999, 1
        %vm2005 = vcmp.gt.s32.totalorder %v2004, 0
        %v2006 = vsel %vm2005, %v2004, 0
        %v2007 = vshrl.u32 %v2006, 5
        %v2008 = vand.u32 %v2006, 31
        %v2009 = vsub.s32 32, %v2008
        %v2010 = vshrl.u32 683565275, %v2009
        %v2011 = vshll.u32 683565275, %v2008
        %v2012 = vshrl.u32 2475754826, %v2009
        %v2013 = vor.u32 %v2011, %v2012
        %v2014 = vshll.u32 2475754826, %v2008
        %v2015 = vshrl.u32 2131351028, %v2009
        %v2016 = vor.u32 %v2014, %v2015
        %v2017 = vshll.u32 2131351028, %v2008
        %v2018 = vshrl.u32 2102212464, %v2009
        %v2019 = vor.u32 %v2017, %v2018
        %v2020 = vshll.u32 2102212464, %v2008
        %v2021 = vshrl.u32 920167782, %v2009
        %v2022 = vor.u32 %v2020, %v2021
        %v2023 = vshll.u32 920167782, %v2008
        %v2024 = vshrl.u32 1326507024, %v2009
        %v2025 = vor.u32 %v2023, %v2024
        %vm2026 = vcmp.lt.s32.totalorder %v2007, 1
        %vm2027 = vcmp.lt.s32.totalorder %v2007, 2
        %vm2028 = vcmp.lt.s32.totalorder %v2007, 3
        %vm2029 = vcmp.lt.s32.totalorder %v2007, 4
        %v2030 = vsel %vm2026, %v2010, %v2013
        %v2031 = vsel %vm2029, %v2019, 2102212464
        %v2032 = vsel %vm2028, %v2016, %v2031
        %v2033 = vsel %vm2027, %v2030, %v2032
        %v2034 = vsel %vm2026, %v2013, %v2016
        %v2035 = vsel %vm2029, %v2022, 920167782
        %v2036 = vsel %vm2028, %v2019, %v2035
        %v2037 = vsel %vm2027, %v2034, %v2036
        %v2038 = vsel %vm2026, %v2016, %v2019
        %v2039 = vsel %vm2029, %v2025, 1326507024
        %v2040 = vsel %vm2028, %v2022, %v2039
        %v2041 = vsel %vm2027, %v2038, %v2040
        %v2042 = vshll.u32 %v2002, 8
        %v2043 = vmul.u32.u64.compose %v2042, %v2041
        %v2044 = vextract.low.u32 %v2043
        %v2045 = vextract.high.u32 %v2043
        %v2046 = vmul.u32.u64.compose %v2042, %v2037
        %v2047 = vextract.low.u32 %v2046
        %v2048 = vextract.high.u32 %v2046
        %v2049 = vmul.u32 %v2042, %v2033
        %v2050 = vadd.s32 %v2045, %v2047
        %vm2051 = vc.u32 %v2045, %v2047
        %v2052 = vadd.s32 %v2048, 1
        %v2053 = vsel %vm2051, %v2052, %v2048
        %v2054 = vadd.s32 %v2049, %v2053
        %v2055 = vadd.s32 %v2054, 536870912
        %v2056 = vshrl.u32 %v2055, 30
        %v2057 = vshll.u32 %v2056, 30
        %v2058 = vsub.s32 %v2054, %v2057
        %vm2059 = vcmp.lt.s32.totalorder %v2058, 0
        %v2060 = vsub.s32 0, %v2058
        %v2061 = vsel %vm2059, %v2060, %v2058
        %v2062 = vclz %v2061
        %v2063 = vsub.s32 %v2062, 2
        %vm2064 = vcmp.gt.s32.totalorder 0, %v2063
        %v2065 = vsel %vm2064, 0, %v2063
        %v2066 = vsub.s32 32, %v2065
        %v2067 = vshll.u32 %v2058, %v2065
        %v2068 = vshrl.u32 %v2050, %v2066
        %v2069 = vor.u32 %v2067, %v2068
        %v2070 = vsub.s32 4294967266, %v2065
        %v2071 = vadd.s32 %v2070, 127
        %v2072 = vshll.u32 %v2071, 23
        %v2073 = vor.u32 4788187, %v2072
        %v2074 = vand.u32 2147483647, %v2073
        %v2076 = vcvt.s32.f32 %v2069
        %v2077 = vmul.f32 %v2076, %v2074
        %v2078 = vxor.u32 %v2077, 2147483648
        %v2079 = vsel %vm1996, %v2078, %v2077
        %v2080 = vsub.s32 4, %v2056
        %v2081 = vsel %vm1996, %v2080, %v2056
        %v2082 = vsel %vm1995, %v652, %v2079
        %v2083 = vsel %vm1995, 0, %v2081
        %v2084 = vcosq.f32.pop %v2082
        %v2085 = vsinq.f32.pop %v2082
        %vm2086 = vweird.f32 %v652
        %v2087 = vand.u32 %v2083, 3
        %vm2088 = vcmp.lt.s32.totalorder %v2087, 2
        %vm2089 = vcmp.eq.s32.totalorder %v2087, 0
        %v2090 = vxor.u32 %v2085, 2147483648
        %v2091 = vsel %vm2089, %v2084, %v2090
        %vm2092 = vcmp.eq.s32.totalorder %v2087, 2
        %v2093 = vxor.u32 %v2084, 2147483648
        %v2094 = vsel %vm2092, %v2093, %v2085
        %v2095 = vsel %vm2088, %v2091, %v2094
        %v2096 = vsel %vm2086, nan, %v2095
        %v2097 = vand.u32 2147483647, %v653
        %vm2098 = vcmp.le.f32.partialorder %v2097, 0.7853982
        %vm2099 = vcmp.lt.s32.totalorder %v653, 0
        %v2100 = vand.u32 %v653, 2139095040
        %v2101 = vshrl.u32 %v2100, 23
        %v2102 = vsub.s32 %v2101, 127
        %v2103 = vand.u32 2147483647, %v653
        %v2104 = vand.u32 %v2103, 8388607
        %v2105 = vor.u32 %v2104, 8388608
        %v2106 = vsub.s32 0, %v2105
        %v2107 = vadd.s32 %v2102, 1
        %vm2108 = vcmp.gt.s32.totalorder %v2107, 0
        %v2109 = vsel %vm2108, %v2107, 0
        %v2110 = vshrl.u32 %v2109, 5
        %v2111 = vand.u32 %v2109, 31
        %v2112 = vsub.s32 32, %v2111
        %v2113 = vshrl.u32 683565275, %v2112
        %v2114 = vshll.u32 683565275, %v2111
        %v2115 = vshrl.u32 2475754826, %v2112
        %v2116 = vor.u32 %v2114, %v2115
        %v2117 = vshll.u32 2475754826, %v2111
        %v2118 = vshrl.u32 2131351028, %v2112
        %v2119 = vor.u32 %v2117, %v2118
        %v2120 = vshll.u32 2131351028, %v2111
        %v2121 = vshrl.u32 2102212464, %v2112
        %v2122 = vor.u32 %v2120, %v2121
        %v2123 = vshll.u32 2102212464, %v2111
        %v2124 = vshrl.u32 920167782, %v2112
        %v2125 = vor.u32 %v2123, %v2124
        %v2126 = vshll.u32 920167782, %v2111
        %v2127 = vshrl.u32 1326507024, %v2112
        %v2128 = vor.u32 %v2126, %v2127
        %vm2129 = vcmp.lt.s32.totalorder %v2110, 1
        %vm2130 = vcmp.lt.s32.totalorder %v2110, 2
        %vm2131 = vcmp.lt.s32.totalorder %v2110, 3
        %vm2132 = vcmp.lt.s32.totalorder %v2110, 4
        %v2133 = vsel %vm2129, %v2113, %v2116
        %v2134 = vsel %vm2132, %v2122, 2102212464
        %v2135 = vsel %vm2131, %v2119, %v2134
        %v2136 = vsel %vm2130, %v2133, %v2135
        %v2137 = vsel %vm2129, %v2116, %v2119
        %v2138 = vsel %vm2132, %v2125, 920167782
        %v2139 = vsel %vm2131, %v2122, %v2138
        %v2140 = vsel %vm2130, %v2137, %v2139
        %v2141 = vsel %vm2129, %v2119, %v2122
        %v2142 = vsel %vm2132, %v2128, 1326507024
        %v2143 = vsel %vm2131, %v2125, %v2142
        %v2144 = vsel %vm2130, %v2141, %v2143
        %v2145 = vshll.u32 %v2105, 8
        %v2146 = vmul.u32.u64.compose %v2145, %v2144
        %v2147 = vextract.low.u32 %v2146
        %v2148 = vextract.high.u32 %v2146
        %v2149 = vmul.u32.u64.compose %v2145, %v2140
        %v2150 = vextract.low.u32 %v2149
        %v2151 = vextract.high.u32 %v2149
        %v2152 = vmul.u32 %v2145, %v2136
        %v2153 = vadd.s32 %v2148, %v2150
        %vm2154 = vc.u32 %v2148, %v2150
        %v2155 = vadd.s32 %v2151, 1
        %v2156 = vsel %vm2154, %v2155, %v2151
        %v2157 = vadd.s32 %v2152, %v2156
        %v2158 = vadd.s32 %v2157, 536870912
        %v2159 = vshrl.u32 %v2158, 30
        %v2160 = vshll.u32 %v2159, 30
        %v2161 = vsub.s32 %v2157, %v2160
        %vm2162 = vcmp.lt.s32.totalorder %v2161, 0
        %v2163 = vsub.s32 0, %v2161
        %v2164 = vsel %vm2162, %v2163, %v2161
        %v2165 = vclz %v2164
        %v2166 = vsub.s32 %v2165, 2
        %vm2167 = vcmp.gt.s32.totalorder 0, %v2166
        %v2168 = vsel %vm2167, 0, %v2166
        %v2169 = vsub.s32 32, %v2168
        %v2170 = vshll.u32 %v2161, %v2168
        %v2171 = vshrl.u32 %v2153, %v2169
        %v2172 = vor.u32 %v2170, %v2171
        %v2173 = vsub.s32 4294967266, %v2168
        %v2174 = vadd.s32 %v2173, 127
        %v2175 = vshll.u32 %v2174, 23
        %v2176 = vor.u32 4788187, %v2175
        %v2177 = vand.u32 2147483647, %v2176
        %v2179 = vcvt.s32.f32 %v2172
        %v2180 = vmul.f32 %v2179, %v2177
        %v2181 = vxor.u32 %v2180, 2147483648
        %v2182 = vsel %vm2099, %v2181, %v2180
        %v2183 = vsub.s32 4, %v2159
        %v2184 = vsel %vm2099, %v2183, %v2159
        %v2185 = vsel %vm2098, %v653, %v2182
        %v2186 = vsel %vm2098, 0, %v2184
        %v2187 = vcosq.f32.pop %v2185
        %v2188 = vsinq.f32.pop %v2185
        %vm2189 = vweird.f32 %v653
        %v2190 = vand.u32 %v2186, 3
        %vm2191 = vcmp.lt.s32.totalorder %v2190, 2
        %vm2192 = vcmp.eq.s32.totalorder %v2190, 0
        %v2193 = vxor.u32 %v2188, 2147483648
        %v2194 = vsel %vm2192, %v2187, %v2193
        %vm2195 = vcmp.eq.s32.totalorder %v2190, 2
        %v2196 = vxor.u32 %v2187, 2147483648
        %v2197 = vsel %vm2195, %v2196, %v2188
        %v2198 = vsel %vm2191, %v2194, %v2197
        %v2199 = vsel %vm2189, nan, %v2198
        %v2200 = vand.u32 2147483647, %v654
        %vm2201 = vcmp.le.f32.partialorder %v2200, 0.7853982
        %vm2202 = vcmp.lt.s32.totalorder %v654, 0
        %v2203 = vand.u32 %v654, 2139095040
        %v2204 = vshrl.u32 %v2203, 23
        %v2205 = vsub.s32 %v2204, 127
        %v2206 = vand.u32 2147483647, %v654
        %v2207 = vand.u32 %v2206, 8388607
        %v2208 = vor.u32 %v2207, 8388608
        %v2209 = vsub.s32 0, %v2208
        %v2210 = vadd.s32 %v2205, 1
        %vm2211 = vcmp.gt.s32.totalorder %v2210, 0
        %v2212 = vsel %vm2211, %v2210, 0
        %v2213 = vshrl.u32 %v2212, 5
        %v2214 = vand.u32 %v2212, 31
        %v2215 = vsub.s32 32, %v2214
        %v2216 = vshrl.u32 683565275, %v2215
        %v2217 = vshll.u32 683565275, %v2214
        %v2218 = vshrl.u32 2475754826, %v2215
        %v2219 = vor.u32 %v2217, %v2218
        %v2220 = vshll.u32 2475754826, %v2214
        %v2221 = vshrl.u32 2131351028, %v2215
        %v2222 = vor.u32 %v2220, %v2221
        %v2223 = vshll.u32 2131351028, %v2214
        %v2224 = vshrl.u32 2102212464, %v2215
        %v2225 = vor.u32 %v2223, %v2224
        %v2226 = vshll.u32 2102212464, %v2214
        %v2227 = vshrl.u32 920167782, %v2215
        %v2228 = vor.u32 %v2226, %v2227
        %v2229 = vshll.u32 920167782, %v2214
        %v2230 = vshrl.u32 1326507024, %v2215
        %v2231 = vor.u32 %v2229, %v2230
        %vm2232 = vcmp.lt.s32.totalorder %v2213, 1
        %vm2233 = vcmp.lt.s32.totalorder %v2213, 2
        %vm2234 = vcmp.lt.s32.totalorder %v2213, 3
        %vm2235 = vcmp.lt.s32.totalorder %v2213, 4
        %v2236 = vsel %vm2232, %v2216, %v2219
        %v2237 = vsel %vm2235, %v2225, 2102212464
        %v2238 = vsel %vm2234, %v2222, %v2237
        %v2239 = vsel %vm2233, %v2236, %v2238
        %v2240 = vsel %vm2232, %v2219, %v2222
        %v2241 = vsel %vm2235, %v2228, 920167782
        %v2242 = vsel %vm2234, %v2225, %v2241
        %v2243 = vsel %vm2233, %v2240, %v2242
        %v2244 = vsel %vm2232, %v2222, %v2225
        %v2245 = vsel %vm2235, %v2231, 1326507024
        %v2246 = vsel %vm2234, %v2228, %v2245
        %v2247 = vsel %vm2233, %v2244, %v2246
        %v2248 = vshll.u32 %v2208, 8
        %v2249 = vmul.u32.u64.compose %v2248, %v2247
        %v2250 = vextract.low.u32 %v2249
        %v2251 = vextract.high.u32 %v2249
        %v2252 = vmul.u32.u64.compose %v2248, %v2243
        %v2253 = vextract.low.u32 %v2252
        %v2254 = vextract.high.u32 %v2252
        %v2255 = vmul.u32 %v2248, %v2239
        %v2256 = vadd.s32 %v2251, %v2253
        %vm2257 = vc.u32 %v2251, %v2253
        %v2258 = vadd.s32 %v2254, 1
        %v2259 = vsel %vm2257, %v2258, %v2254
        %v2260 = vadd.s32 %v2255, %v2259
        %v2261 = vadd.s32 %v2260, 536870912
        %v2262 = vshrl.u32 %v2261, 30
        %v2263 = vshll.u32 %v2262, 30
        %v2264 = vsub.s32 %v2260, %v2263
        %vm2265 = vcmp.lt.s32.totalorder %v2264, 0
        %v2266 = vsub.s32 0, %v2264
        %v2267 = vsel %vm2265, %v2266, %v2264
        %v2268 = vclz %v2267
        %v2269 = vsub.s32 %v2268, 2
        %vm2270 = vcmp.gt.s32.totalorder 0, %v2269
        %v2271 = vsel %vm2270, 0, %v2269
        %v2272 = vsub.s32 32, %v2271
        %v2273 = vshll.u32 %v2264, %v2271
        %v2274 = vshrl.u32 %v2256, %v2272
        %v2275 = vor.u32 %v2273, %v2274
        %v2276 = vsub.s32 4294967266, %v2271
        %v2277 = vadd.s32 %v2276, 127
        %v2278 = vshll.u32 %v2277, 23
        %v2279 = vor.u32 4788187, %v2278
        %v2280 = vand.u32 2147483647, %v2279
        %v2282 = vcvt.s32.f32 %v2275
        %v2283 = vmul.f32 %v2282, %v2280
        %v2284 = vxor.u32 %v2283, 2147483648
        %v2285 = vsel %vm2202, %v2284, %v2283
        %v2286 = vsub.s32 4, %v2262
        %v2287 = vsel %vm2202, %v2286, %v2262
        %v2288 = vsel %vm2201, %v654, %v2285
        %v2289 = vsel %vm2201, 0, %v2287
        %v2290 = vcosq.f32.pop %v2288
        %v2291 = vsinq.f32.pop %v2288
        %vm2292 = vweird.f32 %v654
        %v2293 = vand.u32 %v2289, 3
        %vm2294 = vcmp.lt.s32.totalorder %v2293, 2
        %vm2295 = vcmp.eq.s32.totalorder %v2293, 0
        %v2296 = vxor.u32 %v2291, 2147483648
        %v2297 = vsel %vm2295, %v2290, %v2296
        %vm2298 = vcmp.eq.s32.totalorder %v2293, 2
        %v2299 = vxor.u32 %v2290, 2147483648
        %v2300 = vsel %vm2298, %v2299, %v2291
        %v2301 = vsel %vm2294, %v2297, %v2300
        %v2302 = vsel %vm2292, nan, %v2301
        %v2303 = vld [vmem:[%s519] sm:$0xf]
        %v2304 = vld [vmem:[%s519 + $0x4] sm:$0xf]
        %v2305 = vld [vmem:[%s519 + $0x8] sm:$0xf]
        %v2306 = vld [vmem:[%s519 + $0xc] sm:$0xf]
        %v2307 = vld [vmem:[%s519 + $0x10] sm:$0xf]
        %v2308 = vld [vmem:[%s519 + $0x14] sm:$0xf]
        %v2309 = vld [vmem:[%s519 + $0x18] sm:$0xf]
        %v2310 = vld [vmem:[%s519 + $0x1c] sm:$0xf]
        %v2311 = vld [vmem:[%s519 + $0x20] sm:$0xf]
        %v2312 = vld [vmem:[%s519 + $0x24] sm:$0xf]
        %v2313 = vld [vmem:[%s519 + $0x28] sm:$0xf]
        %v2314 = vld [vmem:[%s519 + $0x2c] sm:$0xf]
        %v2315 = vld [vmem:[%s519 + $0x30] sm:$0xf]
        %v2316 = vld [vmem:[%s519 + $0x34] sm:$0xf]
        %v2317 = vld [vmem:[%s519 + $0x38] sm:$0xf]
        %v2318 = vld [vmem:[%s519 + $0x3c] sm:$0xf]
        %v2319 = vld [vmem:[%s5] sm:$0xff]
        %v2320 = vld [vmem:[%s5 + $0x8] sm:$0xf]
        %v2321 = vld [vmem:[%s5 + $0xc] sm:$0xff]
        %v2322 = vld [vmem:[%s5 + $0x14] sm:$0xf]
        %v2323 = vld [vmem:[%s5 + $0x18] sm:$0xff]
        %v2324 = vld [vmem:[%s5 + $0x20] sm:$0xf]
        %v2325 = vld [vmem:[%s5 + $0x24] sm:$0xff]
        %v2326 = vld [vmem:[%s5 + $0x2c] sm:$0xf]
        %v2327 = vld [vmem:[%s5 + $0x30] sm:$0xff]
        %v2328 = vld [vmem:[%s5 + $0x38] sm:$0xf]
        %v2329 = vld [vmem:[%s5 + $0x3c] sm:$0xff]
        %v2330 = vld [vmem:[%s5 + $0x44] sm:$0xf]
        %v2331 = vld [vmem:[%s5 + $0x48] sm:$0xff]
        %v2332 = vld [vmem:[%s5 + $0x50] sm:$0xf]
        %v2333 = vld [vmem:[%s5 + $0x54] sm:$0xff]
        %v2334 = vld [vmem:[%s5 + $0x5c] sm:$0xf]
        %v2335 = vpack.c.bf16 %v860, %v757
        %v2336 = vpack.c.bf16 %v1066, %v963
        %v2337 = vpack.c.bf16 %v1272, %v1169
        %v2338 = vpack.c.bf16 %v1478, %v1375
        %v2339 = vpack.c.bf16 %v1684, %v1581
        %v2340 = vpack.c.bf16 %v1890, %v1787
        %v2341 = vpack.c.bf16 %v2096, %v1993
        %v2342 = vpack.c.bf16 %v2302, %v2199
        %v2343 = vld [vmem:[#allocation2] sm:$0xff]
        %v2344 = vld [vmem:[#allocation2 + $0x8] sm:$0xf]
        %v2345 = vld [vmem:[#allocation2 + $0xc] sm:$0xff]
        %v2346 = vld [vmem:[#allocation2 + $0x14] sm:$0xf]
        %v2347 = vld [vmem:[#allocation2 + $0x18] sm:$0xff]
        %v2348 = vld [vmem:[#allocation2 + $0x20] sm:$0xf]
        %v2349 = vld [vmem:[#allocation2 + $0x24] sm:$0xff]
        %v2350 = vld [vmem:[#allocation2 + $0x2c] sm:$0xf]
        %v2359 = vunpack.c.l.b16 %v2343
        %v2360 = vunpack.c.h.b16 %v2343
        %v2361 = vunpack.c.l.b16 %v2344
        %v2362 = vunpack.c.l.b16 %v2345
        %v2363 = vunpack.c.h.b16 %v2345
        %v2364 = vunpack.c.l.b16 %v2346
        %v2365 = vunpack.c.l.b16 %v2347
        %v2366 = vunpack.c.h.b16 %v2347
        %v2367 = vunpack.c.l.b16 %v2348
        %v2368 = vunpack.c.l.b16 %v2349
        %v2369 = vunpack.c.h.b16 %v2349
        %v2370 = vunpack.c.l.b16 %v2350
        %v2371 = vpack.c.b16 %v2362, %v2359
        %v2372 = vpack.c.b16 %v2363, %v2360
        %v2373 = vpack.c.b16 %v2364, %v2361
        %v2374 = vpack.c.b16 %v2368, %v2365
        %v2375 = vpack.c.b16 %v2369, %v2366
        %v2376 = vpack.c.b16 %v2370, %v2367
        %vm2383 = vcmask 261120
        %v2385 = vsel %vm2383, %v2335, 0
        %v2388 = vsel %vm2383, %v2336, 0
        %v2391 = vsel %vm2383, %v2337, 0
        %v2394 = vsel %vm2383, %v2338, 0
        %v2397 = vsel %vm2383, %v2339, 0
        %v2400 = vsel %vm2383, %v2340, 0
        %v2403 = vsel %vm2383, %v2341, 0
        %v2406 = vsel %vm2383, %v2342, 0
        %2408 = vmatprep.subr.bf16.mxu0 0
        %2409 = vmatpush1.bf16.msra.mxu0 0
        %2410 = vmatprep.subr.bf16.mxu0 0
        %2411 = vmatpush1.bf16.msra.mxu0 0
        %2412 = vmatprep.subr.bf16.mxu0 0
        %2413 = vmatpush1.bf16.msra.mxu0 0
        %2414 = vmatprep.subr.bf16.mxu0 0
        %2415 = vmatpush1.bf16.msra.mxu0 0
        %2416 = vmatprep.subr.bf16.mxu0 0
        %2417 = vmatpush1.bf16.msra.mxu0 0
        %2418 = vmatprep.subr.bf16.mxu0 0
        %2419 = vmatpush1.bf16.msra.mxu0 0
        %2420 = vmatprep.subr.bf16.mxu0 %v2375
        %2421 = vmatpush1.bf16.msra.mxu0 %v2374
        %2422 = vmatprep.subr.bf16.mxu0 %v2372
        %2423 = vmatpush1.bf16.msra.mxu0 %v2371
        %2424 = vmatprep.subr.bf16.mxu0 0
        %2425 = vmatpush2.bf16.msra.mxu0 0
        %2426 = vmatprep.subr.bf16.mxu0 0
        %2427 = vmatpush2.bf16.msra.mxu0 0
        %2428 = vmatprep.subr.bf16.mxu0 0
        %2429 = vmatpush2.bf16.msra.mxu0 0
        %2430 = vmatprep.subr.bf16.mxu0 0
        %2431 = vmatpush2.bf16.msra.mxu0 0
        %2432 = vmatprep.subr.bf16.mxu0 0
        %2433 = vmatpush2.bf16.msra.mxu0 0
        %2434 = vmatprep.subr.bf16.mxu0 0
        %2435 = vmatpush2.bf16.msra.mxu0 0
        %2436 = vmatprep.subr.bf16.mxu0 0
        %2437 = vmatpush2.bf16.msra.mxu0 0
        %2438 = vmatprep.subr.bf16.mxu0 0
        %2439 = vmatpush2.bf16.msra.mxu0 0
        %2440 = vmatprep.mubr.bf16.mxu0 0
        %2441 = vmatmul.mubr.bf16.gmra.mxu0 %v2385
        %v2442 = vpop.f32.mrf.mxu0
        %v2443 = vadd.f32 0.0, %v2442
        %v2444 = vpop.f32.mrf.mxu0
        %v2445 = vadd.f32 0.0, %v2444
        %v2446 = vpop.f32.mrf.mxu0
        %v2447 = vadd.f32 0.0, %v2446
        %v2448 = vpop.f32.mrf.mxu0
        %v2449 = vadd.f32 0.0, %v2448
        %2450 = vmatprep.mubr.bf16.mxu0 0
        %2451 = vmatmul.mubr.bf16.gmra.mxu0 %v2388
        %v2452 = vpop.f32.mrf.mxu0
        %v2453 = vadd.f32 0.0, %v2452
        %v2454 = vpop.f32.mrf.mxu0
        %v2455 = vadd.f32 0.0, %v2454
        %v2456 = vpop.f32.mrf.mxu0
        %v2457 = vadd.f32 0.0, %v2456
        %v2458 = vpop.f32.mrf.mxu0
        %v2459 = vadd.f32 0.0, %v2458
        %2460 = vmatprep.mubr.bf16.mxu0 0
        %2461 = vmatmul.mubr.bf16.gmra.mxu0 %v2391
        %v2462 = vpop.f32.mrf.mxu0
        %v2463 = vadd.f32 0.0, %v2462
        %v2464 = vpop.f32.mrf.mxu0
        %v2465 = vadd.f32 0.0, %v2464
        %v2466 = vpop.f32.mrf.mxu0
        %v2467 = vadd.f32 0.0, %v2466
        %v2468 = vpop.f32.mrf.mxu0
        %v2469 = vadd.f32 0.0, %v2468
        %2470 = vmatprep.mubr.bf16.mxu0 0
        %2471 = vmatmul.mubr.bf16.gmra.mxu0 %v2394
        %v2472 = vpop.f32.mrf.mxu0
        %v2473 = vadd.f32 0.0, %v2472
        %v2474 = vpop.f32.mrf.mxu0
        %v2475 = vadd.f32 0.0, %v2474
        %v2476 = vpop.f32.mrf.mxu0
        %v2477 = vadd.f32 0.0, %v2476
        %v2478 = vpop.f32.mrf.mxu0
        %v2479 = vadd.f32 0.0, %v2478
        %2480 = vmatprep.mubr.bf16.mxu0 0
        %2481 = vmatmul.mubr.bf16.gmra.mxu0 %v2397
        %v2482 = vpop.f32.mrf.mxu0
        %v2483 = vadd.f32 0.0, %v2482
        %v2484 = vpop.f32.mrf.mxu0
        %v2485 = vadd.f32 0.0, %v2484
        %v2486 = vpop.f32.mrf.mxu0
        %v2487 = vadd.f32 0.0, %v2486
        %v2488 = vpop.f32.mrf.mxu0
        %v2489 = vadd.f32 0.0, %v2488
        %2490 = vmatprep.mubr.bf16.mxu0 0
        %2491 = vmatmul.mubr.bf16.gmra.mxu0 %v2400
        %v2492 = vpop.f32.mrf.mxu0
        %v2493 = vadd.f32 0.0, %v2492
        %v2494 = vpop.f32.mrf.mxu0
        %v2495 = vadd.f32 0.0, %v2494
        %v2496 = vpop.f32.mrf.mxu0
        %v2497 = vadd.f32 0.0, %v2496
        %v2498 = vpop.f32.mrf.mxu0
        %v2499 = vadd.f32 0.0, %v2498
        %2500 = vmatprep.mubr.bf16.mxu0 0
        %2501 = vmatmul.mubr.bf16.gmra.mxu0 %v2403
        %v2502 = vpop.f32.mrf.mxu0
        %v2503 = vadd.f32 0.0, %v2502
        %v2504 = vpop.f32.mrf.mxu0
        %v2505 = vadd.f32 0.0, %v2504
        %v2506 = vpop.f32.mrf.mxu0
        %v2507 = vadd.f32 0.0, %v2506
        %v2508 = vpop.f32.mrf.mxu0
        %v2509 = vadd.f32 0.0, %v2508
        %2510 = vmatprep.mubr.bf16.mxu0 0
        %2511 = vmatmul.mubr.bf16.gmra.mxu0 %v2406
        %v2512 = vpop.f32.mrf.mxu0
        %v2513 = vadd.f32 0.0, %v2512
        %v2514 = vpop.f32.mrf.mxu0
        %v2515 = vadd.f32 0.0, %v2514
        %v2516 = vpop.f32.mrf.mxu0
        %v2517 = vadd.f32 0.0, %v2516
        %v2518 = vpop.f32.mrf.mxu0
        %v2519 = vadd.f32 0.0, %v2518
        %2520 = vdwg.mxu0
        %2521 = vmatprep.subr.bf16.mxu0 0
        %2522 = vmatpush1.bf16.msra.mxu0 0
        %2523 = vmatprep.subr.bf16.mxu0 0
        %2524 = vmatpush1.bf16.msra.mxu0 0
        %2525 = vmatprep.subr.bf16.mxu0 0
        %2526 = vmatpush1.bf16.msra.mxu0 0
        %2527 = vmatprep.subr.bf16.mxu0 0
        %2528 = vmatpush1.bf16.msra.mxu0 0
        %2529 = vmatprep.subr.bf16.mxu0 0
        %2530 = vmatpush1.bf16.msra.mxu0 0
        %2531 = vmatprep.subr.bf16.mxu0 0
        %2532 = vmatpush1.bf16.msra.mxu0 0
        %2533 = vmatprep.subr.bf16.mxu0 0
        %2534 = vmatpush1.bf16.msra.mxu0 %v2376
        %2535 = vmatprep.subr.bf16.mxu0 0
        %2536 = vmatpush1.bf16.msra.mxu0 %v2373
        %2537 = vmatprep.subr.bf16.mxu0 0
        %2538 = vmatpush2.bf16.msra.mxu0 0
        %2539 = vmatprep.subr.bf16.mxu0 0
        %2540 = vmatpush2.bf16.msra.mxu0 0
        %2541 = vmatprep.subr.bf16.mxu0 0
        %2542 = vmatpush2.bf16.msra.mxu0 0
        %2543 = vmatprep.subr.bf16.mxu0 0
        %2544 = vmatpush2.bf16.msra.mxu0 0
        %2545 = vmatprep.subr.bf16.mxu0 0
        %2546 = vmatpush2.bf16.msra.mxu0 0
        %2547 = vmatprep.subr.bf16.mxu0 0
        %2548 = vmatpush2.bf16.msra.mxu0 0
        %2549 = vmatprep.subr.bf16.mxu0 0
        %2550 = vmatpush2.bf16.msra.mxu0 0
        %2551 = vmatprep.subr.bf16.mxu0 0
        %2552 = vmatpush2.bf16.msra.mxu0 0
        %2553 = vmatprep.mubr.bf16.mxu0 0
        %2554 = vmatmul.mubr.bf16.gmra.mxu0 %v2385
        %v2555 = vpop.f32.mrf.mxu0
        %v2556 = vadd.f32 0.0, %v2555
        %v2557 = vpop.f32.mrf.mxu0
        %v2558 = vpop.f32.mrf.mxu0
        %v2559 = vadd.f32 0.0, %v2558
        %v2560 = vpop.f32.mrf.mxu0
        %2561 = vmatprep.mubr.bf16.mxu0 0
        %2562 = vmatmul.mubr.bf16.gmra.mxu0 %v2388
        %v2563 = vpop.f32.mrf.mxu0
        %v2564 = vadd.f32 0.0, %v2563
        %v2565 = vpop.f32.mrf.mxu0
        %v2566 = vpop.f32.mrf.mxu0
        %v2567 = vadd.f32 0.0, %v2566
        %v2568 = vpop.f32.mrf.mxu0
        %2569 = vmatprep.mubr.bf16.mxu0 0
        %2570 = vmatmul.mubr.bf16.gmra.mxu0 %v2391
        %v2571 = vpop.f32.mrf.mxu0
        %v2572 = vadd.f32 0.0, %v2571
        %v2573 = vpop.f32.mrf.mxu0
        %v2574 = vpop.f32.mrf.mxu0
        %v2575 = vadd.f32 0.0, %v2574
        %v2576 = vpop.f32.mrf.mxu0
        %2577 = vmatprep.mubr.bf16.mxu0 0
        %2578 = vmatmul.mubr.bf16.gmra.mxu0 %v2394
        %v2579 = vpop.f32.mrf.mxu0
        %v2580 = vadd.f32 0.0, %v2579
        %v2581 = vpop.f32.mrf.mxu0
        %v2582 = vpop.f32.mrf.mxu0
        %v2583 = vadd.f32 0.0, %v2582
        %v2584 = vpop.f32.mrf.mxu0
        %2585 = vmatprep.mubr.bf16.mxu0 0
        %2586 = vmatmul.mubr.bf16.gmra.mxu0 %v2397
        %v2587 = vpop.f32.mrf.mxu0
        %v2588 = vadd.f32 0.0, %v2587
        %v2589 = vpop.f32.mrf.mxu0
        %v2590 = vpop.f32.mrf.mxu0
        %v2591 = vadd.f32 0.0, %v2590
        %v2592 = vpop.f32.mrf.mxu0
        %2593 = vmatprep.mubr.bf16.mxu0 0
        %2594 = vmatmul.mubr.bf16.gmra.mxu0 %v2400
        %v2595 = vpop.f32.mrf.mxu0
        %v2596 = vadd.f32 0.0, %v2595
        %v2597 = vpop.f32.mrf.mxu0
        %v2598 = vpop.f32.mrf.mxu0
        %v2599 = vadd.f32 0.0, %v2598
        %v2600 = vpop.f32.mrf.mxu0
        %2601 = vmatprep.mubr.bf16.mxu0 0
        %2602 = vmatmul.mubr.bf16.gmra.mxu0 %v2403
        %v2603 = vpop.f32.mrf.mxu0
        %v2604 = vadd.f32 0.0, %v2603
        %v2605 = vpop.f32.mrf.mxu0
        %v2606 = vpop.f32.mrf.mxu0
        %v2607 = vadd.f32 0.0, %v2606
        %v2608 = vpop.f32.mrf.mxu0
        %2609 = vmatprep.mubr.bf16.mxu0 0
        %2610 = vmatmul.mubr.bf16.gmra.mxu0 %v2406
        %v2611 = vpop.f32.mrf.mxu0
        %v2612 = vadd.f32 0.0, %v2611
        %v2613 = vpop.f32.mrf.mxu0
        %v2614 = vpop.f32.mrf.mxu0
        %v2615 = vadd.f32 0.0, %v2614
        %v2616 = vpop.f32.mrf.mxu0
        %2617 = vdwg.mxu0
        %v2634 = vunpack.c.l.b16 %v2303
        %v2635 = vunpack.c.l.b16 %v2304
        %v2636 = vunpack.c.l.b16 %v2305
        %v2637 = vunpack.c.l.b16 %v2306
        %v2638 = vunpack.c.l.b16 %v2307
        %v2639 = vunpack.c.l.b16 %v2308
        %v2640 = vunpack.c.l.b16 %v2309
        %v2641 = vunpack.c.l.b16 %v2310
        %v2642 = vunpack.c.l.b16 %v2311
        %v2643 = vunpack.c.l.b16 %v2312
        %v2644 = vunpack.c.l.b16 %v2313
        %v2645 = vunpack.c.l.b16 %v2314
        %v2646 = vunpack.c.l.b16 %v2315
        %v2647 = vunpack.c.l.b16 %v2316
        %v2648 = vunpack.c.l.b16 %v2317
        %v2649 = vunpack.c.l.b16 %v2318
        %v2650 = vpack.c.b16 %v2635, %v2634
        %v2651 = vpack.c.b16 %v2637, %v2636
        %v2652 = vpack.c.b16 %v2639, %v2638
        %v2653 = vpack.c.b16 %v2641, %v2640
        %v2654 = vpack.c.b16 %v2643, %v2642
        %v2655 = vpack.c.b16 %v2645, %v2644
        %v2656 = vpack.c.b16 %v2647, %v2646
        %v2657 = vpack.c.b16 %v2649, %v2648
        %v2674 = vunpack.c.l.b16 %v2319
        %v2675 = vunpack.c.h.b16 %v2319
        %v2676 = vunpack.c.l.b16 %v2320
        %v2677 = vunpack.c.l.b16 %v2321
        %v2678 = vunpack.c.h.b16 %v2321
        %v2679 = vunpack.c.l.b16 %v2322
        %v2680 = vunpack.c.l.b16 %v2323
        %v2681 = vunpack.c.h.b16 %v2323
        %v2682 = vunpack.c.l.b16 %v2324
        %v2683 = vunpack.c.l.b16 %v2325
        %v2684 = vunpack.c.h.b16 %v2325
        %v2685 = vunpack.c.l.b16 %v2326
        %v2686 = vunpack.c.l.b16 %v2327
        %v2687 = vunpack.c.h.b16 %v2327
        %v2688 = vunpack.c.l.b16 %v2328
        %v2689 = vunpack.c.l.b16 %v2329
        %v2690 = vunpack.c.h.b16 %v2329
        %v2691 = vunpack.c.l.b16 %v2330
        %v2692 = vunpack.c.l.b16 %v2331
        %v2693 = vunpack.c.h.b16 %v2331
        %v2694 = vunpack.c.l.b16 %v2332
        %v2695 = vunpack.c.l.b16 %v2333
        %v2696 = vunpack.c.h.b16 %v2333
        %v2697 = vunpack.c.l.b16 %v2334
        %v2698 = vpack.c.b16 %v2677, %v2674
        %v2699 = vpack.c.b16 %v2678, %v2675
        %v2700 = vpack.c.b16 %v2679, %v2676
        %v2701 = vpack.c.b16 %v2683, %v2680
        %v2702 = vpack.c.b16 %v2684, %v2681
        %v2703 = vpack.c.b16 %v2685, %v2682
        %v2704 = vpack.c.b16 %v2689, %v2686
        %v2705 = vpack.c.b16 %v2690, %v2687
        %v2706 = vpack.c.b16 %v2691, %v2688
        %v2707 = vpack.c.b16 %v2695, %v2692
        %v2708 = vpack.c.b16 %v2696, %v2693
        %v2709 = vpack.c.b16 %v2697, %v2694
        %vm2722 = vcmask 523264
        %v2724 = vsel %vm2722, %v2650, 0
        %v2727 = vsel %vm2722, %v2651, 0
        %v2730 = vsel %vm2722, %v2652, 0
        %v2733 = vsel %vm2722, %v2653, 0
        %v2736 = vsel %vm2722, %v2654, 0
        %v2739 = vsel %vm2722, %v2655, 0
        %v2742 = vsel %vm2722, %v2656, 0
        %v2745 = vsel %vm2722, %v2657, 0
        %2747 = vmatprep.subr.bf16.mxu0 0
        %2748 = vmatpush1.bf16.msra.mxu0 0
        %2749 = vmatprep.subr.bf16.mxu0 0
        %2750 = vmatpush1.bf16.msra.mxu0 0
        %2751 = vmatprep.subr.bf16.mxu0 0
        %2752 = vmatpush1.bf16.msra.mxu0 0
        %2753 = vmatprep.subr.bf16.mxu0 0
        %2754 = vmatpush1.bf16.msra.mxu0 0
        %2755 = vmatprep.subr.bf16.mxu0 %v2708
        %2756 = vmatpush1.bf16.msra.mxu0 %v2707
        %2757 = vmatprep.subr.bf16.mxu0 %v2705
        %2758 = vmatpush1.bf16.msra.mxu0 %v2704
        %2759 = vmatprep.subr.bf16.mxu0 %v2702
        %2760 = vmatpush1.bf16.msra.mxu0 %v2701
        %2761 = vmatprep.subr.bf16.mxu0 %v2699
        %2762 = vmatpush1.bf16.msra.mxu0 %v2698
        %2763 = vmatprep.subr.bf16.mxu0 0
        %2764 = vmatpush2.bf16.msra.mxu0 0
        %2765 = vmatprep.subr.bf16.mxu0 0
        %2766 = vmatpush2.bf16.msra.mxu0 0
        %2767 = vmatprep.subr.bf16.mxu0 0
        %2768 = vmatpush2.bf16.msra.mxu0 0
        %2769 = vmatprep.subr.bf16.mxu0 0
        %2770 = vmatpush2.bf16.msra.mxu0 0
        %2771 = vmatprep.subr.bf16.mxu0 0
        %2772 = vmatpush2.bf16.msra.mxu0 0
        %2773 = vmatprep.subr.bf16.mxu0 0
        %2774 = vmatpush2.bf16.msra.mxu0 0
        %2775 = vmatprep.subr.bf16.mxu0 0
        %2776 = vmatpush2.bf16.msra.mxu0 0
        %2777 = vmatprep.subr.bf16.mxu0 0
        %2778 = vmatpush2.bf16.msra.mxu0 0
        %2779 = vmatprep.mubr.bf16.mxu0 0
        %2780 = vmatmul.mubr.bf16.gmra.mxu0 %v2724
        %v2781 = vpop.f32.mrf.mxu0
        %v2782 = vadd.f32 %v2443, %v2781
        %v2783 = vpop.f32.mrf.mxu0
        %v2784 = vadd.f32 %v2445, %v2783
        %v2785 = vpop.f32.mrf.mxu0
        %v2786 = vadd.f32 %v2447, %v2785
        %v2787 = vpop.f32.mrf.mxu0
        %v2788 = vadd.f32 %v2449, %v2787
        %2789 = vmatprep.mubr.bf16.mxu0 0
        %2790 = vmatmul.mubr.bf16.gmra.mxu0 %v2727
        %v2791 = vpop.f32.mrf.mxu0
        %v2792 = vadd.f32 %v2453, %v2791
        %v2793 = vpop.f32.mrf.mxu0
        %v2794 = vadd.f32 %v2455, %v2793
        %v2795 = vpop.f32.mrf.mxu0
        %v2796 = vadd.f32 %v2457, %v2795
        %v2797 = vpop.f32.mrf.mxu0
        %v2798 = vadd.f32 %v2459, %v2797
        %2799 = vmatprep.mubr.bf16.mxu0 0
        %2800 = vmatmul.mubr.bf16.gmra.mxu0 %v2730
        %v2801 = vpop.f32.mrf.mxu0
        %v2802 = vadd.f32 %v2463, %v2801
        %v2803 = vpop.f32.mrf.mxu0
        %v2804 = vadd.f32 %v2465, %v2803
        %v2805 = vpop.f32.mrf.mxu0
        %v2806 = vadd.f32 %v2467, %v2805
        %v2807 = vpop.f32.mrf.mxu0
        %v2808 = vadd.f32 %v2469, %v2807
        %2809 = vmatprep.mubr.bf16.mxu0 0
        %2810 = vmatmul.mubr.bf16.gmra.mxu0 %v2733
        %v2811 = vpop.f32.mrf.mxu0
        %v2812 = vadd.f32 %v2473, %v2811
        %v2813 = vpop.f32.mrf.mxu0
        %v2814 = vadd.f32 %v2475, %v2813
        %v2815 = vpop.f32.mrf.mxu0
        %v2816 = vadd.f32 %v2477, %v2815
        %v2817 = vpop.f32.mrf.mxu0
        %v2818 = vadd.f32 %v2479, %v2817
        %2819 = vmatprep.mubr.bf16.mxu0 0
        %2820 = vmatmul.mubr.bf16.gmra.mxu0 %v2736
        %v2821 = vpop.f32.mrf.mxu0
        %v2822 = vadd.f32 %v2483, %v2821
        %v2823 = vpop.f32.mrf.mxu0
        %v2824 = vadd.f32 %v2485, %v2823
        %v2825 = vpop.f32.mrf.mxu0
        %v2826 = vadd.f32 %v2487, %v2825
        %v2827 = vpop.f32.mrf.mxu0
        %v2828 = vadd.f32 %v2489, %v2827
        %2829 = vmatprep.mubr.bf16.mxu0 0
        %2830 = vmatmul.mubr.bf16.gmra.mxu0 %v2739
        %v2831 = vpop.f32.mrf.mxu0
        %v2832 = vadd.f32 %v2493, %v2831
        %v2833 = vpop.f32.mrf.mxu0
        %v2834 = vadd.f32 %v2495, %v2833
        %v2835 = vpop.f32.mrf.mxu0
        %v2836 = vadd.f32 %v2497, %v2835
        %v2837 = vpop.f32.mrf.mxu0
        %v2838 = vadd.f32 %v2499, %v2837
        %2839 = vmatprep.mubr.bf16.mxu0 0
        %2840 = vmatmul.mubr.bf16.gmra.mxu0 %v2742
        %v2841 = vpop.f32.mrf.mxu0
        %v2842 = vadd.f32 %v2503, %v2841
        %v2843 = vpop.f32.mrf.mxu0
        %v2844 = vadd.f32 %v2505, %v2843
        %v2845 = vpop.f32.mrf.mxu0
        %v2846 = vadd.f32 %v2507, %v2845
        %v2847 = vpop.f32.mrf.mxu0
        %v2848 = vadd.f32 %v2509, %v2847
        %2849 = vmatprep.mubr.bf16.mxu0 0
        %2850 = vmatmul.mubr.bf16.gmra.mxu0 %v2745
        %v2851 = vpop.f32.mrf.mxu0
        %v2852 = vadd.f32 %v2513, %v2851
        %v2853 = vpop.f32.mrf.mxu0
        %v2854 = vadd.f32 %v2515, %v2853
        %v2855 = vpop.f32.mrf.mxu0
        %v2856 = vadd.f32 %v2517, %v2855
        %v2857 = vpop.f32.mrf.mxu0
        %v2858 = vadd.f32 %v2519, %v2857
        %2859 = vdwg.mxu0
        %2860 = vmatprep.subr.bf16.mxu0 0
        %2861 = vmatpush1.bf16.msra.mxu0 0
        %2862 = vmatprep.subr.bf16.mxu0 0
        %2863 = vmatpush1.bf16.msra.mxu0 0
        %2864 = vmatprep.subr.bf16.mxu0 0
        %2865 = vmatpush1.bf16.msra.mxu0 0
        %2866 = vmatprep.subr.bf16.mxu0 0
        %2867 = vmatpush1.bf16.msra.mxu0 0
        %2868 = vmatprep.subr.bf16.mxu0 0
        %2869 = vmatpush1.bf16.msra.mxu0 %v2709
        %2870 = vmatprep.subr.bf16.mxu0 0
        %2871 = vmatpush1.bf16.msra.mxu0 %v2706
        %2872 = vmatprep.subr.bf16.mxu0 0
        %2873 = vmatpush1.bf16.msra.mxu0 %v2703
        %2874 = vmatprep.subr.bf16.mxu0 0
        %2875 = vmatpush1.bf16.msra.mxu0 %v2700
        %2876 = vmatprep.subr.bf16.mxu0 0
        %2877 = vmatpush2.bf16.msra.mxu0 0
        %2878 = vmatprep.subr.bf16.mxu0 0
        %2879 = vmatpush2.bf16.msra.mxu0 0
        %2880 = vmatprep.subr.bf16.mxu0 0
        %2881 = vmatpush2.bf16.msra.mxu0 0
        %2882 = vmatprep.subr.bf16.mxu0 0
        %2883 = vmatpush2.bf16.msra.mxu0 0
        %2884 = vmatprep.subr.bf16.mxu0 0
        %2885 = vmatpush2.bf16.msra.mxu0 0
        %2886 = vmatprep.subr.bf16.mxu0 0
        %2887 = vmatpush2.bf16.msra.mxu0 0
        %2888 = vmatprep.subr.bf16.mxu0 0
        %2889 = vmatpush2.bf16.msra.mxu0 0
        %2890 = vmatprep.subr.bf16.mxu0 0
        %2891 = vmatpush2.bf16.msra.mxu0 0
        %2892 = vmatprep.mubr.bf16.mxu0 0
        %2893 = vmatmul.mubr.bf16.gmra.mxu0 %v2724
        %v2894 = vpop.f32.mrf.mxu0
        %v2895 = vadd.f32 %v2556, %v2894
        %v2896 = vpop.f32.mrf.mxu0
        %v2897 = vpop.f32.mrf.mxu0
        %v2898 = vadd.f32 %v2559, %v2897
        %v2899 = vpop.f32.mrf.mxu0
        %2900 = vmatprep.mubr.bf16.mxu0 0
        %2901 = vmatmul.mubr.bf16.gmra.mxu0 %v2727
        %v2902 = vpop.f32.mrf.mxu0
        %v2903 = vadd.f32 %v2564, %v2902
        %v2904 = vpop.f32.mrf.mxu0
        %v2905 = vpop.f32.mrf.mxu0
        %v2906 = vadd.f32 %v2567, %v2905
        %v2907 = vpop.f32.mrf.mxu0
        %2908 = vmatprep.mubr.bf16.mxu0 0
        %2909 = vmatmul.mubr.bf16.gmra.mxu0 %v2730
        %v2910 = vpop.f32.mrf.mxu0
        %v2911 = vadd.f32 %v2572, %v2910
        %v2912 = vpop.f32.mrf.mxu0
        %v2913 = vpop.f32.mrf.mxu0
        %v2914 = vadd.f32 %v2575, %v2913
        %v2915 = vpop.f32.mrf.mxu0
        %2916 = vmatprep.mubr.bf16.mxu0 0
        %2917 = vmatmul.mubr.bf16.gmra.mxu0 %v2733
        %v2918 = vpop.f32.mrf.mxu0
        %v2919 = vadd.f32 %v2580, %v2918
        %v2920 = vpop.f32.mrf.mxu0
        %v2921 = vpop.f32.mrf.mxu0
        %v2922 = vadd.f32 %v2583, %v2921
        %v2923 = vpop.f32.mrf.mxu0
        %2924 = vmatprep.mubr.bf16.mxu0 0
        %2925 = vmatmul.mubr.bf16.gmra.mxu0 %v2736
        %v2926 = vpop.f32.mrf.mxu0
        %v2927 = vadd.f32 %v2588, %v2926
        %v2928 = vpop.f32.mrf.mxu0
        %v2929 = vpop.f32.mrf.mxu0
        %v2930 = vadd.f32 %v2591, %v2929
        %v2931 = vpop.f32.mrf.mxu0
        %2932 = vmatprep.mubr.bf16.mxu0 0
        %2933 = vmatmul.mubr.bf16.gmra.mxu0 %v2739
        %v2934 = vpop.f32.mrf.mxu0
        %v2935 = vadd.f32 %v2596, %v2934
        %v2936 = vpop.f32.mrf.mxu0
        %v2937 = vpop.f32.mrf.mxu0
        %v2938 = vadd.f32 %v2599, %v2937
        %v2939 = vpop.f32.mrf.mxu0
        %2940 = vmatprep.mubr.bf16.mxu0 0
        %2941 = vmatmul.mubr.bf16.gmra.mxu0 %v2742
        %v2942 = vpop.f32.mrf.mxu0
        %v2943 = vadd.f32 %v2604, %v2942
        %v2944 = vpop.f32.mrf.mxu0
        %v2945 = vpop.f32.mrf.mxu0
        %v2946 = vadd.f32 %v2607, %v2945
        %v2947 = vpop.f32.mrf.mxu0
        %2948 = vmatprep.mubr.bf16.mxu0 0
        %2949 = vmatmul.mubr.bf16.gmra.mxu0 %v2745
        %v2950 = vpop.f32.mrf.mxu0
        %v2951 = vadd.f32 %v2612, %v2950
        %v2952 = vpop.f32.mrf.mxu0
        %v2953 = vpop.f32.mrf.mxu0
        %v2954 = vadd.f32 %v2615, %v2953
        %v2955 = vpop.f32.mrf.mxu0
        %2956 = vdwg.mxu0
        %v2957 = vld [vmem:[%s8] sm:$0x7]
        %v2959 = vlaneseq
        %v2960 = vshrl.u32 %v2959, 7
        %v2961 = vsub.s32 0, %v2960
        %v2962 = vrot.slane %v2957, %v2961
        %v2963 = vlaneseq
        %v2964 = vshrl.u32 %v2963, 7
        %v2965 = vsub.s32 1, %v2964
        %v2966 = vrot.slane %v2957, %v2965
        %v2967 = vlaneseq
        %v2968 = vshrl.u32 %v2967, 7
        %v2969 = vsub.s32 2, %v2968
        %v2970 = vrot.slane %v2957, %v2969
        %v2974 = vadd.f32 %v2782, %v2962
        %v2975 = vadd.f32 %v2784, %v2966
        %v2976 = vadd.f32 %v2895, %v2970
        %v2977 = vadd.f32 %v2786, %v2962
        %v2978 = vadd.f32 %v2788, %v2966
        %v2979 = vadd.f32 %v2898, %v2970
        %v2980 = vadd.f32 %v2792, %v2962
        %v2981 = vadd.f32 %v2794, %v2966
        %v2982 = vadd.f32 %v2903, %v2970
        %v2983 = vadd.f32 %v2796, %v2962
        %v2984 = vadd.f32 %v2798, %v2966
        %v2985 = vadd.f32 %v2906, %v2970
        %v2986 = vadd.f32 %v2802, %v2962
        %v2987 = vadd.f32 %v2804, %v2966
        %v2988 = vadd.f32 %v2911, %v2970
        %v2989 = vadd.f32 %v2806, %v2962
        %v2990 = vadd.f32 %v2808, %v2966
        %v2991 = vadd.f32 %v2914, %v2970
        %v2992 = vadd.f32 %v2812, %v2962
        %v2993 = vadd.f32 %v2814, %v2966
        %v2994 = vadd.f32 %v2919, %v2970
        %v2995 = vadd.f32 %v2816, %v2962
        %v2996 = vadd.f32 %v2818, %v2966
        %v2997 = vadd.f32 %v2922, %v2970
        %v2998 = vadd.f32 %v2822, %v2962
        %v2999 = vadd.f32 %v2824, %v2966
        %v3000 = vadd.f32 %v2927, %v2970
        %v3001 = vadd.f32 %v2826, %v2962
        %v3002 = vadd.f32 %v2828, %v2966
        %v3003 = vadd.f32 %v2930, %v2970
        %v3004 = vadd.f32 %v2832, %v2962
        %v3005 = vadd.f32 %v2834, %v2966
        %v3006 = vadd.f32 %v2935, %v2970
        %v3007 = vadd.f32 %v2836, %v2962
        %v3008 = vadd.f32 %v2838, %v2966
        %v3009 = vadd.f32 %v2938, %v2970
        %v3010 = vadd.f32 %v2842, %v2962
        %v3011 = vadd.f32 %v2844, %v2966
        %v3012 = vadd.f32 %v2943, %v2970
        %v3013 = vadd.f32 %v2846, %v2962
        %v3014 = vadd.f32 %v2848, %v2966
        %v3015 = vadd.f32 %v2946, %v2970
        %v3016 = vadd.f32 %v2852, %v2962
        %v3017 = vadd.f32 %v2854, %v2966
        %v3018 = vadd.f32 %v2951, %v2970
        %v3019 = vadd.f32 %v2856, %v2962
        %v3020 = vadd.f32 %v2858, %v2966
        %v3021 = vadd.f32 %v2954, %v2970
        %v3022 = vld [vmem:[%s525] sm:$0xff]
        %v3023 = vld [vmem:[%s525 + $0x8] sm:$0xff]
        %v3024 = vld [vmem:[%s525 + $0x10] sm:$0xff]
        %v3025 = vld [vmem:[%s525 + $0x18] sm:$0xff]
        %v3026 = vld [vmem:[%s525 + $0x20] sm:$0xff]
        %v3027 = vld [vmem:[%s525 + $0x28] sm:$0xff]
        %v3028 = vld [vmem:[%s525 + $0x30] sm:$0xff]
        %v3029 = vld [vmem:[%s525 + $0x38] sm:$0xff]
        %v3030 = vld [vmem:[%s525 + $0x40] sm:$0xff]
        %v3031 = vld [vmem:[%s525 + $0x48] sm:$0xff]
        %v3032 = vld [vmem:[%s525 + $0x50] sm:$0xff]
        %v3033 = vld [vmem:[%s525 + $0x58] sm:$0xff]
        %v3034 = vld [vmem:[%s525 + $0x60] sm:$0xff]
        %v3035 = vld [vmem:[%s525 + $0x68] sm:$0xff]
        %v3036 = vld [vmem:[%s525 + $0x70] sm:$0xff]
        %v3037 = vld [vmem:[%s525 + $0x78] sm:$0xff]
        %v3038 = vpack.c.bf16 %v3023, %v3022
        %v3039 = vpack.c.bf16 %v3025, %v3024
        %v3040 = vpack.c.bf16 %v3027, %v3026
        %v3041 = vpack.c.bf16 %v3029, %v3028
        %v3042 = vpack.c.bf16 %v3031, %v3030
        %v3043 = vpack.c.bf16 %v3033, %v3032
        %v3044 = vpack.c.bf16 %v3035, %v3034
        %v3045 = vpack.c.bf16 %v3037, %v3036
        %v3046 = vld [vmem:[%s7] sm:$0xff]
        %v3047 = vld [vmem:[%s7 + $0x8] sm:$0xf]
        %v3048 = vld [vmem:[%s7 + $0xc] sm:$0xff]
        %v3049 = vld [vmem:[%s7 + $0x14] sm:$0xf]
        %v3050 = vld [vmem:[%s7 + $0x18] sm:$0xff]
        %v3051 = vld [vmem:[%s7 + $0x20] sm:$0xf]
        %v3052 = vld [vmem:[%s7 + $0x24] sm:$0xff]
        %v3053 = vld [vmem:[%s7 + $0x2c] sm:$0xf]
        %v3054 = vld [vmem:[%s7 + $0x30] sm:$0xff]
        %v3055 = vld [vmem:[%s7 + $0x38] sm:$0xf]
        %v3056 = vld [vmem:[%s7 + $0x3c] sm:$0xff]
        %v3057 = vld [vmem:[%s7 + $0x44] sm:$0xf]
        %v3058 = vld [vmem:[%s7 + $0x48] sm:$0xff]
        %v3059 = vld [vmem:[%s7 + $0x50] sm:$0xf]
        %v3060 = vld [vmem:[%s7 + $0x54] sm:$0xff]
        %v3061 = vld [vmem:[%s7 + $0x5c] sm:$0xf]
        %v3062 = vld [vmem:[%s7 + $0x60] sm:$0xff]
        %v3063 = vld [vmem:[%s7 + $0x68] sm:$0xf]
        %v3064 = vld [vmem:[%s7 + $0x6c] sm:$0xff]
        %v3065 = vld [vmem:[%s7 + $0x74] sm:$0xf]
        %v3066 = vld [vmem:[%s7 + $0x78] sm:$0xff]
        %v3067 = vld [vmem:[%s7 + $0x80] sm:$0xf]
        %v3068 = vld [vmem:[%s7 + $0x84] sm:$0xff]
        %v3069 = vld [vmem:[%s7 + $0x8c] sm:$0xf]
        %v3070 = vld [vmem:[%s7 + $0x90] sm:$0xff]
        %v3071 = vld [vmem:[%s7 + $0x98] sm:$0xf]
        %v3072 = vld [vmem:[%s7 + $0x9c] sm:$0xff]
        %v3073 = vld [vmem:[%s7 + $0xa4] sm:$0xf]
        %v3074 = vld [vmem:[%s7 + $0xa8] sm:$0xff]
        %v3075 = vld [vmem:[%s7 + $0xb0] sm:$0xf]
        %v3076 = vld [vmem:[%s7 + $0xb4] sm:$0xff]
        %v3077 = vld [vmem:[%s7 + $0xbc] sm:$0xf]
        %v3078 = vld [vmem:[%s9] sm:$0x7]
        %v3080 = vlaneseq
        %v3081 = vshrl.u32 %v3080, 7
        %v3082 = vsub.s32 0, %v3081
        %v3083 = vrot.slane %v3078, %v3082
        %v3084 = vlaneseq
        %v3085 = vshrl.u32 %v3084, 7
        %v3086 = vsub.s32 1, %v3085
        %v3087 = vrot.slane %v3078, %v3086
        %v3088 = vlaneseq
        %v3089 = vshrl.u32 %v3088, 7
        %v3090 = vsub.s32 2, %v3089
        %v3091 = vrot.slane %v3078, %v3090
        %v3127 = vunpack.c.l.b16 %v3046
        %v3128 = vunpack.c.h.b16 %v3046
        %v3129 = vunpack.c.l.b16 %v3047
        %v3130 = vunpack.c.l.b16 %v3048
        %v3131 = vunpack.c.h.b16 %v3048
        %v3132 = vunpack.c.l.b16 %v3049
        %v3133 = vunpack.c.l.b16 %v3050
        %v3134 = vunpack.c.h.b16 %v3050
        %v3135 = vunpack.c.l.b16 %v3051
        %v3136 = vunpack.c.l.b16 %v3052
        %v3137 = vunpack.c.h.b16 %v3052
        %v3138 = vunpack.c.l.b16 %v3053
        %v3139 = vunpack.c.l.b16 %v3054
        %v3140 = vunpack.c.h.b16 %v3054
        %v3141 = vunpack.c.l.b16 %v3055
        %v3142 = vunpack.c.l.b16 %v3056
        %v3143 = vunpack.c.h.b16 %v3056
        %v3144 = vunpack.c.l.b16 %v3057
        %v3145 = vunpack.c.l.b16 %v3058
        %v3146 = vunpack.c.h.b16 %v3058
        %v3147 = vunpack.c.l.b16 %v3059
        %v3148 = vunpack.c.l.b16 %v3060
        %v3149 = vunpack.c.h.b16 %v3060
        %v3150 = vunpack.c.l.b16 %v3061
        %v3151 = vunpack.c.l.b16 %v3062
        %v3152 = vunpack.c.h.b16 %v3062
        %v3153 = vunpack.c.l.b16 %v3063
        %v3154 = vunpack.c.l.b16 %v3064
        %v3155 = vunpack.c.h.b16 %v3064
        %v3156 = vunpack.c.l.b16 %v3065
        %v3157 = vunpack.c.l.b16 %v3066
        %v3158 = vunpack.c.h.b16 %v3066
        %v3159 = vunpack.c.l.b16 %v3067
        %v3160 = vunpack.c.l.b16 %v3068
        %v3161 = vunpack.c.h.b16 %v3068
        %v3162 = vunpack.c.l.b16 %v3069
        %v3163 = vunpack.c.l.b16 %v3070
        %v3164 = vunpack.c.h.b16 %v3070
        %v3165 = vunpack.c.l.b16 %v3071
        %v3166 = vunpack.c.l.b16 %v3072
        %v3167 = vunpack.c.h.b16 %v3072
        %v3168 = vunpack.c.l.b16 %v3073
        %v3169 = vunpack.c.l.b16 %v3074
        %v3170 = vunpack.c.h.b16 %v3074
        %v3171 = vunpack.c.l.b16 %v3075
        %v3172 = vunpack.c.l.b16 %v3076
        %v3173 = vunpack.c.h.b16 %v3076
        %v3174 = vunpack.c.l.b16 %v3077
        %v3175 = vpack.c.b16 %v3130, %v3127
        %v3176 = vpack.c.b16 %v3131, %v3128
        %v3177 = vpack.c.b16 %v3132, %v3129
        %v3178 = vpack.c.b16 %v3136, %v3133
        %v3179 = vpack.c.b16 %v3137, %v3134
        %v3180 = vpack.c.b16 %v3138, %v3135
        %v3181 = vpack.c.b16 %v3142, %v3139
        %v3182 = vpack.c.b16 %v3143, %v3140
        %v3183 = vpack.c.b16 %v3144, %v3141
        %v3184 = vpack.c.b16 %v3148, %v3145
        %v3185 = vpack.c.b16 %v3149, %v3146
        %v3186 = vpack.c.b16 %v3150, %v3147
        %v3187 = vpack.c.b16 %v3154, %v3151
        %v3188 = vpack.c.b16 %v3155, %v3152
        %v3189 = vpack.c.b16 %v3156, %v3153
        %v3190 = vpack.c.b16 %v3160, %v3157
        %v3191 = vpack.c.b16 %v3161, %v3158
        %v3192 = vpack.c.b16 %v3162, %v3159
        %v3193 = vpack.c.b16 %v3166, %v3163
        %v3194 = vpack.c.b16 %v3167, %v3164
        %v3195 = vpack.c.b16 %v3168, %v3165
        %v3196 = vpack.c.b16 %v3172, %v3169
        %v3197 = vpack.c.b16 %v3173, %v3170
        %v3198 = vpack.c.b16 %v3174, %v3171
        %3223 = vmatprep.subr.bf16.mxu0 %v3197
        %3224 = vmatpush1.bf16.msra.mxu0 %v3196
        %3225 = vmatprep.subr.bf16.mxu0 %v3194
        %3226 = vmatpush1.bf16.msra.mxu0 %v3193
        %3227 = vmatprep.subr.bf16.mxu0 %v3191
        %3228 = vmatpush1.bf16.msra.mxu0 %v3190
        %3229 = vmatprep.subr.bf16.mxu0 %v3188
        %3230 = vmatpush1.bf16.msra.mxu0 %v3187
        %3231 = vmatprep.subr.bf16.mxu0 %v3185
        %3232 = vmatpush1.bf16.msra.mxu0 %v3184
        %3233 = vmatprep.subr.bf16.mxu0 %v3182
        %3234 = vmatpush1.bf16.msra.mxu0 %v3181
        %3235 = vmatprep.subr.bf16.mxu0 %v3179
        %3236 = vmatpush1.bf16.msra.mxu0 %v3178
        %3237 = vmatprep.subr.bf16.mxu0 %v3176
        %3238 = vmatpush1.bf16.msra.mxu0 %v3175
        %3239 = vmatprep.subr.bf16.mxu0 0
        %3240 = vmatpush2.bf16.msra.mxu0 0
        %3241 = vmatprep.subr.bf16.mxu0 0
        %3242 = vmatpush2.bf16.msra.mxu0 0
        %3243 = vmatprep.subr.bf16.mxu0 0
        %3244 = vmatpush2.bf16.msra.mxu0 0
        %3245 = vmatprep.subr.bf16.mxu0 0
        %3246 = vmatpush2.bf16.msra.mxu0 0
        %3247 = vmatprep.subr.bf16.mxu0 0
        %3248 = vmatpush2.bf16.msra.mxu0 0
        %3249 = vmatprep.subr.bf16.mxu0 0
        %3250 = vmatpush2.bf16.msra.mxu0 0
        %3251 = vmatprep.subr.bf16.mxu0 0
        %3252 = vmatpush2.bf16.msra.mxu0 0
        %3253 = vmatprep.subr.bf16.mxu0 0
        %3254 = vmatpush2.bf16.msra.mxu0 0
        %3255 = vmatprep.mubr.bf16.mxu0 0
        %3256 = vmatmul.mubr.bf16.gmra.mxu0 %v3038
        %v3257 = vpop.f32.mrf.mxu0
        %v3258 = vadd.f32 %v3083, %v3257
        %v3259 = vpop.f32.mrf.mxu0
        %v3260 = vadd.f32 %v3087, %v3259
        %v3261 = vpop.f32.mrf.mxu0
        %v3262 = vadd.f32 %v3083, %v3261
        %v3263 = vpop.f32.mrf.mxu0
        %v3264 = vadd.f32 %v3087, %v3263
        %3265 = vmatprep.mubr.bf16.mxu0 0
        %3266 = vmatmul.mubr.bf16.gmra.mxu0 %v3039
        %v3267 = vpop.f32.mrf.mxu0
        %v3268 = vadd.f32 %v3083, %v3267
        %v3269 = vpop.f32.mrf.mxu0
        %v3270 = vadd.f32 %v3087, %v3269
        %v3271 = vpop.f32.mrf.mxu0
        %v3272 = vadd.f32 %v3083, %v3271
        %v3273 = vpop.f32.mrf.mxu0
        %v3274 = vadd.f32 %v3087, %v3273
        %3275 = vmatprep.mubr.bf16.mxu0 0
        %3276 = vmatmul.mubr.bf16.gmra.mxu0 %v3040
        %v3277 = vpop.f32.mrf.mxu0
        %v3278 = vadd.f32 %v3083, %v3277
        %v3279 = vpop.f32.mrf.mxu0
        %v3280 = vadd.f32 %v3087, %v3279
        %v3281 = vpop.f32.mrf.mxu0
        %v3282 = vadd.f32 %v3083, %v3281
        %v3283 = vpop.f32.mrf.mxu0
        %v3284 = vadd.f32 %v3087, %v3283
        %3285 = vmatprep.mubr.bf16.mxu0 0
        %3286 = vmatmul.mubr.bf16.gmra.mxu0 %v3041
        %v3287 = vpop.f32.mrf.mxu0
        %v3288 = vadd.f32 %v3083, %v3287
        %v3289 = vpop.f32.mrf.mxu0
        %v3290 = vadd.f32 %v3087, %v3289
        %v3291 = vpop.f32.mrf.mxu0
        %v3292 = vadd.f32 %v3083, %v3291
        %v3293 = vpop.f32.mrf.mxu0
        %v3294 = vadd.f32 %v3087, %v3293
        %3295 = vmatprep.mubr.bf16.mxu0 0
        %3296 = vmatmul.mubr.bf16.gmra.mxu0 %v3042
        %v3297 = vpop.f32.mrf.mxu0
        %v3298 = vadd.f32 %v3083, %v3297
        %v3299 = vpop.f32.mrf.mxu0
        %v3300 = vadd.f32 %v3087, %v3299
        %v3301 = vpop.f32.mrf.mxu0
        %v3302 = vadd.f32 %v3083, %v3301
        %v3303 = vpop.f32.mrf.mxu0
        %v3304 = vadd.f32 %v3087, %v3303
        %3305 = vmatprep.mubr.bf16.mxu0 0
        %3306 = vmatmul.mubr.bf16.gmra.mxu0 %v3043
        %v3307 = vpop.f32.mrf.mxu0
        %v3308 = vadd.f32 %v3083, %v3307
        %v3309 = vpop.f32.mrf.mxu0
        %v3310 = vadd.f32 %v3087, %v3309
        %v3311 = vpop.f32.mrf.mxu0
        %v3312 = vadd.f32 %v3083, %v3311
        %v3313 = vpop.f32.mrf.mxu0
        %v3314 = vadd.f32 %v3087, %v3313
        %3315 = vmatprep.mubr.bf16.mxu0 0
        %3316 = vmatmul.mubr.bf16.gmra.mxu0 %v3044
        %v3317 = vpop.f32.mrf.mxu0
        %v3318 = vadd.f32 %v3083, %v3317
        %v3319 = vpop.f32.mrf.mxu0
        %v3320 = vadd.f32 %v3087, %v3319
        %v3321 = vpop.f32.mrf.mxu0
        %v3322 = vadd.f32 %v3083, %v3321
        %v3323 = vpop.f32.mrf.mxu0
        %v3324 = vadd.f32 %v3087, %v3323
        %3325 = vmatprep.mubr.bf16.mxu0 0
        %3326 = vmatmul.mubr.bf16.gmra.mxu0 %v3045
        %v3327 = vpop.f32.mrf.mxu0
        %v3328 = vadd.f32 %v3083, %v3327
        %v3329 = vpop.f32.mrf.mxu0
        %v3330 = vadd.f32 %v3087, %v3329
        %v3331 = vpop.f32.mrf.mxu0
        %v3332 = vadd.f32 %v3083, %v3331
        %v3333 = vpop.f32.mrf.mxu0
        %v3334 = vadd.f32 %v3087, %v3333
        %3335 = vdwg.mxu0
        %3336 = vmatprep.subr.bf16.mxu0 0
        %3337 = vmatpush1.bf16.msra.mxu0 %v3198
        %3338 = vmatprep.subr.bf16.mxu0 0
        %3339 = vmatpush1.bf16.msra.mxu0 %v3195
        %3340 = vmatprep.subr.bf16.mxu0 0
        %3341 = vmatpush1.bf16.msra.mxu0 %v3192
        %3342 = vmatprep.subr.bf16.mxu0 0
        %3343 = vmatpush1.bf16.msra.mxu0 %v3189
        %3344 = vmatprep.subr.bf16.mxu0 0
        %3345 = vmatpush1.bf16.msra.mxu0 %v3186
        %3346 = vmatprep.subr.bf16.mxu0 0
        %3347 = vmatpush1.bf16.msra.mxu0 %v3183
        %3348 = vmatprep.subr.bf16.mxu0 0
        %3349 = vmatpush1.bf16.msra.mxu0 %v3180
        %3350 = vmatprep.subr.bf16.mxu0 0
        %3351 = vmatpush1.bf16.msra.mxu0 %v3177
        %3352 = vmatprep.subr.bf16.mxu0 0
        %3353 = vmatpush2.bf16.msra.mxu0 0
        %3354 = vmatprep.subr.bf16.mxu0 0
        %3355 = vmatpush2.bf16.msra.mxu0 0
        %3356 = vmatprep.subr.bf16.mxu0 0
        %3357 = vmatpush2.bf16.msra.mxu0 0
        %3358 = vmatprep.subr.bf16.mxu0 0
        %3359 = vmatpush2.bf16.msra.mxu0 0
        %3360 = vmatprep.subr.bf16.mxu0 0
        %3361 = vmatpush2.bf16.msra.mxu0 0
        %3362 = vmatprep.subr.bf16.mxu0 0
        %3363 = vmatpush2.bf16.msra.mxu0 0
        %3364 = vmatprep.subr.bf16.mxu0 0
        %3365 = vmatpush2.bf16.msra.mxu0 0
        %3366 = vmatprep.subr.bf16.mxu0 0
        %3367 = vmatpush2.bf16.msra.mxu0 0
        %3368 = vmatprep.mubr.bf16.mxu0 0
        %3369 = vmatmul.mubr.bf16.gmra.mxu0 %v3038
        %v3370 = vpop.f32.mrf.mxu0
        %v3371 = vadd.f32 %v3091, %v3370
        %v3372 = vpop.f32.mrf.mxu0
        %v3373 = vpop.f32.mrf.mxu0
        %v3374 = vadd.f32 %v3091, %v3373
        %v3375 = vpop.f32.mrf.mxu0
        %3376 = vmatprep.mubr.bf16.mxu0 0
        %3377 = vmatmul.mubr.bf16.gmra.mxu0 %v3039
        %v3378 = vpop.f32.mrf.mxu0
        %v3379 = vadd.f32 %v3091, %v3378
        %v3380 = vpop.f32.mrf.mxu0
        %v3381 = vpop.f32.mrf.mxu0
        %v3382 = vadd.f32 %v3091, %v3381
        %v3383 = vpop.f32.mrf.mxu0
        %3384 = vmatprep.mubr.bf16.mxu0 0
        %3385 = vmatmul.mubr.bf16.gmra.mxu0 %v3040
        %v3386 = vpop.f32.mrf.mxu0
        %v3387 = vadd.f32 %v3091, %v3386
        %v3388 = vpop.f32.mrf.mxu0
        %v3389 = vpop.f32.mrf.mxu0
        %v3390 = vadd.f32 %v3091, %v3389
        %v3391 = vpop.f32.mrf.mxu0
        %3392 = vmatprep.mubr.bf16.mxu0 0
        %3393 = vmatmul.mubr.bf16.gmra.mxu0 %v3041
        %v3394 = vpop.f32.mrf.mxu0
        %v3395 = vadd.f32 %v3091, %v3394
        %v3396 = vpop.f32.mrf.mxu0
        %v3397 = vpop.f32.mrf.mxu0
        %v3398 = vadd.f32 %v3091, %v3397
        %v3399 = vpop.f32.mrf.mxu0
        %3400 = vmatprep.mubr.bf16.mxu0 0
        %3401 = vmatmul.mubr.bf16.gmra.mxu0 %v3042
        %v3402 = vpop.f32.mrf.mxu0
        %v3403 = vadd.f32 %v3091, %v3402
        %v3404 = vpop.f32.mrf.mxu0
        %v3405 = vpop.f32.mrf.mxu0
        %v3406 = vadd.f32 %v3091, %v3405
        %v3407 = vpop.f32.mrf.mxu0
        %3408 = vmatprep.mubr.bf16.mxu0 0
        %3409 = vmatmul.mubr.bf16.gmra.mxu0 %v3043
        %v3410 = vpop.f32.mrf.mxu0
        %v3411 = vadd.f32 %v3091, %v3410
        %v3412 = vpop.f32.mrf.mxu0
        %v3413 = vpop.f32.mrf.mxu0
        %v3414 = vadd.f32 %v3091, %v3413
        %v3415 = vpop.f32.mrf.mxu0
        %3416 = vmatprep.mubr.bf16.mxu0 0
        %3417 = vmatmul.mubr.bf16.gmra.mxu0 %v3044
        %v3418 = vpop.f32.mrf.mxu0
        %v3419 = vadd.f32 %v3091, %v3418
        %v3420 = vpop.f32.mrf.mxu0
        %v3421 = vpop.f32.mrf.mxu0
        %v3422 = vadd.f32 %v3091, %v3421
        %v3423 = vpop.f32.mrf.mxu0
        %3424 = vmatprep.mubr.bf16.mxu0 0
        %3425 = vmatmul.mubr.bf16.gmra.mxu0 %v3045
        %v3426 = vpop.f32.mrf.mxu0
        %v3427 = vadd.f32 %v3091, %v3426
        %v3428 = vpop.f32.mrf.mxu0
        %v3429 = vpop.f32.mrf.mxu0
        %v3430 = vadd.f32 %v3091, %v3429
        %v3431 = vpop.f32.mrf.mxu0
        %3432 = vdwg.mxu0
        %v3433 = vadd.f32 %v2974, %v3258
        %v3434 = vadd.f32 %v2977, %v3262
        %v3435 = vadd.f32 %v2980, %v3268
        %v3436 = vadd.f32 %v2983, %v3272
        %v3437 = vadd.f32 %v2986, %v3278
        %v3438 = vadd.f32 %v2989, %v3282
        %v3439 = vadd.f32 %v2992, %v3288
        %v3440 = vadd.f32 %v2995, %v3292
        %v3441 = vadd.f32 %v2998, %v3298
        %v3442 = vadd.f32 %v3001, %v3302
        %v3443 = vadd.f32 %v3004, %v3308
        %v3444 = vadd.f32 %v3007, %v3312
        %v3445 = vadd.f32 %v3010, %v3318
        %v3446 = vadd.f32 %v3013, %v3322
        %v3447 = vadd.f32 %v3016, %v3328
        %v3448 = vadd.f32 %v3019, %v3332
        %v3449 = vxor.u32 %v3433, 2147483648
        %v3450 = vxor.u32 %v3434, 2147483648
        %v3451 = vxor.u32 %v3435, 2147483648
        %v3452 = vxor.u32 %v3436, 2147483648
        %v3453 = vxor.u32 %v3437, 2147483648
        %v3454 = vxor.u32 %v3438, 2147483648
        %v3455 = vxor.u32 %v3439, 2147483648
        %v3456 = vxor.u32 %v3440, 2147483648
        %v3457 = vxor.u32 %v3441, 2147483648
        %v3458 = vxor.u32 %v3442, 2147483648
        %v3459 = vxor.u32 %v3443, 2147483648
        %v3460 = vxor.u32 %v3444, 2147483648
        %v3461 = vxor.u32 %v3445, 2147483648
        %v3462 = vxor.u32 %v3446, 2147483648
        %v3463 = vxor.u32 %v3447, 2147483648
        %v3464 = vxor.u32 %v3448, 2147483648
        %v3465 = vmul.f32 %v3449, 1.442695
        %v3466 = vpow.pop %v3465
        %v3467 = vmul.f32 %v3450, 1.442695
        %v3468 = vpow.pop %v3467
        %v3469 = vmul.f32 %v3451, 1.442695
        %v3470 = vpow.pop %v3469
        %v3471 = vmul.f32 %v3452, 1.442695
        %v3472 = vpow.pop %v3471
        %v3473 = vmul.f32 %v3453, 1.442695
        %v3474 = vpow.pop %v3473
        %v3475 = vmul.f32 %v3454, 1.442695
        %v3476 = vpow.pop %v3475
        %v3477 = vmul.f32 %v3455, 1.442695
        %v3478 = vpow.pop %v3477
        %v3479 = vmul.f32 %v3456, 1.442695
        %v3480 = vpow.pop %v3479
        %v3481 = vmul.f32 %v3457, 1.442695
        %v3482 = vpow.pop %v3481
        %v3483 = vmul.f32 %v3458, 1.442695
        %v3484 = vpow.pop %v3483
        %v3485 = vmul.f32 %v3459, 1.442695
        %v3486 = vpow.pop %v3485
        %v3487 = vmul.f32 %v3460, 1.442695
        %v3488 = vpow.pop %v3487
        %v3489 = vmul.f32 %v3461, 1.442695
        %v3490 = vpow.pop %v3489
        %v3491 = vmul.f32 %v3462, 1.442695
        %v3492 = vpow.pop %v3491
        %v3493 = vmul.f32 %v3463, 1.442695
        %v3494 = vpow.pop %v3493
        %v3495 = vmul.f32 %v3464, 1.442695
        %v3496 = vpow.pop %v3495
        %v3497 = vadd.f32 %v3466, 1.0
        %v3498 = vadd.f32 %v3468, 1.0
        %v3499 = vadd.f32 %v3470, 1.0
        %v3500 = vadd.f32 %v3472, 1.0
        %v3501 = vadd.f32 %v3474, 1.0
        %v3502 = vadd.f32 %v3476, 1.0
        %v3503 = vadd.f32 %v3478, 1.0
        %v3504 = vadd.f32 %v3480, 1.0
        %v3505 = vadd.f32 %v3482, 1.0
        %v3506 = vadd.f32 %v3484, 1.0
        %v3507 = vadd.f32 %v3486, 1.0
        %v3508 = vadd.f32 %v3488, 1.0
        %v3509 = vadd.f32 %v3490, 1.0
        %v3510 = vadd.f32 %v3492, 1.0
        %v3511 = vadd.f32 %v3494, 1.0
        %v3512 = vadd.f32 %v3496, 1.0
        %v3513 = vrcp.pop %v3497
        %v3514 = vmul.f32 1.0, %v3513
        %v3515 = vrcp.pop %v3498
        %v3516 = vmul.f32 1.0, %v3515
        %v3517 = vrcp.pop %v3499
        %v3518 = vmul.f32 1.0, %v3517
        %v3519 = vrcp.pop %v3500
        %v3520 = vmul.f32 1.0, %v3519
        %v3521 = vrcp.pop %v3501
        %v3522 = vmul.f32 1.0, %v3521
        %v3523 = vrcp.pop %v3502
        %v3524 = vmul.f32 1.0, %v3523
        %v3525 = vrcp.pop %v3503
        %v3526 = vmul.f32 1.0, %v3525
        %v3527 = vrcp.pop %v3504
        %v3528 = vmul.f32 1.0, %v3527
        %v3529 = vrcp.pop %v3505
        %v3530 = vmul.f32 1.0, %v3529
        %v3531 = vrcp.pop %v3506
        %v3532 = vmul.f32 1.0, %v3531
        %v3533 = vrcp.pop %v3507
        %v3534 = vmul.f32 1.0, %v3533
        %v3535 = vrcp.pop %v3508
        %v3536 = vmul.f32 1.0, %v3535
        %v3537 = vrcp.pop %v3509
        %v3538 = vmul.f32 1.0, %v3537
        %v3539 = vrcp.pop %v3510
        %v3540 = vmul.f32 1.0, %v3539
        %v3541 = vrcp.pop %v3511
        %v3542 = vmul.f32 1.0, %v3541
        %v3543 = vrcp.pop %v3512
        %v3544 = vmul.f32 1.0, %v3543
        %v3545 = vadd.f32 %v2975, %v3260
        %v3546 = vadd.f32 %v2978, %v3264
        %v3547 = vadd.f32 %v2981, %v3270
        %v3548 = vadd.f32 %v2984, %v3274
        %v3549 = vadd.f32 %v2987, %v3280
        %v3550 = vadd.f32 %v2990, %v3284
        %v3551 = vadd.f32 %v2993, %v3290
        %v3552 = vadd.f32 %v2996, %v3294
        %v3553 = vadd.f32 %v2999, %v3300
        %v3554 = vadd.f32 %v3002, %v3304
        %v3555 = vadd.f32 %v3005, %v3310
        %v3556 = vadd.f32 %v3008, %v3314
        %v3557 = vadd.f32 %v3011, %v3320
        %v3558 = vadd.f32 %v3014, %v3324
        %v3559 = vadd.f32 %v3017, %v3330
        %v3560 = vadd.f32 %v3020, %v3334
        %v3561 = vxor.u32 %v3545, 2147483648
        %v3562 = vxor.u32 %v3546, 2147483648
        %v3563 = vxor.u32 %v3547, 2147483648
        %v3564 = vxor.u32 %v3548, 2147483648
        %v3565 = vxor.u32 %v3549, 2147483648
        %v3566 = vxor.u32 %v3550, 2147483648
        %v3567 = vxor.u32 %v3551, 2147483648
        %v3568 = vxor.u32 %v3552, 2147483648
        %v3569 = vxor.u32 %v3553, 2147483648
        %v3570 = vxor.u32 %v3554, 2147483648
        %v3571 = vxor.u32 %v3555, 2147483648
        %v3572 = vxor.u32 %v3556, 2147483648
        %v3573 = vxor.u32 %v3557, 2147483648
        %v3574 = vxor.u32 %v3558, 2147483648
        %v3575 = vxor.u32 %v3559, 2147483648
        %v3576 = vxor.u32 %v3560, 2147483648
        %v3577 = vmul.f32 %v3561, 1.442695
        %v3578 = vpow.pop %v3577
        %v3579 = vmul.f32 %v3562, 1.442695
        %v3580 = vpow.pop %v3579
        %v3581 = vmul.f32 %v3563, 1.442695
        %v3582 = vpow.pop %v3581
        %v3583 = vmul.f32 %v3564, 1.442695
        %v3584 = vpow.pop %v3583
        %v3585 = vmul.f32 %v3565, 1.442695
        %v3586 = vpow.pop %v3585
        %v3587 = vmul.f32 %v3566, 1.442695
        %v3588 = vpow.pop %v3587
        %v3589 = vmul.f32 %v3567, 1.442695
        %v3590 = vpow.pop %v3589
        %v3591 = vmul.f32 %v3568, 1.442695
        %v3592 = vpow.pop %v3591
        %v3593 = vmul.f32 %v3569, 1.442695
        %v3594 = vpow.pop %v3593
        %v3595 = vmul.f32 %v3570, 1.442695
        %v3596 = vpow.pop %v3595
        %v3597 = vmul.f32 %v3571, 1.442695
        %v3598 = vpow.pop %v3597
        %v3599 = vmul.f32 %v3572, 1.442695
        %v3600 = vpow.pop %v3599
        %v3601 = vmul.f32 %v3573, 1.442695
        %v3602 = vpow.pop %v3601
        %v3603 = vmul.f32 %v3574, 1.442695
        %v3604 = vpow.pop %v3603
        %v3605 = vmul.f32 %v3575, 1.442695
        %v3606 = vpow.pop %v3605
        %v3607 = vmul.f32 %v3576, 1.442695
        %v3608 = vpow.pop %v3607
        %v3609 = vadd.f32 %v3578, 1.0
        %v3610 = vadd.f32 %v3580, 1.0
        %v3611 = vadd.f32 %v3582, 1.0
        %v3612 = vadd.f32 %v3584, 1.0
        %v3613 = vadd.f32 %v3586, 1.0
        %v3614 = vadd.f32 %v3588, 1.0
        %v3615 = vadd.f32 %v3590, 1.0
        %v3616 = vadd.f32 %v3592, 1.0
        %v3617 = vadd.f32 %v3594, 1.0
        %v3618 = vadd.f32 %v3596, 1.0
        %v3619 = vadd.f32 %v3598, 1.0
        %v3620 = vadd.f32 %v3600, 1.0
        %v3621 = vadd.f32 %v3602, 1.0
        %v3622 = vadd.f32 %v3604, 1.0
        %v3623 = vadd.f32 %v3606, 1.0
        %v3624 = vadd.f32 %v3608, 1.0
        %v3625 = vrcp.pop %v3609
        %v3626 = vmul.f32 1.0, %v3625
        %v3627 = vrcp.pop %v3610
        %v3628 = vmul.f32 1.0, %v3627
        %v3629 = vrcp.pop %v3611
        %v3630 = vmul.f32 1.0, %v3629
        %v3631 = vrcp.pop %v3612
        %v3632 = vmul.f32 1.0, %v3631
        %v3633 = vrcp.pop %v3613
        %v3634 = vmul.f32 1.0, %v3633
        %v3635 = vrcp.pop %v3614
        %v3636 = vmul.f32 1.0, %v3635
        %v3637 = vrcp.pop %v3615
        %v3638 = vmul.f32 1.0, %v3637
        %v3639 = vrcp.pop %v3616
        %v3640 = vmul.f32 1.0, %v3639
        %v3641 = vrcp.pop %v3617
        %v3642 = vmul.f32 1.0, %v3641
        %v3643 = vrcp.pop %v3618
        %v3644 = vmul.f32 1.0, %v3643
        %v3645 = vrcp.pop %v3619
        %v3646 = vmul.f32 1.0, %v3645
        %v3647 = vrcp.pop %v3620
        %v3648 = vmul.f32 1.0, %v3647
        %v3649 = vrcp.pop %v3621
        %v3650 = vmul.f32 1.0, %v3649
        %v3651 = vrcp.pop %v3622
        %v3652 = vmul.f32 1.0, %v3651
        %v3653 = vrcp.pop %v3623
        %v3654 = vmul.f32 1.0, %v3653
        %v3655 = vrcp.pop %v3624
        %v3656 = vmul.f32 1.0, %v3655
        %v3657 = vmul.f32 %v3514, %v3371
        %v3658 = vmul.f32 %v3516, %v3374
        %v3659 = vmul.f32 %v3518, %v3379
        %v3660 = vmul.f32 %v3520, %v3382
        %v3661 = vmul.f32 %v3522, %v3387
        %v3662 = vmul.f32 %v3524, %v3390
        %v3663 = vmul.f32 %v3526, %v3395
        %v3664 = vmul.f32 %v3528, %v3398
        %v3665 = vmul.f32 %v3530, %v3403
        %v3666 = vmul.f32 %v3532, %v3406
        %v3667 = vmul.f32 %v3534, %v3411
        %v3668 = vmul.f32 %v3536, %v3414
        %v3669 = vmul.f32 %v3538, %v3419
        %v3670 = vmul.f32 %v3540, %v3422
        %v3671 = vmul.f32 %v3542, %v3427
        %v3672 = vmul.f32 %v3544, %v3430
        %v3673 = vadd.f32 %v2976, %v3657
        %v3674 = vadd.f32 %v2979, %v3658
        %v3675 = vadd.f32 %v2982, %v3659
        %v3676 = vadd.f32 %v2985, %v3660
        %v3677 = vadd.f32 %v2988, %v3661
        %v3678 = vadd.f32 %v2991, %v3662
        %v3679 = vadd.f32 %v2994, %v3663
        %v3680 = vadd.f32 %v2997, %v3664
        %v3681 = vadd.f32 %v3000, %v3665
        %v3682 = vadd.f32 %v3003, %v3666
        %v3683 = vadd.f32 %v3006, %v3667
        %v3684 = vadd.f32 %v3009, %v3668
        %v3685 = vadd.f32 %v3012, %v3669
        %v3686 = vadd.f32 %v3015, %v3670
        %v3687 = vadd.f32 %v3018, %v3671
        %v3688 = vadd.f32 %v3021, %v3672
        %v3689 = vtanh.pop %v3673
        %v3690 = vtanh.pop %v3674
        %v3691 = vtanh.pop %v3675
        %v3692 = vtanh.pop %v3676
        %v3693 = vtanh.pop %v3677
        %v3694 = vtanh.pop %v3678
        %v3695 = vtanh.pop %v3679
        %v3696 = vtanh.pop %v3680
        %v3697 = vtanh.pop %v3681
        %v3698 = vtanh.pop %v3682
        %v3699 = vtanh.pop %v3683
        %v3700 = vtanh.pop %v3684
        %v3701 = vtanh.pop %v3685
        %v3702 = vtanh.pop %v3686
        %v3703 = vtanh.pop %v3687
        %v3704 = vtanh.pop %v3688
        %v3705 = vsub.f32 1.0, %v3626
        %v3706 = vsub.f32 1.0, %v3628
        %v3707 = vsub.f32 1.0, %v3630
        %v3708 = vsub.f32 1.0, %v3632
        %v3709 = vsub.f32 1.0, %v3634
        %v3710 = vsub.f32 1.0, %v3636
        %v3711 = vsub.f32 1.0, %v3638
        %v3712 = vsub.f32 1.0, %v3640
        %v3713 = vsub.f32 1.0, %v3642
        %v3714 = vsub.f32 1.0, %v3644
        %v3715 = vsub.f32 1.0, %v3646
        %v3716 = vsub.f32 1.0, %v3648
        %v3717 = vsub.f32 1.0, %v3650
        %v3718 = vsub.f32 1.0, %v3652
        %v3719 = vsub.f32 1.0, %v3654
        %v3720 = vsub.f32 1.0, %v3656
        %v3721 = vmul.f32 %v3705, %v3689
        %v3722 = vmul.f32 %v3706, %v3690
        %v3723 = vmul.f32 %v3707, %v3691
        %v3724 = vmul.f32 %v3708, %v3692
        %v3725 = vmul.f32 %v3709, %v3693
        %v3726 = vmul.f32 %v3710, %v3694
        %v3727 = vmul.f32 %v3711, %v3695
        %v3728 = vmul.f32 %v3712, %v3696
        %v3729 = vmul.f32 %v3713, %v3697
        %v3730 = vmul.f32 %v3714, %v3698
        %v3731 = vmul.f32 %v3715, %v3699
        %v3732 = vmul.f32 %v3716, %v3700
        %v3733 = vmul.f32 %v3717, %v3701
        %v3734 = vmul.f32 %v3718, %v3702
        %v3735 = vmul.f32 %v3719, %v3703
        %v3736 = vmul.f32 %v3720, %v3704
        %v3737 = vmul.f32 %v3626, %v3022
        %v3738 = vmul.f32 %v3628, %v3023
        %v3739 = vmul.f32 %v3630, %v3024
        %v3740 = vmul.f32 %v3632, %v3025
        %v3741 = vmul.f32 %v3634, %v3026
        %v3742 = vmul.f32 %v3636, %v3027
        %v3743 = vmul.f32 %v3638, %v3028
        %v3744 = vmul.f32 %v3640, %v3029
        %v3745 = vmul.f32 %v3642, %v3030
        %v3746 = vmul.f32 %v3644, %v3031
        %v3747 = vmul.f32 %v3646, %v3032
        %v3748 = vmul.f32 %v3648, %v3033
        %v3749 = vmul.f32 %v3650, %v3034
        %v3750 = vmul.f32 %v3652, %v3035
        %v3751 = vmul.f32 %v3654, %v3036
        %v3752 = vmul.f32 %v3656, %v3037
        %v3753 = vadd.f32 %v3721, %v3737
        %v3754 = vadd.f32 %v3722, %v3738
        %v3755 = vadd.f32 %v3723, %v3739
        %v3756 = vadd.f32 %v3724, %v3740
        %v3757 = vadd.f32 %v3725, %v3741
        %v3758 = vadd.f32 %v3726, %v3742
        %v3759 = vadd.f32 %v3727, %v3743
        %v3760 = vadd.f32 %v3728, %v3744
        %v3761 = vadd.f32 %v3729, %v3745
        %v3762 = vadd.f32 %v3730, %v3746
        %v3763 = vadd.f32 %v3731, %v3747
        %v3764 = vadd.f32 %v3732, %v3748
        %v3765 = vadd.f32 %v3733, %v3749
        %v3766 = vadd.f32 %v3734, %v3750
        %v3767 = vadd.f32 %v3735, %v3751
        %v3768 = vadd.f32 %v3736, %v3752
        %3769 = vst [vmem:[%s501] sm:$0xff] %v3753
        %3770 = vst [vmem:[%s501 + $0x8] sm:$0xff] %v3754
        %3771 = vst [vmem:[%s501 + $0x10] sm:$0xff] %v3755
        %3772 = vst [vmem:[%s501 + $0x18] sm:$0xff] %v3756
        %3773 = vst [vmem:[%s501 + $0x20] sm:$0xff] %v3757
        %3774 = vst [vmem:[%s501 + $0x28] sm:$0xff] %v3758
        %3775 = vst [vmem:[%s501 + $0x30] sm:$0xff] %v3759
        %3776 = vst [vmem:[%s501 + $0x38] sm:$0xff] %v3760
        %3777 = vst [vmem:[%s501 + $0x40] sm:$0xff] %v3761
        %3778 = vst [vmem:[%s501 + $0x48] sm:$0xff] %v3762
        %3779 = vst [vmem:[%s501 + $0x50] sm:$0xff] %v3763
        %3780 = vst [vmem:[%s501 + $0x58] sm:$0xff] %v3764
        %3781 = vst [vmem:[%s501 + $0x60] sm:$0xff] %v3765
        %3782 = vst [vmem:[%s501 + $0x68] sm:$0xff] %v3766
        %3783 = vst [vmem:[%s501 + $0x70] sm:$0xff] %v3767
        %3784 = vst [vmem:[%s501 + $0x78] sm:$0xff] %v3768
        %v3785 = vld [vmem:[%s531] sm:$0xf]
        %v3786 = vld [vmem:[%s531 + $0x4] sm:$0xf]
        %v3787 = vld [vmem:[%s531 + $0x8] sm:$0xf]
        %v3788 = vld [vmem:[%s531 + $0xc] sm:$0xf]
        %v3789 = vld [vmem:[%s531 + $0x10] sm:$0xf]
        %v3790 = vld [vmem:[%s531 + $0x14] sm:$0xf]
        %v3791 = vld [vmem:[%s531 + $0x18] sm:$0xf]
        %v3792 = vld [vmem:[%s531 + $0x1c] sm:$0xf]
        %v3793 = vld [vmem:[%s531 + $0x20] sm:$0xf]
        %v3794 = vld [vmem:[%s531 + $0x24] sm:$0xf]
        %v3795 = vld [vmem:[%s531 + $0x28] sm:$0xf]
        %v3796 = vld [vmem:[%s531 + $0x2c] sm:$0xf]
        %v3797 = vld [vmem:[%s531 + $0x30] sm:$0xf]
        %v3798 = vld [vmem:[%s531 + $0x34] sm:$0xf]
        %v3799 = vld [vmem:[%s531 + $0x38] sm:$0xf]
        %v3800 = vld [vmem:[%s531 + $0x3c] sm:$0xf]
        %v3801 = vld [vmem:[%s10] sm:$0xf]
        %v3802 = vld [vmem:[%s10 + $0x4] sm:$0xf]
        %v3803 = vld [vmem:[%s10 + $0x8] sm:$0xf]
        %v3804 = vld [vmem:[%s10 + $0xc] sm:$0xf]
        %v3805 = vld [vmem:[%s10 + $0x10] sm:$0xf]
        %v3806 = vld [vmem:[%s10 + $0x14] sm:$0xf]
        %v3807 = vld [vmem:[%s10 + $0x18] sm:$0xf]
        %v3808 = vld [vmem:[%s10 + $0x1c] sm:$0xf]
        %v3809 = vld [vmem:[%s11] sm:$0x1]
        %v3811 = vlaneseq
        %v3812 = vshrl.u32 %v3811, 7
        %v3813 = vsub.s32 0, %v3812
        %v3814 = vrot.slane %v3809, %v3813
        %v3832 = vunpack.c.l.b16 %v3785
        %v3833 = vunpack.c.l.b16 %v3786
        %v3834 = vunpack.c.l.b16 %v3787
        %v3835 = vunpack.c.l.b16 %v3788
        %v3836 = vunpack.c.l.b16 %v3789
        %v3837 = vunpack.c.l.b16 %v3790
        %v3838 = vunpack.c.l.b16 %v3791
        %v3839 = vunpack.c.l.b16 %v3792
        %v3840 = vunpack.c.l.b16 %v3793
        %v3841 = vunpack.c.l.b16 %v3794
        %v3842 = vunpack.c.l.b16 %v3795
        %v3843 = vunpack.c.l.b16 %v3796
        %v3844 = vunpack.c.l.b16 %v3797
        %v3845 = vunpack.c.l.b16 %v3798
        %v3846 = vunpack.c.l.b16 %v3799
        %v3847 = vunpack.c.l.b16 %v3800
        %v3848 = vpack.c.b16 %v3833, %v3832
        %v3849 = vpack.c.b16 %v3835, %v3834
        %v3850 = vpack.c.b16 %v3837, %v3836
        %v3851 = vpack.c.b16 %v3839, %v3838
        %v3852 = vpack.c.b16 %v3841, %v3840
        %v3853 = vpack.c.b16 %v3843, %v3842
        %v3854 = vpack.c.b16 %v3845, %v3844
        %v3855 = vpack.c.b16 %v3847, %v3846
        %v3864 = vunpack.c.l.b16 %v3801
        %v3865 = vunpack.c.l.b16 %v3802
        %v3866 = vunpack.c.l.b16 %v3803
        %v3867 = vunpack.c.l.b16 %v3804
        %v3868 = vunpack.c.l.b16 %v3805
        %v3869 = vunpack.c.l.b16 %v3806
        %v3870 = vunpack.c.l.b16 %v3807
        %v3871 = vunpack.c.l.b16 %v3808
        %v3872 = vpack.c.b16 %v3865, %v3864
        %v3873 = vpack.c.b16 %v3867, %v3866
        %v3874 = vpack.c.b16 %v3869, %v3868
        %v3875 = vpack.c.b16 %v3871, %v3870
        %v3881 = vsel %vm2722, %v3848, 0
        %v3884 = vsel %vm2722, %v3849, 0
        %v3887 = vsel %vm2722, %v3850, 0
        %v3890 = vsel %vm2722, %v3851, 0
        %v3893 = vsel %vm2722, %v3852, 0
        %v3896 = vsel %vm2722, %v3853, 0
        %v3899 = vsel %vm2722, %v3854, 0
        %v3902 = vsel %vm2722, %v3855, 0
        %3904 = vmatprep.subr.bf16.mxu0 0
        %3905 = vmatpush1.bf16.msra.mxu0 0
        %3906 = vmatprep.subr.bf16.mxu0 0
        %3907 = vmatpush1.bf16.msra.mxu0 0
        %3908 = vmatprep.subr.bf16.mxu0 0
        %3909 = vmatpush1.bf16.msra.mxu0 0
        %3910 = vmatprep.subr.bf16.mxu0 0
        %3911 = vmatpush1.bf16.msra.mxu0 0
        %3912 = vmatprep.subr.bf16.mxu0 0
        %3913 = vmatpush1.bf16.msra.mxu0 %v3875
        %3914 = vmatprep.subr.bf16.mxu0 0
        %3915 = vmatpush1.bf16.msra.mxu0 %v3874
        %3916 = vmatprep.subr.bf16.mxu0 0
        %3917 = vmatpush1.bf16.msra.mxu0 %v3873
        %3918 = vmatprep.subr.bf16.mxu0 0
        %3919 = vmatpush1.bf16.msra.mxu0 %v3872
        %3920 = vmatprep.subr.bf16.mxu0 0
        %3921 = vmatpush2.bf16.msra.mxu0 0
        %3922 = vmatprep.subr.bf16.mxu0 0
        %3923 = vmatpush2.bf16.msra.mxu0 0
        %3924 = vmatprep.subr.bf16.mxu0 0
        %3925 = vmatpush2.bf16.msra.mxu0 0
        %3926 = vmatprep.subr.bf16.mxu0 0
        %3927 = vmatpush2.bf16.msra.mxu0 0
        %3928 = vmatprep.subr.bf16.mxu0 0
        %3929 = vmatpush2.bf16.msra.mxu0 0
        %3930 = vmatprep.subr.bf16.mxu0 0
        %3931 = vmatpush2.bf16.msra.mxu0 0
        %3932 = vmatprep.subr.bf16.mxu0 0
        %3933 = vmatpush2.bf16.msra.mxu0 0
        %3934 = vmatprep.subr.bf16.mxu0 0
        %3935 = vmatpush2.bf16.msra.mxu0 0
        %3936 = vmatprep.mubr.bf16.mxu0 0
        %3937 = vmatmul.mubr.bf16.gmra.mxu0 %v3881
        %v3938 = vpop.f32.mrf.mxu0
        %v3939 = vadd.f32 %v3814, %v3938
        %v3940 = vpop.f32.mrf.mxu0
        %v3941 = vpop.f32.mrf.mxu0
        %v3942 = vadd.f32 %v3814, %v3941
        %v3943 = vpop.f32.mrf.mxu0
        %3944 = vmatprep.mubr.bf16.mxu0 0
        %3945 = vmatmul.mubr.bf16.gmra.mxu0 %v3884
        %v3946 = vpop.f32.mrf.mxu0
        %v3947 = vadd.f32 %v3814, %v3946
        %v3948 = vpop.f32.mrf.mxu0
        %v3949 = vpop.f32.mrf.mxu0
        %v3950 = vadd.f32 %v3814, %v3949
        %v3951 = vpop.f32.mrf.mxu0
        %3952 = vmatprep.mubr.bf16.mxu0 0
        %3953 = vmatmul.mubr.bf16.gmra.mxu0 %v3887
        %v3954 = vpop.f32.mrf.mxu0
        %v3955 = vadd.f32 %v3814, %v3954
        %v3956 = vpop.f32.mrf.mxu0
        %v3957 = vpop.f32.mrf.mxu0
        %v3958 = vadd.f32 %v3814, %v3957
        %v3959 = vpop.f32.mrf.mxu0
        %3960 = vmatprep.mubr.bf16.mxu0 0
        %3961 = vmatmul.mubr.bf16.gmra.mxu0 %v3890
        %v3962 = vpop.f32.mrf.mxu0
        %v3963 = vadd.f32 %v3814, %v3962
        %v3964 = vpop.f32.mrf.mxu0
        %v3965 = vpop.f32.mrf.mxu0
        %v3966 = vadd.f32 %v3814, %v3965
        %v3967 = vpop.f32.mrf.mxu0
        %3968 = vmatprep.mubr.bf16.mxu0 0
        %3969 = vmatmul.mubr.bf16.gmra.mxu0 %v3893
        %v3970 = vpop.f32.mrf.mxu0
        %v3971 = vadd.f32 %v3814, %v3970
        %v3972 = vpop.f32.mrf.mxu0
        %v3973 = vpop.f32.mrf.mxu0
        %v3974 = vadd.f32 %v3814, %v3973
        %v3975 = vpop.f32.mrf.mxu0
        %3976 = vmatprep.mubr.bf16.mxu0 0
        %3977 = vmatmul.mubr.bf16.gmra.mxu0 %v3896
        %v3978 = vpop.f32.mrf.mxu0
        %v3979 = vadd.f32 %v3814, %v3978
        %v3980 = vpop.f32.mrf.mxu0
        %v3981 = vpop.f32.mrf.mxu0
        %v3982 = vadd.f32 %v3814, %v3981
        %v3983 = vpop.f32.mrf.mxu0
        %3984 = vmatprep.mubr.bf16.mxu0 0
        %3985 = vmatmul.mubr.bf16.gmra.mxu0 %v3899
        %v3986 = vpop.f32.mrf.mxu0
        %v3987 = vadd.f32 %v3814, %v3986
        %v3988 = vpop.f32.mrf.mxu0
        %v3989 = vpop.f32.mrf.mxu0
        %v3990 = vadd.f32 %v3814, %v3989
        %v3991 = vpop.f32.mrf.mxu0
        %3992 = vmatprep.mubr.bf16.mxu0 0
        %3993 = vmatmul.mubr.bf16.gmra.mxu0 %v3902
        %v3994 = vpop.f32.mrf.mxu0
        %v3995 = vadd.f32 %v3814, %v3994
        %v3996 = vpop.f32.mrf.mxu0
        %v3997 = vpop.f32.mrf.mxu0
        %v3998 = vadd.f32 %v3814, %v3997
        %v3999 = vpop.f32.mrf.mxu0
        %4000 = vdwg.mxu0
        %v4001 = vadd.f32 %v3753, %v3939
        %v4002 = vadd.f32 %v3754, %v3942
        %v4003 = vadd.f32 %v3755, %v3947
        %v4004 = vadd.f32 %v3756, %v3950
        %v4005 = vadd.f32 %v3757, %v3955
        %v4006 = vadd.f32 %v3758, %v3958
        %v4007 = vadd.f32 %v3759, %v3963
        %v4008 = vadd.f32 %v3760, %v3966
        %v4009 = vadd.f32 %v3761, %v3971
        %v4010 = vadd.f32 %v3762, %v3974
        %v4011 = vadd.f32 %v3763, %v3979
        %v4012 = vadd.f32 %v3764, %v3982
        %v4013 = vadd.f32 %v3765, %v3987
        %v4014 = vadd.f32 %v3766, %v3990
        %v4015 = vadd.f32 %v3767, %v3995
        %v4016 = vadd.f32 %v3768, %v3998
        %4017 = vst [vmem:[%s508] sm:$0xff] %v4001
        %4018 = vst [vmem:[%s508 + $0x8] sm:$0xff] %v4002
        %4019 = vst [vmem:[%s508 + $0x10] sm:$0xff] %v4003
        %4020 = vst [vmem:[%s508 + $0x18] sm:$0xff] %v4004
        %4021 = vst [vmem:[%s508 + $0x20] sm:$0xff] %v4005
        %4022 = vst [vmem:[%s508 + $0x28] sm:$0xff] %v4006
        %4023 = vst [vmem:[%s508 + $0x30] sm:$0xff] %v4007
        %4024 = vst [vmem:[%s508 + $0x38] sm:$0xff] %v4008
        %4025 = vst [vmem:[%s508 + $0x40] sm:$0xff] %v4009
        %4026 = vst [vmem:[%s508 + $0x48] sm:$0xff] %v4010
        %4027 = vst [vmem:[%s508 + $0x50] sm:$0xff] %v4011
        %4028 = vst [vmem:[%s508 + $0x58] sm:$0xff] %v4012
        %4029 = vst [vmem:[%s508 + $0x60] sm:$0xff] %v4013
        %4030 = vst [vmem:[%s508 + $0x68] sm:$0xff] %v4014
        %4031 = vst [vmem:[%s508 + $0x70] sm:$0xff] %v4015
        %4032 = vst [vmem:[%s508 + $0x78] sm:$0xff] %v4016
        %s4033 = sand.u32 %s312, 1
        %s4034 = scalar_lea.sflag [#allocation4], %s4033
        %s4035 = sand.u32 %s312, 1
        %s4036 = smul.addr %s4035, 128
        %s4037 = scalar_lea.vmem [#allocation5], %s4036
        %s4038 = sand.u32 %s338, 1
        %s4039 = scalar_lea.sflag [#allocation7], %s4038
        %s4040 = sand.u32 %s338, 1
        %s4041 = smul.addr %s4040, 128
        %s4042 = scalar_lea.vmem [#allocation6], %s4041
        // Predicated region
        $region73: #{tpu_custom_call.1} parent=67 // pred_check
          %p4043 = pneg %p322
        $region74: #{tpu_custom_call.1} parent=67 // pred_check_branch
          %4045 = sbr.rel (%p4043) target = $region76
        $region75: #{tpu_custom_call.1} parent=67 // pred_region
          %s4046 = smul.u32 16, %s32
          %s4048 = ssub.s32 2048, 2048
          %4049 = vsyncadd %s4034, %s4048
          %s4050 = smul.addr %s4046, 128
          %s4051 = scalar_lea.hbm %s12, %s4050
          %s4052 = sshll.u32 %s4037, 4
          %s4053 = int_to_ptr.vmem [resolvable:$true] %s4052
          %4058 = dma.vmem_to_hbm [thread:$0]  %s4053, 2048, %s4051, %s4034, 128, 128, 8
        $region76: #{tpu_custom_call.1} parent=67 // pred_fallthru
          _
        // Predicated region
        $region77: #{tpu_custom_call.1} parent=67 // pred_check
          %p4059 = pneg %p348
        $region78: #{tpu_custom_call.1} parent=67 // pred_check_branch
          %4061 = sbr.rel (%p4059) target = $region80
        $region79: #{tpu_custom_call.1} parent=67 // pred_region
          %s4062 = smul.u32 16, %s32
          %s4064 = ssub.s32 2048, 2048
          %4065 = vsyncadd %s4039, %s4064
          %s4066 = smul.addr %s4062, 128
          %s4067 = scalar_lea.hbm %s13, %s4066
          %s4068 = sshll.u32 %s4042, 4
          %s4069 = int_to_ptr.vmem [resolvable:$true] %s4068
          %4074 = dma.vmem_to_hbm [thread:$0]  %s4069, 2048, %s4067, %s4039, 128, 128, 8
        $region80: #{tpu_custom_call.1} parent=67 // pred_fallthru
          _
      $region68: #{tpu_custom_call.1} parent=5 // pred_fallthru
        _
      %p4075 = scmp.le.s32.totalorder 2, %s27
      // Predicated region
      $region81: #{tpu_custom_call.1} parent=5 // pred_check
        %p4076 = pneg %p4075
      $region82: #{tpu_custom_call.1} parent=5 // pred_check_branch
        %4078 = sbr.rel (%p4076) target = $region84
      $region83: #{tpu_custom_call.1} parent=5 // pred_region
        %s4079 = ssub.s32 %s27, 2
        // Predicated region
        $region85: #{tpu_custom_call.1} parent=83 // pred_check
          %p4080 = pneg %p328
        $region86: #{tpu_custom_call.1} parent=83 // pred_check_branch
          %4082 = sbr.rel (%p4080) target = $region88
        $region87: #{tpu_custom_call.1} parent=83 // pred_region
          %s4083 = sand.u32 %s313, 1
          %s4084 = scalar_lea.sflag [#allocation4], %s4083
          %s4085 = sand.u32 %s313, 1
          %s4086 = smul.addr %s4085, 128
          %s4087 = scalar_lea.vmem [#allocation5], %s4086
          %4088 = dma.done %s4084, 2048
        $region88: #{tpu_custom_call.1} parent=83 // pred_fallthru
          _
        // Predicated region
        $region89: #{tpu_custom_call.1} parent=83 // pred_check
          %p4089 = pneg %p354
        $region90: #{tpu_custom_call.1} parent=83 // pred_check_branch
          %4091 = sbr.rel (%p4089) target = $region92
        $region91: #{tpu_custom_call.1} parent=83 // pred_region
          %s4092 = sand.u32 %s339, 1
          %s4093 = scalar_lea.sflag [#allocation7], %s4092
          %s4094 = sand.u32 %s339, 1
          %s4095 = smul.addr %s4094, 128
          %s4096 = scalar_lea.vmem [#allocation6], %s4095
          %4097 = dma.done %s4093, 2048
        $region92: #{tpu_custom_call.1} parent=83 // pred_fallthru
          _
      $region84: #{tpu_custom_call.1} parent=5 // pred_fallthru
        _
    $region6: #{tpu_custom_call.1} parent=1 // loop_footer
      %s31 = sadd.s32 1, %s27
    $region7: #{tpu_custom_call.1} parent=1 // loop_footer_branch
      %26 = sbr.rel target = $region3
    $region8: #{tpu_custom_call.1} parent=1 // loop_exit
      _
    %4098 = vsyncpa [#allocation3], 1
    %s4099 = scalar_lea.sflag [#allocation3], 1
    %4100 = vsyncpa %s4099, 1
    %4101 = vsyncpa [#allocation4], 1
    %s4102 = scalar_lea.sflag [#allocation4], 1
    %4103 = vsyncpa %s4102, 1
    %4104 = vsyncpa [#allocation7], 1
    %s4105 = scalar_lea.sflag [#allocation7], 1
    %4106 = vsyncpa %s4105, 1

</llo_original>
